<compile_context>
chip_gen: v6e
topology: v6e:2x2x1
jax: 0.10.0
libtpu: 0.0.40
codegen_flags: <defaults>
</compile_context>

<pallas_src>
import functools

import jax
import jax.numpy as jnp
from jax.experimental import pallas as pl
from jax.experimental.pallas import tpu as pltpu

LANES = 128


def _full_spec(shape):
    # single-program grid; block == whole array (satisfies tiling rule)
    return pl.BlockSpec(shape, lambda i: (0,) * len(shape))


# ------------------------------ fused kernel ------------------------------- #

def _netws_kernel(p1_ref, w1_ref, w2_ref, w3_ref, w4_ref, w5_ref, w6_ref,
                  b_ref, o_ref, *, bp):
    """bp = padded per-branch batch (multiple of 8); n2 = 2*bp rows."""
    f32 = jnp.float32
    bf16 = jnp.bfloat16
    n2 = 2 * bp

    b1 = b_ref[0:1, :]
    b2 = b_ref[1:2, :]
    b3 = b_ref[2:3, :]
    b4 = b_ref[3:4, :]
    b5 = b_ref[4:5, :]
    b6 = b_ref[5:6, :]

    # ---- conv1: ONE matmul covering all 4 pool taps (block-diag w1) ----
    # p1 rows ordered (i, j, n) over the 6x6 pooled grid; cols = tap_ab*9 + t.
    # Output lane block ab*128.. holds conv1 channels for pool tap ab.
    a1 = jnp.dot(p1_ref[...], w1_ref[...], preferred_element_type=f32)  # [36*n2, 512]

    # ---- maxpool(2,2) over the 4 lane blocks, then bias + ReLU ----
    pooled1 = jnp.maximum(
        jnp.maximum(jnp.maximum(a1[:, 0:128], a1[:, 128:256]),
                    jnp.maximum(a1[:, 256:384], a1[:, 384:512])) + b1,
        0.0)                                        # [36*n2, 128] f32
    pooled1 = pooled1.astype(bf16)                  # matmul operand for conv2

    def piece(i, j):                                # pooled1 at spatial (i, j)
        s = i * 6 + j
        return pooled1[s * n2:(s + 1) * n2, :]      # [n2, 128], 16-row aligned

    # ---- conv2: ONE stacked im2col matmul over all 16 output positions ----
    # row block (u*4+v) = lane-concat of the 9 pooled1 pieces for (u, v).
    patches = jnp.concatenate(
        [jnp.concatenate([piece(u + dh, v + dw)
                          for dh in range(3) for dw in range(3)], axis=1)
         for u in range(4) for v in range(4)],
        axis=0)                                     # [16*n2, 1152] bf16
    a2 = jnp.dot(patches, w2_ref[...], preferred_element_type=f32) + b2  # [16*n2, 128]

    def blk(u, v):
        s = u * 4 + v
        return a2[s * n2:(s + 1) * n2, :]           # [n2, 128], aligned

    # ---- maxpool(2,2) + ReLU, lane-concat in (p, q) order for fc3 ----
    # (the NCHW .view(-1, 256) feature order is folded into w3 at prep time)
    feat = jnp.concatenate(
        [jnp.maximum(
            jnp.maximum(jnp.maximum(blk(2 * p, 2 * q), blk(2 * p, 2 * q + 1)),
                        jnp.maximum(blk(2 * p + 1, 2 * q), blk(2 * p + 1, 2 * q + 1))),
            0.0)
         for p in range(2) for q in range(2)], axis=1)        # [n2, 512] f32

    # ---- fc3 / fc4 (shared branch) ----
    h3 = jnp.maximum(
        jnp.dot(feat.astype(bf16), w3_ref[...], preferred_element_type=f32) + b3, 0.0)
    h4 = jnp.maximum(
        jnp.dot(h3.astype(bf16), w4_ref[...], preferred_element_type=f32) + b4, 0.0)

    # ---- siamese concat + fc5 (single merged [256,128] weight) ----
    x12 = jnp.concatenate([h4[:bp, :], h4[bp:, :]], axis=1)   # [bp, 256]
    h5 = jnp.maximum(
        jnp.dot(x12.astype(bf16), w5_ref[...], preferred_element_type=f32) + b5, 0.0)

    # ---- fc6: logits in lanes 0..1, zeros elsewhere (lane-dense store) ----
    o_ref[...] = (jnp.dot(h5.astype(bf16), w6_ref[...],
                          preferred_element_type=f32) + b6).astype(o_ref.dtype)


# --------------------- wrapper-side conv1 patch building -------------------- #

def _conv1_pool_patches(imgs):
    """imgs: [N, 14, 14] -> lane-dense conv1 im2col patches [36*N, 128].

    Row order (i, j, n): (i, j) is the 6x6 pooled output position, n the image
    index.  Column = ab*9 + (dh*3 + dw) for ab = 2*a + b the 2x2 pool tap; the
    value is imgs[n, 2*i + a + dh, 2*j + b + dw].  Columns 36..127 are zero.
    Matches the block-diagonal w1 layout from prepare_params.
    """
    N = imgs.shape[0]
    cols = []
    for a in range(2):
        for b in range(2):
            for dh in range(3):
                for dw in range(3):
                    cols.append(imgs[:, a + dh:a + dh + 11:2,
                                     b + dw:b + dw + 11:2])   # [N, 6, 6]
    p = jnp.stack(cols, axis=-1)                              # [N, 6, 6, 36]
    p = jnp.transpose(p, (1, 2, 0, 3))                        # [6, 6, N, 36]
    p = p.reshape(36 * N, 36)
    return jnp.pad(p, ((0, 0), (0, LANES - 36)))              # [36*N, 128]


# ----------------------------- parameters ----------------------------------- #

def init_params(key):
    ks = jax.random.split(key, 12)

    def w(k, shape, scale=0.1):
        return scale * jax.random.normal(k, shape, dtype=jnp.float32)

    return {
        "conv1_w": w(ks[0], (32, 1, 3, 3)),   "conv1_b": w(ks[1], (32,)),
        "conv2_w": w(ks[2], (64, 32, 3, 3)),  "conv2_b": w(ks[3], (64,)),
        "fc3_w":   w(ks[4], (128, 256)),      "fc3_b":   w(ks[5], (128,)),
        "fc4_w":   w(ks[6], (10, 128)),       "fc4_b":   w(ks[7], (10,)),
        "fc5_w":   w(ks[8], (128, 20)),       "fc5_b":   w(ks[9], (128,)),
        "fc6_w":   w(ks[10], (2, 128)),       "fc6_b":   w(ks[11], (2,)),
    }


def _pad_cols(m, n=LANES):
    return jnp.pad(m, ((0, 0), (0, n - m.shape[1])))


def _pad_vec(v, n=LANES):
    return jnp.pad(v, (0, n - v.shape[0])).reshape(1, n)


def prepare_params(p):
    """One-time layout prep: transposes, NCHW-flatten folding, lane padding,
    the block-diagonal conv1 weight, the merged fc5 weight, and bf16 cast."""
    bf16 = jnp.bfloat16

    # conv1: block-diagonal [128, 4*128].  Row ab*9 + t, col ab*128 + ch.
    w1s = p["conv1_w"].reshape(32, 9).T                       # [t, ch]
    w1 = jnp.zeros((4, 9, 4, LANES), jnp.float32)
    for ab in range(4):
        w1 = w1.at[ab, :, ab, :32].set(w1s)
    w1 = jnp.pad(w1.reshape(36, 4 * LANES), ((0, LANES - 36), (0, 0)))

    # conv2: [64,32,3,3] -> [9*128, 128]; row = tap*128 + in_chan, col = out.
    w2 = jnp.transpose(p["conv2_w"], (2, 3, 1, 0)).reshape(9, 32, 64)
    w2 = jnp.pad(w2, ((0, 0), (0, LANES - 32), (0, LANES - 64)))
    w2 = w2.reshape(9 * LANES, LANES)

    # fc3: fold the PyTorch NCHW .view(-1, 256) order (f = c*4 + p*2 + q).
    w3 = p["fc3_w"].reshape(128, 64, 4)                       # [out, c, m]
    w3 = jnp.transpose(w3, (2, 1, 0))                         # [m, c, out]
    w3 = jnp.pad(w3, ((0, 0), (0, LANES - 64), (0, 0))).reshape(4 * LANES, LANES)

    w4 = _pad_cols(p["fc4_w"].T)                              # [128, 128]

    # fc5 merged: torch.cat((x1, x2), 1) folded into a single [256, 128] slab.
    w5 = jnp.zeros((2 * LANES, LANES), jnp.float32)
    w5 = w5.at[0:10, :].set(p["fc5_w"][:, :10].T)
    w5 = w5.at[LANES:LANES + 10, :].set(p["fc5_w"][:, 10:].T)

    w6 = _pad_cols(p["fc6_w"].T)                              # [128, 128]

    biases = jnp.concatenate([
        _pad_vec(p["conv1_b"]), _pad_vec(p["conv2_b"]),
        _pad_vec(p["fc3_b"]),   _pad_vec(p["fc4_b"]),
        _pad_vec(p["fc5_b"]),   _pad_vec(p["fc6_b"]),
        jnp.zeros((2, LANES), jnp.float32)], axis=0)          # [8, 128] f32

    return {"w1": w1.astype(bf16), "w2": w2.astype(bf16), "w3": w3.astype(bf16),
            "w4": w4.astype(bf16), "w5": w5.astype(bf16), "w6": w6.astype(bf16),
            "b": biases}


# ----------------------------- forward pass --------------------------------- #

@jax.jit
def netws_forward(x, prep):
    """x: [B, 2, 14, 14] NCHW float32.  Returns (logits[B, 2], None, None)."""
    B = x.shape[0]
    bp = ((B + 7) // 8) * 8          # per-branch batch padded to 8-row tiles
    n2p = 2 * bp

    imgs = jnp.concatenate(
        [jnp.pad(x[:, 0], ((0, bp - B), (0, 0), (0, 0))),
         jnp.pad(x[:, 1], ((0, bp - B), (0, 0), (0, 0)))], axis=0)   # [n2p,14,14]
    p1 = _conv1_pool_patches(imgs).astype(jnp.bfloat16)              # [36*n2p,128]

    out = pl.pallas_call(
        functools.partial(_netws_kernel, bp=bp),
        out_shape=jax.ShapeDtypeStruct((bp, LANES), jnp.float32),
        grid=(1,),
        in_specs=[_full_spec(p1.shape),
                  _full_spec(prep["w1"].shape),
                  _full_spec(prep["w2"].shape),
                  _full_spec(prep["w3"].shape),
                  _full_spec(prep["w4"].shape),
                  _full_spec(prep["w5"].shape),
                  _full_spec(prep["w6"].shape),
                  _full_spec(prep["b"].shape)],
        out_specs=_full_spec((bp, LANES)),
        compiler_params=pltpu.CompilerParams(
            dimension_semantics=("arbitrary",)),
    )(p1, prep["w1"], prep["w2"], prep["w3"], prep["w4"],
      prep["w5"], prep["w6"], prep["b"])

    return out[:B, :2], None, None


# --------------------------- pure-JAX reference ----------------------------- #

@jax.jit
def netws_reference(x, params):
    def conv(img, w, b):
        out = jax.lax.conv_general_dilated(
            img, w, (1, 1), "VALID",
            dimension_numbers=("NCHW", "OIHW", "NCHW"))
        return out + b.reshape(1, -1, 1, 1)

    def pool(a):
        return jax.lax.reduce_window(a, -jnp.inf, jax.lax.max,
                                     (1, 1, 2, 2), (1, 1, 2, 2), "VALID")

    def branch(img):
        h = jax.nn.relu(pool(conv(img[:, None], params["conv1_w"], params["conv1_b"])))
        h = jax.nn.relu(pool(conv(h, params["conv2_w"], params["conv2_b"])))
        h = h.reshape(h.shape[0], -1)                       # NCHW flatten -> 256
        h = jax.nn.relu(h @ params["fc3_w"].T + params["fc3_b"])
        h = jax.nn.relu(h @ params["fc4_w"].T + params["fc4_b"])
        return h

    x1 = branch(x[:, 0])
    x2 = branch(x[:, 1])
    h = jax.nn.relu(jnp.concatenate([x1, x2], axis=1) @ params["fc5_w"].T
                    + params["fc5_b"])
    return h @ params["fc6_w"].T + params["fc6_b"]


# ----------------------------- main ----------------------------------------- #

if __name__ == "__main__":
    key = jax.random.PRNGKey(0)
    k_param, k_x = jax.random.split(key)

    params = init_params(k_param)
    prep = prepare_params(params)        # one-time layout prep (not per call)
    x = jax.random.normal(k_x, (2, 2, 14, 14), dtype=jnp.float32)   # B = 2

    out, aux1, aux2 = netws_forward(x, prep)
    out = jax.block_until_ready(out)

    assert out.shape == (2, 2) and out.dtype == jnp.float32
    assert aux1 is None and aux2 is None

    # Correctness check vs. an f32 reference (loose tolerance: bf16 matmul
    # operands inside the kernel, f32 accumulation).
    ref = jax.block_until_ready(netws_reference(x, params))
    assert bool(jnp.allclose(out, ref, atol=5e-2, rtol=5e-2)), (
        f"max abs diff {float(jnp.max(jnp.abs(out - ref)))}")

    print("KERNEL_OK")
</pallas_src>

<mosaic_0001>
module attributes {stable_mosaic.version = 11 : i64} {
  func.func @_netws_kernel(%arg0: i32, %arg1: memref<576x128xbf16, #tpu.memory_space<vmem>>, %arg2: memref<128x512xbf16, #tpu.memory_space<vmem>>, %arg3: memref<1152x128xbf16, #tpu.memory_space<vmem>>, %arg4: memref<512x128xbf16, #tpu.memory_space<vmem>>, %arg5: memref<128x128xbf16, #tpu.memory_space<vmem>>, %arg6: memref<256x128xbf16, #tpu.memory_space<vmem>>, %arg7: memref<128x128xbf16, #tpu.memory_space<vmem>>, %arg8: memref<8x128xf32, #tpu.memory_space<vmem>>, %arg9: memref<8x128xf32, #tpu.memory_space<vmem>>) attributes {dimension_semantics = [#tpu.dimension_semantics<arbitrary>], iteration_bounds = array<i64: 1>, scalar_prefetch = 0 : i64, scratch_operands = 0 : i64, tpu.core_type = #tpu.core_type<tc>, window_params = [{pipeline_mode = #tpu.pipeline_mode<synchronous>, transform_indices = @transform_0, window_bounds = array<i64: 576, 128>}, {pipeline_mode = #tpu.pipeline_mode<synchronous>, transform_indices = @transform_1, window_bounds = array<i64: 128, 512>}, {pipeline_mode = #tpu.pipeline_mode<synchronous>, transform_indices = @transform_2, window_bounds = array<i64: 1152, 128>}, {pipeline_mode = #tpu.pipeline_mode<synchronous>, transform_indices = @transform_3, window_bounds = array<i64: 512, 128>}, {pipeline_mode = #tpu.pipeline_mode<synchronous>, transform_indices = @transform_4, window_bounds = array<i64: 128, 128>}, {pipeline_mode = #tpu.pipeline_mode<synchronous>, transform_indices = @transform_5, window_bounds = array<i64: 256, 128>}, {pipeline_mode = #tpu.pipeline_mode<synchronous>, transform_indices = @transform_6, window_bounds = array<i64: 128, 128>}, {pipeline_mode = #tpu.pipeline_mode<synchronous>, transform_indices = @transform_7, window_bounds = array<i64: 8, 128>}, {pipeline_mode = #tpu.pipeline_mode<synchronous>, transform_indices = @transform_8, window_bounds = array<i64: 8, 128>}]} {
    %c0 = arith.constant 0 : index
    %c0_0 = arith.constant 0 : index
    %0 = vector.load %arg8[%c0, %c0_0] : memref<8x128xf32, #tpu.memory_space<vmem>>, vector<1x128xf32>
    %c1 = arith.constant 1 : index
    %c0_1 = arith.constant 0 : index
    %1 = vector.load %arg8[%c1, %c0_1] : memref<8x128xf32, #tpu.memory_space<vmem>>, vector<1x128xf32>
    %c2 = arith.constant 2 : index
    %c0_2 = arith.constant 0 : index
    %2 = vector.load %arg8[%c2, %c0_2] : memref<8x128xf32, #tpu.memory_space<vmem>>, vector<1x128xf32>
    %c3 = arith.constant 3 : index
    %c0_3 = arith.constant 0 : index
    %3 = vector.load %arg8[%c3, %c0_3] : memref<8x128xf32, #tpu.memory_space<vmem>>, vector<1x128xf32>
    %c4 = arith.constant 4 : index
    %c0_4 = arith.constant 0 : index
    %4 = vector.load %arg8[%c4, %c0_4] : memref<8x128xf32, #tpu.memory_space<vmem>>, vector<1x128xf32>
    %c5 = arith.constant 5 : index
    %c0_5 = arith.constant 0 : index
    %5 = vector.load %arg8[%c5, %c0_5] : memref<8x128xf32, #tpu.memory_space<vmem>>, vector<1x128xf32>
    %c0_6 = arith.constant 0 : index
    %c0_7 = arith.constant 0 : index
    %6 = vector.load %arg1[%c0_6, %c0_7] : memref<576x128xbf16, #tpu.memory_space<vmem>>, vector<576x128xbf16>
    %c0_8 = arith.constant 0 : index
    %c0_9 = arith.constant 0 : index
    %7 = vector.load %arg2[%c0_8, %c0_9] : memref<128x512xbf16, #tpu.memory_space<vmem>>, vector<128x512xbf16>
    %cst = arith.constant dense<0.000000e+00> : vector<576x512xf32>
    %8 = tpu.matmul %6, %7, %cst {dimension_numbers = #tpu.dot_dimension_numbers<[1], [0], [0], [1], [0, 0, 1, 1], [], []>} : vector<576x128xbf16>, vector<128x512xbf16>, vector<576x512xf32> -> vector<576x512xf32>
    %9 = vector.extract_strided_slice %8 {offsets = [0, 0], sizes = [576, 128], strides = [1, 1]} : vector<576x512xf32> to vector<576x128xf32>
    %10 = vector.extract_strided_slice %8 {offsets = [0, 128], sizes = [576, 128], strides = [1, 1]} : vector<576x512xf32> to vector<576x128xf32>
    %11 = arith.maximumf %9, %10 : vector<576x128xf32>
    %12 = vector.extract_strided_slice %8 {offsets = [0, 256], sizes = [576, 128], strides = [1, 1]} : vector<576x512xf32> to vector<576x128xf32>
    %13 = vector.extract_strided_slice %8 {offsets = [0, 384], sizes = [576, 128], strides = [1, 1]} : vector<576x512xf32> to vector<576x128xf32>
    %14 = arith.maximumf %12, %13 : vector<576x128xf32>
    %15 = arith.maximumf %11, %14 : vector<576x128xf32>
    %16 = vector.broadcast %0 : vector<1x128xf32> to vector<576x128xf32>
    %17 = arith.addf %15, %16 : vector<576x128xf32>
    %cst_10 = arith.constant 0.000000e+00 : f32
    %18 = vector.broadcast %cst_10 : f32 to vector<576x128xf32>
    %19 = arith.maximumf %17, %18 : vector<576x128xf32>
    %20 = arith.truncf %19 : vector<576x128xf32> to vector<576x128xbf16>
    %21 = vector.extract_strided_slice %20 {offsets = [0, 0], sizes = [16, 128], strides = [1, 1]} : vector<576x128xbf16> to vector<16x128xbf16>
    %22 = vector.extract_strided_slice %20 {offsets = [16, 0], sizes = [16, 128], strides = [1, 1]} : vector<576x128xbf16> to vector<16x128xbf16>
    %23 = vector.extract_strided_slice %20 {offsets = [32, 0], sizes = [16, 128], strides = [1, 1]} : vector<576x128xbf16> to vector<16x128xbf16>
    %24 = vector.extract_strided_slice %20 {offsets = [96, 0], sizes = [16, 128], strides = [1, 1]} : vector<576x128xbf16> to vector<16x128xbf16>
    %25 = vector.extract_strided_slice %20 {offsets = [112, 0], sizes = [16, 128], strides = [1, 1]} : vector<576x128xbf16> to vector<16x128xbf16>
    %26 = vector.extract_strided_slice %20 {offsets = [128, 0], sizes = [16, 128], strides = [1, 1]} : vector<576x128xbf16> to vector<16x128xbf16>
    %27 = vector.extract_strided_slice %20 {offsets = [192, 0], sizes = [16, 128], strides = [1, 1]} : vector<576x128xbf16> to vector<16x128xbf16>
    %28 = vector.extract_strided_slice %20 {offsets = [208, 0], sizes = [16, 128], strides = [1, 1]} : vector<576x128xbf16> to vector<16x128xbf16>
    %29 = vector.extract_strided_slice %20 {offsets = [224, 0], sizes = [16, 128], strides = [1, 1]} : vector<576x128xbf16> to vector<16x128xbf16>
    %30 = tpu.concatenate %21, %22, %23, %24, %25, %26, %27, %28, %29 in 1 : vector<16x128xbf16>, vector<16x128xbf16>, vector<16x128xbf16>, vector<16x128xbf16>, vector<16x128xbf16>, vector<16x128xbf16>, vector<16x128xbf16>, vector<16x128xbf16>, vector<16x128xbf16> -> vector<16x1152xbf16>
    %31 = vector.extract_strided_slice %20 {offsets = [16, 0], sizes = [16, 128], strides = [1, 1]} : vector<576x128xbf16> to vector<16x128xbf16>
    %32 = vector.extract_strided_slice %20 {offsets = [32, 0], sizes = [16, 128], strides = [1, 1]} : vector<576x128xbf16> to vector<16x128xbf16>
    %33 = vector.extract_strided_slice %20 {offsets = [48, 0], sizes = [16, 128], strides = [1, 1]} : vector<576x128xbf16> to vector<16x128xbf16>
    %34 = vector.extract_strided_slice %20 {offsets = [112, 0], sizes = [16, 128], strides = [1, 1]} : vector<576x128xbf16> to vector<16x128xbf16>
    %35 = vector.extract_strided_slice %20 {offsets = [128, 0], sizes = [16, 128], strides = [1, 1]} : vector<576x128xbf16> to vector<16x128xbf16>
    %36 = vector.extract_strided_slice %20 {offsets = [144, 0], sizes = [16, 128], strides = [1, 1]} : vector<576x128xbf16> to vector<16x128xbf16>
    %37 = vector.extract_strided_slice %20 {offsets = [208, 0], sizes = [16, 128], strides = [1, 1]} : vector<576x128xbf16> to vector<16x128xbf16>
    %38 = vector.extract_strided_slice %20 {offsets = [224, 0], sizes = [16, 128], strides = [1, 1]} : vector<576x128xbf16> to vector<16x128xbf16>
    %39 = vector.extract_strided_slice %20 {offsets = [240, 0], sizes = [16, 128], strides = [1, 1]} : vector<576x128xbf16> to vector<16x128xbf16>
    %40 = tpu.concatenate %31, %32, %33, %34, %35, %36, %37, %38, %39 in 1 : vector<16x128xbf16>, vector<16x128xbf16>, vector<16x128xbf16>, vector<16x128xbf16>, vector<16x128xbf16>, vector<16x128xbf16>, vector<16x128xbf16>, vector<16x128xbf16>, vector<16x128xbf16> -> vector<16x1152xbf16>
    %41 = vector.extract_strided_slice %20 {offsets = [32, 0], sizes = [16, 128], strides = [1, 1]} : vector<576x128xbf16> to vector<16x128xbf16>
    %42 = vector.extract_strided_slice %20 {offsets = [48, 0], sizes = [16, 128], strides = [1, 1]} : vector<576x128xbf16> to vector<16x128xbf16>
    %43 = vector.extract_strided_slice %20 {offsets = [64, 0], sizes = [16, 128], strides = [1, 1]} : vector<576x128xbf16> to vector<16x128xbf16>
    %44 = vector.extract_strided_slice %20 {offsets = [128, 0], sizes = [16, 128], strides = [1, 1]} : vector<576x128xbf16> to vector<16x128xbf16>
    %45 = vector.extract_strided_slice %20 {offsets = [144, 0], sizes = [16, 128], strides = [1, 1]} : vector<576x128xbf16> to vector<16x128xbf16>
    %46 = vector.extract_strided_slice %20 {offsets = [160, 0], sizes = [16, 128], strides = [1, 1]} : vector<576x128xbf16> to vector<16x128xbf16>
    %47 = vector.extract_strided_slice %20 {offsets = [224, 0], sizes = [16, 128], strides = [1, 1]} : vector<576x128xbf16> to vector<16x128xbf16>
    %48 = vector.extract_strided_slice %20 {offsets = [240, 0], sizes = [16, 128], strides = [1, 1]} : vector<576x128xbf16> to vector<16x128xbf16>
    %49 = vector.extract_strided_slice %20 {offsets = [256, 0], sizes = [16, 128], strides = [1, 1]} : vector<576x128xbf16> to vector<16x128xbf16>
    %50 = tpu.concatenate %41, %42, %43, %44, %45, %46, %47, %48, %49 in 1 : vector<16x128xbf16>, vector<16x128xbf16>, vector<16x128xbf16>, vector<16x128xbf16>, vector<16x128xbf16>, vector<16x128xbf16>, vector<16x128xbf16>, vector<16x128xbf16>, vector<16x128xbf16> -> vector<16x1152xbf16>
    %51 = vector.extract_strided_slice %20 {offsets = [48, 0], sizes = [16, 128], strides = [1, 1]} : vector<576x128xbf16> to vector<16x128xbf16>
    %52 = vector.extract_strided_slice %20 {offsets = [64, 0], sizes = [16, 128], strides = [1, 1]} : vector<576x128xbf16> to vector<16x128xbf16>
    %53 = vector.extract_strided_slice %20 {offsets = [80, 0], sizes = [16, 128], strides = [1, 1]} : vector<576x128xbf16> to vector<16x128xbf16>
    %54 = vector.extract_strided_slice %20 {offsets = [144, 0], sizes = [16, 128], strides = [1, 1]} : vector<576x128xbf16> to vector<16x128xbf16>
    %55 = vector.extract_strided_slice %20 {offsets = [160, 0], sizes = [16, 128], strides = [1, 1]} : vector<576x128xbf16> to vector<16x128xbf16>
    %56 = vector.extract_strided_slice %20 {offsets = [176, 0], sizes = [16, 128], strides = [1, 1]} : vector<576x128xbf16> to vector<16x128xbf16>
    %57 = vector.extract_strided_slice %20 {offsets = [240, 0], sizes = [16, 128], strides = [1, 1]} : vector<576x128xbf16> to vector<16x128xbf16>
    %58 = vector.extract_strided_slice %20 {offsets = [256, 0], sizes = [16, 128], strides = [1, 1]} : vector<576x128xbf16> to vector<16x128xbf16>
    %59 = vector.extract_strided_slice %20 {offsets = [272, 0], sizes = [16, 128], strides = [1, 1]} : vector<576x128xbf16> to vector<16x128xbf16>
    %60 = tpu.concatenate %51, %52, %53, %54, %55, %56, %57, %58, %59 in 1 : vector<16x128xbf16>, vector<16x128xbf16>, vector<16x128xbf16>, vector<16x128xbf16>, vector<16x128xbf16>, vector<16x128xbf16>, vector<16x128xbf16>, vector<16x128xbf16>, vector<16x128xbf16> -> vector<16x1152xbf16>
    %61 = vector.extract_strided_slice %20 {offsets = [96, 0], sizes = [16, 128], strides = [1, 1]} : vector<576x128xbf16> to vector<16x128xbf16>
    %62 = vector.extract_strided_slice %20 {offsets = [112, 0], sizes = [16, 128], strides = [1, 1]} : vector<576x128xbf16> to vector<16x128xbf16>
    %63 = vector.extract_strided_slice %20 {offsets = [128, 0], sizes = [16, 128], strides = [1, 1]} : vector<576x128xbf16> to vector<16x128xbf16>
    %64 = vector.extract_strided_slice %20 {offsets = [192, 0], sizes = [16, 128], strides = [1, 1]} : vector<576x128xbf16> to vector<16x128xbf16>
    %65 = vector.extract_strided_slice %20 {offsets = [208, 0], sizes = [16, 128], strides = [1, 1]} : vector<576x128xbf16> to vector<16x128xbf16>
    %66 = vector.extract_strided_slice %20 {offsets = [224, 0], sizes = [16, 128], strides = [1, 1]} : vector<576x128xbf16> to vector<16x128xbf16>
    %67 = vector.extract_strided_slice %20 {offsets = [288, 0], sizes = [16, 128], strides = [1, 1]} : vector<576x128xbf16> to vector<16x128xbf16>
    %68 = vector.extract_strided_slice %20 {offsets = [304, 0], sizes = [16, 128], strides = [1, 1]} : vector<576x128xbf16> to vector<16x128xbf16>
    %69 = vector.extract_strided_slice %20 {offsets = [320, 0], sizes = [16, 128], strides = [1, 1]} : vector<576x128xbf16> to vector<16x128xbf16>
    %70 = tpu.concatenate %61, %62, %63, %64, %65, %66, %67, %68, %69 in 1 : vector<16x128xbf16>, vector<16x128xbf16>, vector<16x128xbf16>, vector<16x128xbf16>, vector<16x128xbf16>, vector<16x128xbf16>, vector<16x128xbf16>, vector<16x128xbf16>, vector<16x128xbf16> -> vector<16x1152xbf16>
    %71 = vector.extract_strided_slice %20 {offsets = [112, 0], sizes = [16, 128], strides = [1, 1]} : vector<576x128xbf16> to vector<16x128xbf16>
    %72 = vector.extract_strided_slice %20 {offsets = [128, 0], sizes = [16, 128], strides = [1, 1]} : vector<576x128xbf16> to vector<16x128xbf16>
    %73 = vector.extract_strided_slice %20 {offsets = [144, 0], sizes = [16, 128], strides = [1, 1]} : vector<576x128xbf16> to vector<16x128xbf16>
    %74 = vector.extract_strided_slice %20 {offsets = [208, 0], sizes = [16, 128], strides = [1, 1]} : vector<576x128xbf16> to vector<16x128xbf16>
    %75 = vector.extract_strided_slice %20 {offsets = [224, 0], sizes = [16, 128], strides = [1, 1]} : vector<576x128xbf16> to vector<16x128xbf16>
    %76 = vector.extract_strided_slice %20 {offsets = [240, 0], sizes = [16, 128], strides = [1, 1]} : vector<576x128xbf16> to vector<16x128xbf16>
    %77 = vector.extract_strided_slice %20 {offsets = [304, 0], sizes = [16, 128], strides = [1, 1]} : vector<576x128xbf16> to vector<16x128xbf16>
    %78 = vector.extract_strided_slice %20 {offsets = [320, 0], sizes = [16, 128], strides = [1, 1]} : vector<576x128xbf16> to vector<16x128xbf16>
    %79 = vector.extract_strided_slice %20 {offsets = [336, 0], sizes = [16, 128], strides = [1, 1]} : vector<576x128xbf16> to vector<16x128xbf16>
    %80 = tpu.concatenate %71, %72, %73, %74, %75, %76, %77, %78, %79 in 1 : vector<16x128xbf16>, vector<16x128xbf16>, vector<16x128xbf16>, vector<16x128xbf16>, vector<16x128xbf16>, vector<16x128xbf16>, vector<16x128xbf16>, vector<16x128xbf16>, vector<16x128xbf16> -> vector<16x1152xbf16>
    %81 = vector.extract_strided_slice %20 {offsets = [128, 0], sizes = [16, 128], strides = [1, 1]} : vector<576x128xbf16> to vector<16x128xbf16>
    %82 = vector.extract_strided_slice %20 {offsets = [144, 0], sizes = [16, 128], strides = [1, 1]} : vector<576x128xbf16> to vector<16x128xbf16>
    %83 = vector.extract_strided_slice %20 {offsets = [160, 0], sizes = [16, 128], strides = [1, 1]} : vector<576x128xbf16> to vector<16x128xbf16>
    %84 = vector.extract_strided_slice %20 {offsets = [224, 0], sizes = [16, 128], strides = [1, 1]} : vector<576x128xbf16> to vector<16x128xbf16>
    %85 = vector.extract_strided_slice %20 {offsets = [240, 0], sizes = [16, 128], strides = [1, 1]} : vector<576x128xbf16> to vector<16x128xbf16>
    %86 = vector.extract_strided_slice %20 {offsets = [256, 0], sizes = [16, 128], strides = [1, 1]} : vector<576x128xbf16> to vector<16x128xbf16>
    %87 = vector.extract_strided_slice %20 {offsets = [320, 0], sizes = [16, 128], strides = [1, 1]} : vector<576x128xbf16> to vector<16x128xbf16>
    %88 = vector.extract_strided_slice %20 {offsets = [336, 0], sizes = [16, 128], strides = [1, 1]} : vector<576x128xbf16> to vector<16x128xbf16>
    %89 = vector.extract_strided_slice %20 {offsets = [352, 0], sizes = [16, 128], strides = [1, 1]} : vector<576x128xbf16> to vector<16x128xbf16>
    %90 = tpu.concatenate %81, %82, %83, %84, %85, %86, %87, %88, %89 in 1 : vector<16x128xbf16>, vector<16x128xbf16>, vector<16x128xbf16>, vector<16x128xbf16>, vector<16x128xbf16>, vector<16x128xbf16>, vector<16x128xbf16>, vector<16x128xbf16>, vector<16x128xbf16> -> vector<16x1152xbf16>
    %91 = vector.extract_strided_slice %20 {offsets = [144, 0], sizes = [16, 128], strides = [1, 1]} : vector<576x128xbf16> to vector<16x128xbf16>
    %92 = vector.extract_strided_slice %20 {offsets = [160, 0], sizes = [16, 128], strides = [1, 1]} : vector<576x128xbf16> to vector<16x128xbf16>
    %93 = vector.extract_strided_slice %20 {offsets = [176, 0], sizes = [16, 128], strides = [1, 1]} : vector<576x128xbf16> to vector<16x128xbf16>
    %94 = vector.extract_strided_slice %20 {offsets = [240, 0], sizes = [16, 128], strides = [1, 1]} : vector<576x128xbf16> to vector<16x128xbf16>
    %95 = vector.extract_strided_slice %20 {offsets = [256, 0], sizes = [16, 128], strides = [1, 1]} : vector<576x128xbf16> to vector<16x128xbf16>
    %96 = vector.extract_strided_slice %20 {offsets = [272, 0], sizes = [16, 128], strides = [1, 1]} : vector<576x128xbf16> to vector<16x128xbf16>
    %97 = vector.extract_strided_slice %20 {offsets = [336, 0], sizes = [16, 128], strides = [1, 1]} : vector<576x128xbf16> to vector<16x128xbf16>
    %98 = vector.extract_strided_slice %20 {offsets = [352, 0], sizes = [16, 128], strides = [1, 1]} : vector<576x128xbf16> to vector<16x128xbf16>
    %99 = vector.extract_strided_slice %20 {offsets = [368, 0], sizes = [16, 128], strides = [1, 1]} : vector<576x128xbf16> to vector<16x128xbf16>
    %100 = tpu.concatenate %91, %92, %93, %94, %95, %96, %97, %98, %99 in 1 : vector<16x128xbf16>, vector<16x128xbf16>, vector<16x128xbf16>, vector<16x128xbf16>, vector<16x128xbf16>, vector<16x128xbf16>, vector<16x128xbf16>, vector<16x128xbf16>, vector<16x128xbf16> -> vector<16x1152xbf16>
    %101 = vector.extract_strided_slice %20 {offsets = [192, 0], sizes = [16, 128], strides = [1, 1]} : vector<576x128xbf16> to vector<16x128xbf16>
    %102 = vector.extract_strided_slice %20 {offsets = [208, 0], sizes = [16, 128], strides = [1, 1]} : vector<576x128xbf16> to vector<16x128xbf16>
    %103 = vector.extract_strided_slice %20 {offsets = [224, 0], sizes = [16, 128], strides = [1, 1]} : vector<576x128xbf16> to vector<16x128xbf16>
    %104 = vector.extract_strided_slice %20 {offsets = [288, 0], sizes = [16, 128], strides = [1, 1]} : vector<576x128xbf16> to vector<16x128xbf16>
    %105 = vector.extract_strided_slice %20 {offsets = [304, 0], sizes = [16, 128], strides = [1, 1]} : vector<576x128xbf16> to vector<16x128xbf16>
    %106 = vector.extract_strided_slice %20 {offsets = [320, 0], sizes = [16, 128], strides = [1, 1]} : vector<576x128xbf16> to vector<16x128xbf16>
    %107 = vector.extract_strided_slice %20 {offsets = [384, 0], sizes = [16, 128], strides = [1, 1]} : vector<576x128xbf16> to vector<16x128xbf16>
    %108 = vector.extract_strided_slice %20 {offsets = [400, 0], sizes = [16, 128], strides = [1, 1]} : vector<576x128xbf16> to vector<16x128xbf16>
    %109 = vector.extract_strided_slice %20 {offsets = [416, 0], sizes = [16, 128], strides = [1, 1]} : vector<576x128xbf16> to vector<16x128xbf16>
    %110 = tpu.concatenate %101, %102, %103, %104, %105, %106, %107, %108, %109 in 1 : vector<16x128xbf16>, vector<16x128xbf16>, vector<16x128xbf16>, vector<16x128xbf16>, vector<16x128xbf16>, vector<16x128xbf16>, vector<16x128xbf16>, vector<16x128xbf16>, vector<16x128xbf16> -> vector<16x1152xbf16>
    %111 = vector.extract_strided_slice %20 {offsets = [208, 0], sizes = [16, 128], strides = [1, 1]} : vector<576x128xbf16> to vector<16x128xbf16>
    %112 = vector.extract_strided_slice %20 {offsets = [224, 0], sizes = [16, 128], strides = [1, 1]} : vector<576x128xbf16> to vector<16x128xbf16>
    %113 = vector.extract_strided_slice %20 {offsets = [240, 0], sizes = [16, 128], strides = [1, 1]} : vector<576x128xbf16> to vector<16x128xbf16>
    %114 = vector.extract_strided_slice %20 {offsets = [304, 0], sizes = [16, 128], strides = [1, 1]} : vector<576x128xbf16> to vector<16x128xbf16>
    %115 = vector.extract_strided_slice %20 {offsets = [320, 0], sizes = [16, 128], strides = [1, 1]} : vector<576x128xbf16> to vector<16x128xbf16>
    %116 = vector.extract_strided_slice %20 {offsets = [336, 0], sizes = [16, 128], strides = [1, 1]} : vector<576x128xbf16> to vector<16x128xbf16>
    %117 = vector.extract_strided_slice %20 {offsets = [400, 0], sizes = [16, 128], strides = [1, 1]} : vector<576x128xbf16> to vector<16x128xbf16>
    %118 = vector.extract_strided_slice %20 {offsets = [416, 0], sizes = [16, 128], strides = [1, 1]} : vector<576x128xbf16> to vector<16x128xbf16>
    %119 = vector.extract_strided_slice %20 {offsets = [432, 0], sizes = [16, 128], strides = [1, 1]} : vector<576x128xbf16> to vector<16x128xbf16>
    %120 = tpu.concatenate %111, %112, %113, %114, %115, %116, %117, %118, %119 in 1 : vector<16x128xbf16>, vector<16x128xbf16>, vector<16x128xbf16>, vector<16x128xbf16>, vector<16x128xbf16>, vector<16x128xbf16>, vector<16x128xbf16>, vector<16x128xbf16>, vector<16x128xbf16> -> vector<16x1152xbf16>
    %121 = vector.extract_strided_slice %20 {offsets = [224, 0], sizes = [16, 128], strides = [1, 1]} : vector<576x128xbf16> to vector<16x128xbf16>
    %122 = vector.extract_strided_slice %20 {offsets = [240, 0], sizes = [16, 128], strides = [1, 1]} : vector<576x128xbf16> to vector<16x128xbf16>
    %123 = vector.extract_strided_slice %20 {offsets = [256, 0], sizes = [16, 128], strides = [1, 1]} : vector<576x128xbf16> to vector<16x128xbf16>
    %124 = vector.extract_strided_slice %20 {offsets = [320, 0], sizes = [16, 128], strides = [1, 1]} : vector<576x128xbf16> to vector<16x128xbf16>
    %125 = vector.extract_strided_slice %20 {offsets = [336, 0], sizes = [16, 128], strides = [1, 1]} : vector<576x128xbf16> to vector<16x128xbf16>
    %126 = vector.extract_strided_slice %20 {offsets = [352, 0], sizes = [16, 128], strides = [1, 1]} : vector<576x128xbf16> to vector<16x128xbf16>
    %127 = vector.extract_strided_slice %20 {offsets = [416, 0], sizes = [16, 128], strides = [1, 1]} : vector<576x128xbf16> to vector<16x128xbf16>
    %128 = vector.extract_strided_slice %20 {offsets = [432, 0], sizes = [16, 128], strides = [1, 1]} : vector<576x128xbf16> to vector<16x128xbf16>
    %129 = vector.extract_strided_slice %20 {offsets = [448, 0], sizes = [16, 128], strides = [1, 1]} : vector<576x128xbf16> to vector<16x128xbf16>
    %130 = tpu.concatenate %121, %122, %123, %124, %125, %126, %127, %128, %129 in 1 : vector<16x128xbf16>, vector<16x128xbf16>, vector<16x128xbf16>, vector<16x128xbf16>, vector<16x128xbf16>, vector<16x128xbf16>, vector<16x128xbf16>, vector<16x128xbf16>, vector<16x128xbf16> -> vector<16x1152xbf16>
    %131 = vector.extract_strided_slice %20 {offsets = [240, 0], sizes = [16, 128], strides = [1, 1]} : vector<576x128xbf16> to vector<16x128xbf16>
    %132 = vector.extract_strided_slice %20 {offsets = [256, 0], sizes = [16, 128], strides = [1, 1]} : vector<576x128xbf16> to vector<16x128xbf16>
    %133 = vector.extract_strided_slice %20 {offsets = [272, 0], sizes = [16, 128], strides = [1, 1]} : vector<576x128xbf16> to vector<16x128xbf16>
    %134 = vector.extract_strided_slice %20 {offsets = [336, 0], sizes = [16, 128], strides = [1, 1]} : vector<576x128xbf16> to vector<16x128xbf16>
    %135 = vector.extract_strided_slice %20 {offsets = [352, 0], sizes = [16, 128], strides = [1, 1]} : vector<576x128xbf16> to vector<16x128xbf16>
    %136 = vector.extract_strided_slice %20 {offsets = [368, 0], sizes = [16, 128], strides = [1, 1]} : vector<576x128xbf16> to vector<16x128xbf16>
    %137 = vector.extract_strided_slice %20 {offsets = [432, 0], sizes = [16, 128], strides = [1, 1]} : vector<576x128xbf16> to vector<16x128xbf16>
    %138 = vector.extract_strided_slice %20 {offsets = [448, 0], sizes = [16, 128], strides = [1, 1]} : vector<576x128xbf16> to vector<16x128xbf16>
    %139 = vector.extract_strided_slice %20 {offsets = [464, 0], sizes = [16, 128], strides = [1, 1]} : vector<576x128xbf16> to vector<16x128xbf16>
    %140 = tpu.concatenate %131, %132, %133, %134, %135, %136, %137, %138, %139 in 1 : vector<16x128xbf16>, vector<16x128xbf16>, vector<16x128xbf16>, vector<16x128xbf16>, vector<16x128xbf16>, vector<16x128xbf16>, vector<16x128xbf16>, vector<16x128xbf16>, vector<16x128xbf16> -> vector<16x1152xbf16>
    %141 = vector.extract_strided_slice %20 {offsets = [288, 0], sizes = [16, 128], strides = [1, 1]} : vector<576x128xbf16> to vector<16x128xbf16>
    %142 = vector.extract_strided_slice %20 {offsets = [304, 0], sizes = [16, 128], strides = [1, 1]} : vector<576x128xbf16> to vector<16x128xbf16>
    %143 = vector.extract_strided_slice %20 {offsets = [320, 0], sizes = [16, 128], strides = [1, 1]} : vector<576x128xbf16> to vector<16x128xbf16>
    %144 = vector.extract_strided_slice %20 {offsets = [384, 0], sizes = [16, 128], strides = [1, 1]} : vector<576x128xbf16> to vector<16x128xbf16>
    %145 = vector.extract_strided_slice %20 {offsets = [400, 0], sizes = [16, 128], strides = [1, 1]} : vector<576x128xbf16> to vector<16x128xbf16>
    %146 = vector.extract_strided_slice %20 {offsets = [416, 0], sizes = [16, 128], strides = [1, 1]} : vector<576x128xbf16> to vector<16x128xbf16>
    %147 = vector.extract_strided_slice %20 {offsets = [480, 0], sizes = [16, 128], strides = [1, 1]} : vector<576x128xbf16> to vector<16x128xbf16>
    %148 = vector.extract_strided_slice %20 {offsets = [496, 0], sizes = [16, 128], strides = [1, 1]} : vector<576x128xbf16> to vector<16x128xbf16>
    %149 = vector.extract_strided_slice %20 {offsets = [512, 0], sizes = [16, 128], strides = [1, 1]} : vector<576x128xbf16> to vector<16x128xbf16>
    %150 = tpu.concatenate %141, %142, %143, %144, %145, %146, %147, %148, %149 in 1 : vector<16x128xbf16>, vector<16x128xbf16>, vector<16x128xbf16>, vector<16x128xbf16>, vector<16x128xbf16>, vector<16x128xbf16>, vector<16x128xbf16>, vector<16x128xbf16>, vector<16x128xbf16> -> vector<16x1152xbf16>
    %151 = vector.extract_strided_slice %20 {offsets = [304, 0], sizes = [16, 128], strides = [1, 1]} : vector<576x128xbf16> to vector<16x128xbf16>
    %152 = vector.extract_strided_slice %20 {offsets = [320, 0], sizes = [16, 128], strides = [1, 1]} : vector<576x128xbf16> to vector<16x128xbf16>
    %153 = vector.extract_strided_slice %20 {offsets = [336, 0], sizes = [16, 128], strides = [1, 1]} : vector<576x128xbf16> to vector<16x128xbf16>
    %154 = vector.extract_strided_slice %20 {offsets = [400, 0], sizes = [16, 128], strides = [1, 1]} : vector<576x128xbf16> to vector<16x128xbf16>
    %155 = vector.extract_strided_slice %20 {offsets = [416, 0], sizes = [16, 128], strides = [1, 1]} : vector<576x128xbf16> to vector<16x128xbf16>
    %156 = vector.extract_strided_slice %20 {offsets = [432, 0], sizes = [16, 128], strides = [1, 1]} : vector<576x128xbf16> to vector<16x128xbf16>
    %157 = vector.extract_strided_slice %20 {offsets = [496, 0], sizes = [16, 128], strides = [1, 1]} : vector<576x128xbf16> to vector<16x128xbf16>
    %158 = vector.extract_strided_slice %20 {offsets = [512, 0], sizes = [16, 128], strides = [1, 1]} : vector<576x128xbf16> to vector<16x128xbf16>
    %159 = vector.extract_strided_slice %20 {offsets = [528, 0], sizes = [16, 128], strides = [1, 1]} : vector<576x128xbf16> to vector<16x128xbf16>
    %160 = tpu.concatenate %151, %152, %153, %154, %155, %156, %157, %158, %159 in 1 : vector<16x128xbf16>, vector<16x128xbf16>, vector<16x128xbf16>, vector<16x128xbf16>, vector<16x128xbf16>, vector<16x128xbf16>, vector<16x128xbf16>, vector<16x128xbf16>, vector<16x128xbf16> -> vector<16x1152xbf16>
    %161 = vector.extract_strided_slice %20 {offsets = [320, 0], sizes = [16, 128], strides = [1, 1]} : vector<576x128xbf16> to vector<16x128xbf16>
    %162 = vector.extract_strided_slice %20 {offsets = [336, 0], sizes = [16, 128], strides = [1, 1]} : vector<576x128xbf16> to vector<16x128xbf16>
    %163 = vector.extract_strided_slice %20 {offsets = [352, 0], sizes = [16, 128], strides = [1, 1]} : vector<576x128xbf16> to vector<16x128xbf16>
    %164 = vector.extract_strided_slice %20 {offsets = [416, 0], sizes = [16, 128], strides = [1, 1]} : vector<576x128xbf16> to vector<16x128xbf16>
    %165 = vector.extract_strided_slice %20 {offsets = [432, 0], sizes = [16, 128], strides = [1, 1]} : vector<576x128xbf16> to vector<16x128xbf16>
    %166 = vector.extract_strided_slice %20 {offsets = [448, 0], sizes = [16, 128], strides = [1, 1]} : vector<576x128xbf16> to vector<16x128xbf16>
    %167 = vector.extract_strided_slice %20 {offsets = [512, 0], sizes = [16, 128], strides = [1, 1]} : vector<576x128xbf16> to vector<16x128xbf16>
    %168 = vector.extract_strided_slice %20 {offsets = [528, 0], sizes = [16, 128], strides = [1, 1]} : vector<576x128xbf16> to vector<16x128xbf16>
    %169 = vector.extract_strided_slice %20 {offsets = [544, 0], sizes = [16, 128], strides = [1, 1]} : vector<576x128xbf16> to vector<16x128xbf16>
    %170 = tpu.concatenate %161, %162, %163, %164, %165, %166, %167, %168, %169 in 1 : vector<16x128xbf16>, vector<16x128xbf16>, vector<16x128xbf16>, vector<16x128xbf16>, vector<16x128xbf16>, vector<16x128xbf16>, vector<16x128xbf16>, vector<16x128xbf16>, vector<16x128xbf16> -> vector<16x1152xbf16>
    %171 = vector.extract_strided_slice %20 {offsets = [336, 0], sizes = [16, 128], strides = [1, 1]} : vector<576x128xbf16> to vector<16x128xbf16>
    %172 = vector.extract_strided_slice %20 {offsets = [352, 0], sizes = [16, 128], strides = [1, 1]} : vector<576x128xbf16> to vector<16x128xbf16>
    %173 = vector.extract_strided_slice %20 {offsets = [368, 0], sizes = [16, 128], strides = [1, 1]} : vector<576x128xbf16> to vector<16x128xbf16>
    %174 = vector.extract_strided_slice %20 {offsets = [432, 0], sizes = [16, 128], strides = [1, 1]} : vector<576x128xbf16> to vector<16x128xbf16>
    %175 = vector.extract_strided_slice %20 {offsets = [448, 0], sizes = [16, 128], strides = [1, 1]} : vector<576x128xbf16> to vector<16x128xbf16>
    %176 = vector.extract_strided_slice %20 {offsets = [464, 0], sizes = [16, 128], strides = [1, 1]} : vector<576x128xbf16> to vector<16x128xbf16>
    %177 = vector.extract_strided_slice %20 {offsets = [528, 0], sizes = [16, 128], strides = [1, 1]} : vector<576x128xbf16> to vector<16x128xbf16>
    %178 = vector.extract_strided_slice %20 {offsets = [544, 0], sizes = [16, 128], strides = [1, 1]} : vector<576x128xbf16> to vector<16x128xbf16>
    %179 = vector.extract_strided_slice %20 {offsets = [560, 0], sizes = [16, 128], strides = [1, 1]} : vector<576x128xbf16> to vector<16x128xbf16>
    %180 = tpu.concatenate %171, %172, %173, %174, %175, %176, %177, %178, %179 in 1 : vector<16x128xbf16>, vector<16x128xbf16>, vector<16x128xbf16>, vector<16x128xbf16>, vector<16x128xbf16>, vector<16x128xbf16>, vector<16x128xbf16>, vector<16x128xbf16>, vector<16x128xbf16> -> vector<16x1152xbf16>
    %181 = tpu.concatenate %30, %40, %50, %60, %70, %80, %90, %100, %110, %120, %130, %140, %150, %160, %170, %180 in 0 : vector<16x1152xbf16>, vector<16x1152xbf16>, vector<16x1152xbf16>, vector<16x1152xbf16>, vector<16x1152xbf16>, vector<16x1152xbf16>, vector<16x1152xbf16>, vector<16x1152xbf16>, vector<16x1152xbf16>, vector<16x1152xbf16>, vector<16x1152xbf16>, vector<16x1152xbf16>, vector<16x1152xbf16>, vector<16x1152xbf16>, vector<16x1152xbf16>, vector<16x1152xbf16> -> vector<256x1152xbf16>
    %c0_11 = arith.constant 0 : index
    %c0_12 = arith.constant 0 : index
    %182 = vector.load %arg3[%c0_11, %c0_12] : memref<1152x128xbf16, #tpu.memory_space<vmem>>, vector<1152x128xbf16>
    %cst_13 = arith.constant dense<0.000000e+00> : vector<256x128xf32>
    %183 = tpu.matmul %181, %182, %cst_13 {dimension_numbers = #tpu.dot_dimension_numbers<[1], [0], [0], [1], [0, 0, 1, 1], [], []>} : vector<256x1152xbf16>, vector<1152x128xbf16>, vector<256x128xf32> -> vector<256x128xf32>
    %184 = vector.broadcast %1 : vector<1x128xf32> to vector<256x128xf32>
    %185 = arith.addf %183, %184 : vector<256x128xf32>
    %186 = vector.extract_strided_slice %185 {offsets = [0, 0], sizes = [16, 128], strides = [1, 1]} : vector<256x128xf32> to vector<16x128xf32>
    %187 = vector.extract_strided_slice %185 {offsets = [16, 0], sizes = [16, 128], strides = [1, 1]} : vector<256x128xf32> to vector<16x128xf32>
    %188 = arith.maximumf %186, %187 : vector<16x128xf32>
    %189 = vector.extract_strided_slice %185 {offsets = [64, 0], sizes = [16, 128], strides = [1, 1]} : vector<256x128xf32> to vector<16x128xf32>
    %190 = vector.extract_strided_slice %185 {offsets = [80, 0], sizes = [16, 128], strides = [1, 1]} : vector<256x128xf32> to vector<16x128xf32>
    %191 = arith.maximumf %189, %190 : vector<16x128xf32>
    %192 = arith.maximumf %188, %191 : vector<16x128xf32>
    %cst_14 = arith.constant 0.000000e+00 : f32
    %193 = vector.broadcast %cst_14 : f32 to vector<16x128xf32>
    %194 = arith.maximumf %192, %193 : vector<16x128xf32>
    %195 = vector.extract_strided_slice %185 {offsets = [32, 0], sizes = [16, 128], strides = [1, 1]} : vector<256x128xf32> to vector<16x128xf32>
    %196 = vector.extract_strided_slice %185 {offsets = [48, 0], sizes = [16, 128], strides = [1, 1]} : vector<256x128xf32> to vector<16x128xf32>
    %197 = arith.maximumf %195, %196 : vector<16x128xf32>
    %198 = vector.extract_strided_slice %185 {offsets = [96, 0], sizes = [16, 128], strides = [1, 1]} : vector<256x128xf32> to vector<16x128xf32>
    %199 = vector.extract_strided_slice %185 {offsets = [112, 0], sizes = [16, 128], strides = [1, 1]} : vector<256x128xf32> to vector<16x128xf32>
    %200 = arith.maximumf %198, %199 : vector<16x128xf32>
    %201 = arith.maximumf %197, %200 : vector<16x128xf32>
    %cst_15 = arith.constant 0.000000e+00 : f32
    %202 = vector.broadcast %cst_15 : f32 to vector<16x128xf32>
    %203 = arith.maximumf %201, %202 : vector<16x128xf32>
    %204 = vector.extract_strided_slice %185 {offsets = [128, 0], sizes = [16, 128], strides = [1, 1]} : vector<256x128xf32> to vector<16x128xf32>
    %205 = vector.extract_strided_slice %185 {offsets = [144, 0], sizes = [16, 128], strides = [1, 1]} : vector<256x128xf32> to vector<16x128xf32>
    %206 = arith.maximumf %204, %205 : vector<16x128xf32>
    %207 = vector.extract_strided_slice %185 {offsets = [192, 0], sizes = [16, 128], strides = [1, 1]} : vector<256x128xf32> to vector<16x128xf32>
    %208 = vector.extract_strided_slice %185 {offsets = [208, 0], sizes = [16, 128], strides = [1, 1]} : vector<256x128xf32> to vector<16x128xf32>
    %209 = arith.maximumf %207, %208 : vector<16x128xf32>
    %210 = arith.maximumf %206, %209 : vector<16x128xf32>
    %cst_16 = arith.constant 0.000000e+00 : f32
    %211 = vector.broadcast %cst_16 : f32 to vector<16x128xf32>
    %212 = arith.maximumf %210, %211 : vector<16x128xf32>
    %213 = vector.extract_strided_slice %185 {offsets = [160, 0], sizes = [16, 128], strides = [1, 1]} : vector<256x128xf32> to vector<16x128xf32>
    %214 = vector.extract_strided_slice %185 {offsets = [176, 0], sizes = [16, 128], strides = [1, 1]} : vector<256x128xf32> to vector<16x128xf32>
    %215 = arith.maximumf %213, %214 : vector<16x128xf32>
    %216 = vector.extract_strided_slice %185 {offsets = [224, 0], sizes = [16, 128], strides = [1, 1]} : vector<256x128xf32> to vector<16x128xf32>
    %217 = vector.extract_strided_slice %185 {offsets = [240, 0], sizes = [16, 128], strides = [1, 1]} : vector<256x128xf32> to vector<16x128xf32>
    %218 = arith.maximumf %216, %217 : vector<16x128xf32>
    %219 = arith.maximumf %215, %218 : vector<16x128xf32>
    %cst_17 = arith.constant 0.000000e+00 : f32
    %220 = vector.broadcast %cst_17 : f32 to vector<16x128xf32>
    %221 = arith.maximumf %219, %220 : vector<16x128xf32>
    %222 = tpu.concatenate %194, %203, %212, %221 in 1 : vector<16x128xf32>, vector<16x128xf32>, vector<16x128xf32>, vector<16x128xf32> -> vector<16x512xf32>
    %223 = arith.truncf %222 : vector<16x512xf32> to vector<16x512xbf16>
    %c0_18 = arith.constant 0 : index
    %c0_19 = arith.constant 0 : index
    %224 = vector.load %arg4[%c0_18, %c0_19] : memref<512x128xbf16, #tpu.memory_space<vmem>>, vector<512x128xbf16>
    %cst_20 = arith.constant dense<0.000000e+00> : vector<16x128xf32>
    %225 = tpu.matmul %223, %224, %cst_20 {dimension_numbers = #tpu.dot_dimension_numbers<[1], [0], [0], [1], [0, 0, 1, 1], [], []>} : vector<16x512xbf16>, vector<512x128xbf16>, vector<16x128xf32> -> vector<16x128xf32>
    %226 = vector.broadcast %2 : vector<1x128xf32> to vector<16x128xf32>
    %227 = arith.addf %225, %226 : vector<16x128xf32>
    %cst_21 = arith.constant 0.000000e+00 : f32
    %228 = vector.broadcast %cst_21 : f32 to vector<16x128xf32>
    %229 = arith.maximumf %227, %228 : vector<16x128xf32>
    %230 = arith.truncf %229 : vector<16x128xf32> to vector<16x128xbf16>
    %c0_22 = arith.constant 0 : index
    %c0_23 = arith.constant 0 : index
    %231 = vector.load %arg5[%c0_22, %c0_23] : memref<128x128xbf16, #tpu.memory_space<vmem>>, vector<128x128xbf16>
    %cst_24 = arith.constant dense<0.000000e+00> : vector<16x128xf32>
    %232 = tpu.matmul %230, %231, %cst_24 {dimension_numbers = #tpu.dot_dimension_numbers<[1], [0], [0], [1], [0, 0, 1, 1], [], []>} : vector<16x128xbf16>, vector<128x128xbf16>, vector<16x128xf32> -> vector<16x128xf32>
    %233 = vector.broadcast %3 : vector<1x128xf32> to vector<16x128xf32>
    %234 = arith.addf %232, %233 : vector<16x128xf32>
    %cst_25 = arith.constant 0.000000e+00 : f32
    %235 = vector.broadcast %cst_25 : f32 to vector<16x128xf32>
    %236 = arith.maximumf %234, %235 : vector<16x128xf32>
    %237 = vector.extract_strided_slice %236 {offsets = [0, 0], sizes = [8, 128], strides = [1, 1]} : vector<16x128xf32> to vector<8x128xf32>
    %238 = vector.extract_strided_slice %236 {offsets = [8, 0], sizes = [8, 128], strides = [1, 1]} : vector<16x128xf32> to vector<8x128xf32>
    %239 = tpu.concatenate %237, %238 in 1 : vector<8x128xf32>, vector<8x128xf32> -> vector<8x256xf32>
    %240 = arith.truncf %239 : vector<8x256xf32> to vector<8x256xbf16>
    %c0_26 = arith.constant 0 : index
    %c0_27 = arith.constant 0 : index
    %241 = vector.load %arg6[%c0_26, %c0_27] : memref<256x128xbf16, #tpu.memory_space<vmem>>, vector<256x128xbf16>
    %cst_28 = arith.constant dense<0.000000e+00> : vector<8x128xf32>
    %242 = tpu.matmul %240, %241, %cst_28 {dimension_numbers = #tpu.dot_dimension_numbers<[1], [0], [0], [1], [0, 0, 1, 1], [], []>} : vector<8x256xbf16>, vector<256x128xbf16>, vector<8x128xf32> -> vector<8x128xf32>
    %243 = vector.broadcast %4 : vector<1x128xf32> to vector<8x128xf32>
    %244 = arith.addf %242, %243 : vector<8x128xf32>
    %cst_29 = arith.constant 0.000000e+00 : f32
    %245 = vector.broadcast %cst_29 : f32 to vector<8x128xf32>
    %246 = arith.maximumf %244, %245 : vector<8x128xf32>
    %247 = arith.truncf %246 : vector<8x128xf32> to vector<8x128xbf16>
    %c0_30 = arith.constant 0 : index
    %c0_31 = arith.constant 0 : index
    %248 = vector.load %arg7[%c0_30, %c0_31] : memref<128x128xbf16, #tpu.memory_space<vmem>>, vector<128x128xbf16>
    %cst_32 = arith.constant dense<0.000000e+00> : vector<8x128xf32>
    %249 = tpu.matmul %247, %248, %cst_32 {dimension_numbers = #tpu.dot_dimension_numbers<[1], [0], [0], [1], [0, 0, 1, 1], [], []>} : vector<8x128xbf16>, vector<128x128xbf16>, vector<8x128xf32> -> vector<8x128xf32>
    %250 = vector.broadcast %5 : vector<1x128xf32> to vector<8x128xf32>
    %251 = arith.addf %249, %250 : vector<8x128xf32>
    %c0_33 = arith.constant 0 : index
    %c0_34 = arith.constant 0 : index
    %252 = vector.load %arg9[%c0_33, %c0_34] : memref<8x128xf32, #tpu.memory_space<vmem>>, vector<8x128xf32>
    tpu.vector_store %arg9[%c0_33, %c0_34], %251 {strides = array<i32>} : memref<8x128xf32, #tpu.memory_space<vmem>>, vector<8x128xf32>,
    return
  }
  func.func @transform_0(%arg0: i32) -> (i32, i32) {
    %c0_i32 = arith.constant 0 : i32
    %c0_i32_0 = arith.constant 0 : i32
    %c0_i32_1 = arith.constant 0 : i32
    return %c0_i32, %c0_i32_0 : i32, i32
  }
  func.func @transform_1(%arg0: i32) -> (i32, i32) {
    %c0_i32 = arith.constant 0 : i32
    %c0_i32_0 = arith.constant 0 : i32
    %c0_i32_1 = arith.constant 0 : i32
    return %c0_i32, %c0_i32_0 : i32, i32
  }
  func.func @transform_2(%arg0: i32) -> (i32, i32) {
    %c0_i32 = arith.constant 0 : i32
    %c0_i32_0 = arith.constant 0 : i32
    %c0_i32_1 = arith.constant 0 : i32
    return %c0_i32, %c0_i32_0 : i32, i32
  }
  func.func @transform_3(%arg0: i32) -> (i32, i32) {
    %c0_i32 = arith.constant 0 : i32
    %c0_i32_0 = arith.constant 0 : i32
    %c0_i32_1 = arith.constant 0 : i32
    return %c0_i32, %c0_i32_0 : i32, i32
  }
  func.func @transform_4(%arg0: i32) -> (i32, i32) {
    %c0_i32 = arith.constant 0 : i32
    %c0_i32_0 = arith.constant 0 : i32
    %c0_i32_1 = arith.constant 0 : i32
    return %c0_i32, %c0_i32_0 : i32, i32
  }
  func.func @transform_5(%arg0: i32) -> (i32, i32) {
    %c0_i32 = arith.constant 0 : i32
    %c0_i32_0 = arith.constant 0 : i32
    %c0_i32_1 = arith.constant 0 : i32
    return %c0_i32, %c0_i32_0 : i32, i32
  }
  func.func @transform_6(%arg0: i32) -> (i32, i32) {
    %c0_i32 = arith.constant 0 : i32
    %c0_i32_0 = arith.constant 0 : i32
    %c0_i32_1 = arith.constant 0 : i32
    return %c0_i32, %c0_i32_0 : i32, i32
  }
  func.func @transform_7(%arg0: i32) -> (i32, i32) {
    %c0_i32 = arith.constant 0 : i32
    %c0_i32_0 = arith.constant 0 : i32
    %c0_i32_1 = arith.constant 0 : i32
    return %c0_i32, %c0_i32_0 : i32, i32
  }
  func.func @transform_8(%arg0: i32) -> (i32, i32) {
    %c0_i32 = arith.constant 0 : i32
    %c0_i32_0 = arith.constant 0 : i32
    %c0_i32_1 = arith.constant 0 : i32
    return %c0_i32, %c0_i32_0 : i32, i32
  }
}

</mosaic_0001>

<llo_original>
// kernel: netws_forward.1
$region0: #{netws_forward.1}
  #allocation0 [shape = 'u32[]', space=smem, size = 0x4, offset = 0x4, fixed_abs, tag = 'smem constant byte address 0x4 - core index']
  #allocation1 [shape = 'u32[144,128]{1,0:T(1,128)}', space=vmem, size = 0x12000, scoped, tag = 'internal scratch']
  %s0 = inlined_call_operand.vmem [shape: bf16[576,128], index: 0, kind: input, shape index: {}]
  %s1 = inlined_call_operand.vmem [shape: bf16[128,512], index: 1, kind: input, shape index: {}]
  %s2 = inlined_call_operand.vmem [shape: bf16[1152,128], index: 2, kind: input, shape index: {}]
  %s3 = inlined_call_operand.vmem [shape: bf16[512,128], index: 3, kind: input, shape index: {}]
  %s4 = inlined_call_operand.vmem [shape: bf16[128,128], index: 4, kind: input, shape index: {}]
  %s5 = inlined_call_operand.vmem [shape: bf16[256,128], index: 5, kind: input, shape index: {}]
  %s6 = inlined_call_operand.vmem [shape: bf16[128,128], index: 6, kind: input, shape index: {}]
  %s7 = inlined_call_operand.vmem [shape: f32[8,128], index: 7, kind: input, shape index: {}]
  %s8 = inlined_call_operand.vmem [shape: f32[8,128], index: 8, kind: output, shape index: {}]
  %s9 = sld [smem:[#allocation0]]
  $region42: #{netws_forward.1} parent=0
    _
  %s11 = ssub.s32 1, %s9
  %s12 = scalar_select 0, %s11, %s9
  // Predicated region
  $region2: #{netws_forward.1} parent=0 // pred_check
    _
  $region3: #{netws_forward.1} parent=0 // pred_check_branch
    %14 = sbr.rel (0) target = $region5
  $region4: #{netws_forward.1} parent=0 // pred_region
    _
  $region5: #{netws_forward.1} parent=0 // pred_fallthru
    _
  // Predicated region
  $region6: #{netws_forward.1} parent=0 // pred_check
    _
  $region7: #{netws_forward.1} parent=0 // pred_check_branch
    %16 = sbr.rel (0) target = $region9
  $region8: #{netws_forward.1} parent=0 // pred_region
    _
  $region9: #{netws_forward.1} parent=0 // pred_fallthru
    _
  // Predicated region
  $region10: #{netws_forward.1} parent=0 // pred_check
    _
  $region11: #{netws_forward.1} parent=0 // pred_check_branch
    %18 = sbr.rel (0) target = $region13
  $region12: #{netws_forward.1} parent=0 // pred_region
    _
  $region13: #{netws_forward.1} parent=0 // pred_fallthru
    _
  // Predicated region
  $region14: #{netws_forward.1} parent=0 // pred_check
    _
  $region15: #{netws_forward.1} parent=0 // pred_check_branch
    %20 = sbr.rel (0) target = $region17
  $region16: #{netws_forward.1} parent=0 // pred_region
    _
  $region17: #{netws_forward.1} parent=0 // pred_fallthru
    _
  // Predicated region
  $region18: #{netws_forward.1} parent=0 // pred_check
    _
  $region19: #{netws_forward.1} parent=0 // pred_check_branch
    %22 = sbr.rel (0) target = $region21
  $region20: #{netws_forward.1} parent=0 // pred_region
    _
  $region21: #{netws_forward.1} parent=0 // pred_fallthru
    _
  // Predicated region
  $region22: #{netws_forward.1} parent=0 // pred_check
    _
  $region23: #{netws_forward.1} parent=0 // pred_check_branch
    %24 = sbr.rel (0) target = $region25
  $region24: #{netws_forward.1} parent=0 // pred_region
    _
  $region25: #{netws_forward.1} parent=0 // pred_fallthru
    _
  // Predicated region
  $region26: #{netws_forward.1} parent=0 // pred_check
    _
  $region27: #{netws_forward.1} parent=0 // pred_check_branch
    %26 = sbr.rel (0) target = $region29
  $region28: #{netws_forward.1} parent=0 // pred_region
    _
  $region29: #{netws_forward.1} parent=0 // pred_fallthru
    _
  // Predicated region
  $region30: #{netws_forward.1} parent=0 // pred_check
    _
  $region31: #{netws_forward.1} parent=0 // pred_check_branch
    %28 = sbr.rel (0) target = $region33
  $region32: #{netws_forward.1} parent=0 // pred_region
    _
  $region33: #{netws_forward.1} parent=0 // pred_fallthru
    _
  %v30 = vld [vmem:[%s7] sm:$0x1]
  %v31 = vld [vmem:[%s7 + $0x1] sm:$0x1]
  %v32 = vld [vmem:[%s7 + $0x2] sm:$0x1]
  %v33 = vld [vmem:[%s7 + $0x3] sm:$0x1]
  %v34 = vld [vmem:[%s7 + $0x4] sm:$0x1]
  %v35 = vld [vmem:[%s7 + $0x5] sm:$0x1]
  %v36 = vld [vmem:[%s0] sm:$0xf]
  %v37 = vld [vmem:[%s0 + $0x4] sm:$0xf]
  %v38 = vld [vmem:[%s0 + $0x8] sm:$0xf]
  %v39 = vld [vmem:[%s0 + $0xc] sm:$0xf]
  %v40 = vld [vmem:[%s0 + $0x10] sm:$0xf]
  %v41 = vld [vmem:[%s0 + $0x14] sm:$0xf]
  %v42 = vld [vmem:[%s0 + $0x18] sm:$0xf]
  %v43 = vld [vmem:[%s0 + $0x1c] sm:$0xf]
  %v44 = vld [vmem:[%s0 + $0x20] sm:$0xf]
  %v45 = vld [vmem:[%s0 + $0x24] sm:$0xf]
  %v46 = vld [vmem:[%s0 + $0x28] sm:$0xf]
  %v47 = vld [vmem:[%s0 + $0x2c] sm:$0xf]
  %v48 = vld [vmem:[%s0 + $0x30] sm:$0xf]
  %v49 = vld [vmem:[%s0 + $0x34] sm:$0xf]
  %v50 = vld [vmem:[%s0 + $0x38] sm:$0xf]
  %v51 = vld [vmem:[%s0 + $0x3c] sm:$0xf]
  %v52 = vld [vmem:[%s0 + $0x40] sm:$0xf]
  %v53 = vld [vmem:[%s0 + $0x44] sm:$0xf]
  %v54 = vld [vmem:[%s0 + $0x48] sm:$0xf]
  %v55 = vld [vmem:[%s0 + $0x4c] sm:$0xf]
  %v56 = vld [vmem:[%s0 + $0x50] sm:$0xf]
  %v57 = vld [vmem:[%s0 + $0x54] sm:$0xf]
  %v58 = vld [vmem:[%s0 + $0x58] sm:$0xf]
  %v59 = vld [vmem:[%s0 + $0x5c] sm:$0xf]
  %v60 = vld [vmem:[%s0 + $0x60] sm:$0xf]
  %v61 = vld [vmem:[%s0 + $0x64] sm:$0xf]
  %v62 = vld [vmem:[%s0 + $0x68] sm:$0xf]
  %v63 = vld [vmem:[%s0 + $0x6c] sm:$0xf]
  %v64 = vld [vmem:[%s0 + $0x70] sm:$0xf]
  %v65 = vld [vmem:[%s0 + $0x74] sm:$0xf]
  %v66 = vld [vmem:[%s0 + $0x78] sm:$0xf]
  %v67 = vld [vmem:[%s0 + $0x7c] sm:$0xf]
  %v68 = vld [vmem:[%s0 + $0x80] sm:$0xf]
  %v69 = vld [vmem:[%s0 + $0x84] sm:$0xf]
  %v70 = vld [vmem:[%s0 + $0x88] sm:$0xf]
  %v71 = vld [vmem:[%s0 + $0x8c] sm:$0xf]
  %v72 = vld [vmem:[%s0 + $0x90] sm:$0xf]
  %v73 = vld [vmem:[%s0 + $0x94] sm:$0xf]
  %v74 = vld [vmem:[%s0 + $0x98] sm:$0xf]
  %v75 = vld [vmem:[%s0 + $0x9c] sm:$0xf]
  %v76 = vld [vmem:[%s0 + $0xa0] sm:$0xf]
  %v77 = vld [vmem:[%s0 + $0xa4] sm:$0xf]
  %v78 = vld [vmem:[%s0 + $0xa8] sm:$0xf]
  %v79 = vld [vmem:[%s0 + $0xac] sm:$0xf]
  %v80 = vld [vmem:[%s0 + $0xb0] sm:$0xf]
  %v81 = vld [vmem:[%s0 + $0xb4] sm:$0xf]
  %v82 = vld [vmem:[%s0 + $0xb8] sm:$0xf]
  %v83 = vld [vmem:[%s0 + $0xbc] sm:$0xf]
  %v84 = vld [vmem:[%s0 + $0xc0] sm:$0xf]
  %v85 = vld [vmem:[%s0 + $0xc4] sm:$0xf]
  %v86 = vld [vmem:[%s0 + $0xc8] sm:$0xf]
  %v87 = vld [vmem:[%s0 + $0xcc] sm:$0xf]
  %v88 = vld [vmem:[%s0 + $0xd0] sm:$0xf]
  %v89 = vld [vmem:[%s0 + $0xd4] sm:$0xf]
  %v90 = vld [vmem:[%s0 + $0xd8] sm:$0xf]
  %v91 = vld [vmem:[%s0 + $0xdc] sm:$0xf]
  %v92 = vld [vmem:[%s0 + $0xe0] sm:$0xf]
  %v93 = vld [vmem:[%s0 + $0xe4] sm:$0xf]
  %v94 = vld [vmem:[%s0 + $0xe8] sm:$0xf]
  %v95 = vld [vmem:[%s0 + $0xec] sm:$0xf]
  %v96 = vld [vmem:[%s0 + $0xf0] sm:$0xf]
  %v97 = vld [vmem:[%s0 + $0xf4] sm:$0xf]
  %v98 = vld [vmem:[%s0 + $0xf8] sm:$0xf]
  %v99 = vld [vmem:[%s0 + $0xfc] sm:$0xf]
  %v100 = vld [vmem:[%s0 + $0x100] sm:$0xf]
  %v101 = vld [vmem:[%s0 + $0x104] sm:$0xf]
  %v102 = vld [vmem:[%s0 + $0x108] sm:$0xf]
  %v103 = vld [vmem:[%s0 + $0x10c] sm:$0xf]
  %v104 = vld [vmem:[%s0 + $0x110] sm:$0xf]
  %v105 = vld [vmem:[%s0 + $0x114] sm:$0xf]
  %v106 = vld [vmem:[%s0 + $0x118] sm:$0xf]
  %v107 = vld [vmem:[%s0 + $0x11c] sm:$0xf]
  %v108 = vld [vmem:[%s1] sm:$0xff]
  %v109 = vld [vmem:[%s1 + $0x8] sm:$0xff]
  %v110 = vld [vmem:[%s1 + $0x10] sm:$0xff]
  %v111 = vld [vmem:[%s1 + $0x18] sm:$0xff]
  %v112 = vld [vmem:[%s1 + $0x20] sm:$0xff]
  %v113 = vld [vmem:[%s1 + $0x28] sm:$0xff]
  %v114 = vld [vmem:[%s1 + $0x30] sm:$0xff]
  %v115 = vld [vmem:[%s1 + $0x38] sm:$0xff]
  %v116 = vld [vmem:[%s1 + $0x40] sm:$0xff]
  %v117 = vld [vmem:[%s1 + $0x48] sm:$0xff]
  %v118 = vld [vmem:[%s1 + $0x50] sm:$0xff]
  %v119 = vld [vmem:[%s1 + $0x58] sm:$0xff]
  %v120 = vld [vmem:[%s1 + $0x60] sm:$0xff]
  %v121 = vld [vmem:[%s1 + $0x68] sm:$0xff]
  %v122 = vld [vmem:[%s1 + $0x70] sm:$0xff]
  %v123 = vld [vmem:[%s1 + $0x78] sm:$0xff]
  %v124 = vld [vmem:[%s1 + $0x80] sm:$0xff]
  %v125 = vld [vmem:[%s1 + $0x88] sm:$0xff]
  %v126 = vld [vmem:[%s1 + $0x90] sm:$0xff]
  %v127 = vld [vmem:[%s1 + $0x98] sm:$0xff]
  %v128 = vld [vmem:[%s1 + $0xa0] sm:$0xff]
  %v129 = vld [vmem:[%s1 + $0xa8] sm:$0xff]
  %v130 = vld [vmem:[%s1 + $0xb0] sm:$0xff]
  %v131 = vld [vmem:[%s1 + $0xb8] sm:$0xff]
  %v132 = vld [vmem:[%s1 + $0xc0] sm:$0xff]
  %v133 = vld [vmem:[%s1 + $0xc8] sm:$0xff]
  %v134 = vld [vmem:[%s1 + $0xd0] sm:$0xff]
  %v135 = vld [vmem:[%s1 + $0xd8] sm:$0xff]
  %v136 = vld [vmem:[%s1 + $0xe0] sm:$0xff]
  %v137 = vld [vmem:[%s1 + $0xe8] sm:$0xff]
  %v138 = vld [vmem:[%s1 + $0xf0] sm:$0xff]
  %v139 = vld [vmem:[%s1 + $0xf8] sm:$0xff]
  %v212 = vunpack.c.l.b16 %v36
  %v213 = vunpack.c.l.b16 %v37
  %v214 = vunpack.c.l.b16 %v38
  %v215 = vunpack.c.l.b16 %v39
  %v216 = vunpack.c.l.b16 %v40
  %v217 = vunpack.c.l.b16 %v41
  %v218 = vunpack.c.l.b16 %v42
  %v219 = vunpack.c.l.b16 %v43
  %v220 = vunpack.c.l.b16 %v44
  %v221 = vunpack.c.l.b16 %v45
  %v222 = vunpack.c.l.b16 %v46
  %v223 = vunpack.c.l.b16 %v47
  %v224 = vunpack.c.l.b16 %v48
  %v225 = vunpack.c.l.b16 %v49
  %v226 = vunpack.c.l.b16 %v50
  %v227 = vunpack.c.l.b16 %v51
  %v228 = vunpack.c.l.b16 %v52
  %v229 = vunpack.c.l.b16 %v53
  %v230 = vunpack.c.l.b16 %v54
  %v231 = vunpack.c.l.b16 %v55
  %v232 = vunpack.c.l.b16 %v56
  %v233 = vunpack.c.l.b16 %v57
  %v234 = vunpack.c.l.b16 %v58
  %v235 = vunpack.c.l.b16 %v59
  %v236 = vunpack.c.l.b16 %v60
  %v237 = vunpack.c.l.b16 %v61
  %v238 = vunpack.c.l.b16 %v62
  %v239 = vunpack.c.l.b16 %v63
  %v240 = vunpack.c.l.b16 %v64
  %v241 = vunpack.c.l.b16 %v65
  %v242 = vunpack.c.l.b16 %v66
  %v243 = vunpack.c.l.b16 %v67
  %v244 = vunpack.c.l.b16 %v68
  %v245 = vunpack.c.l.b16 %v69
  %v246 = vunpack.c.l.b16 %v70
  %v247 = vunpack.c.l.b16 %v71
  %v248 = vunpack.c.l.b16 %v72
  %v249 = vunpack.c.l.b16 %v73
  %v250 = vunpack.c.l.b16 %v74
  %v251 = vunpack.c.l.b16 %v75
  %v252 = vunpack.c.l.b16 %v76
  %v253 = vunpack.c.l.b16 %v77
  %v254 = vunpack.c.l.b16 %v78
  %v255 = vunpack.c.l.b16 %v79
  %v256 = vunpack.c.l.b16 %v80
  %v257 = vunpack.c.l.b16 %v81
  %v258 = vunpack.c.l.b16 %v82
  %v259 = vunpack.c.l.b16 %v83
  %v260 = vunpack.c.l.b16 %v84
  %v261 = vunpack.c.l.b16 %v85
  %v262 = vunpack.c.l.b16 %v86
  %v263 = vunpack.c.l.b16 %v87
  %v264 = vunpack.c.l.b16 %v88
  %v265 = vunpack.c.l.b16 %v89
  %v266 = vunpack.c.l.b16 %v90
  %v267 = vunpack.c.l.b16 %v91
  %v268 = vunpack.c.l.b16 %v92
  %v269 = vunpack.c.l.b16 %v93
  %v270 = vunpack.c.l.b16 %v94
  %v271 = vunpack.c.l.b16 %v95
  %v272 = vunpack.c.l.b16 %v96
  %v273 = vunpack.c.l.b16 %v97
  %v274 = vunpack.c.l.b16 %v98
  %v275 = vunpack.c.l.b16 %v99
  %v276 = vunpack.c.l.b16 %v100
  %v277 = vunpack.c.l.b16 %v101
  %v278 = vunpack.c.l.b16 %v102
  %v279 = vunpack.c.l.b16 %v103
  %v280 = vunpack.c.l.b16 %v104
  %v281 = vunpack.c.l.b16 %v105
  %v282 = vunpack.c.l.b16 %v106
  %v283 = vunpack.c.l.b16 %v107
  %v284 = vpack.c.b16 %v213, %v212
  %v285 = vpack.c.b16 %v215, %v214
  %v286 = vpack.c.b16 %v217, %v216
  %v287 = vpack.c.b16 %v219, %v218
  %v288 = vpack.c.b16 %v221, %v220
  %v289 = vpack.c.b16 %v223, %v222
  %v290 = vpack.c.b16 %v225, %v224
  %v291 = vpack.c.b16 %v227, %v226
  %v292 = vpack.c.b16 %v229, %v228
  %v293 = vpack.c.b16 %v231, %v230
  %v294 = vpack.c.b16 %v233, %v232
  %v295 = vpack.c.b16 %v235, %v234
  %v296 = vpack.c.b16 %v237, %v236
  %v297 = vpack.c.b16 %v239, %v238
  %v298 = vpack.c.b16 %v241, %v240
  %v299 = vpack.c.b16 %v243, %v242
  %v300 = vpack.c.b16 %v245, %v244
  %v301 = vpack.c.b16 %v247, %v246
  %v302 = vpack.c.b16 %v249, %v248
  %v303 = vpack.c.b16 %v251, %v250
  %v304 = vpack.c.b16 %v253, %v252
  %v305 = vpack.c.b16 %v255, %v254
  %v306 = vpack.c.b16 %v257, %v256
  %v307 = vpack.c.b16 %v259, %v258
  %v308 = vpack.c.b16 %v261, %v260
  %v309 = vpack.c.b16 %v263, %v262
  %v310 = vpack.c.b16 %v265, %v264
  %v311 = vpack.c.b16 %v267, %v266
  %v312 = vpack.c.b16 %v269, %v268
  %v313 = vpack.c.b16 %v271, %v270
  %v314 = vpack.c.b16 %v273, %v272
  %v315 = vpack.c.b16 %v275, %v274
  %v316 = vpack.c.b16 %v277, %v276
  %v317 = vpack.c.b16 %v279, %v278
  %v318 = vpack.c.b16 %v281, %v280
  %v319 = vpack.c.b16 %v283, %v282
  %v388 = vunpack.c.l.b16 %v108
  %v389 = vunpack.c.h.b16 %v108
  %v390 = vunpack.c.l.b16 %v109
  %v391 = vunpack.c.h.b16 %v109
  %v392 = vunpack.c.l.b16 %v110
  %v393 = vunpack.c.h.b16 %v110
  %v394 = vunpack.c.l.b16 %v111
  %v395 = vunpack.c.h.b16 %v111
  %v396 = vunpack.c.l.b16 %v112
  %v397 = vunpack.c.h.b16 %v112
  %v398 = vunpack.c.l.b16 %v113
  %v399 = vunpack.c.h.b16 %v113
  %v400 = vunpack.c.l.b16 %v114
  %v401 = vunpack.c.h.b16 %v114
  %v402 = vunpack.c.l.b16 %v115
  %v403 = vunpack.c.h.b16 %v115
  %v404 = vunpack.c.l.b16 %v116
  %v405 = vunpack.c.h.b16 %v116
  %v406 = vunpack.c.l.b16 %v117
  %v407 = vunpack.c.h.b16 %v117
  %v408 = vunpack.c.l.b16 %v118
  %v409 = vunpack.c.h.b16 %v118
  %v410 = vunpack.c.l.b16 %v119
  %v411 = vunpack.c.h.b16 %v119
  %v412 = vunpack.c.l.b16 %v120
  %v413 = vunpack.c.h.b16 %v120
  %v414 = vunpack.c.l.b16 %v121
  %v415 = vunpack.c.h.b16 %v121
  %v416 = vunpack.c.l.b16 %v122
  %v417 = vunpack.c.h.b16 %v122
  %v418 = vunpack.c.l.b16 %v123
  %v419 = vunpack.c.h.b16 %v123
  %v420 = vunpack.c.l.b16 %v124
  %v421 = vunpack.c.h.b16 %v124
  %v422 = vunpack.c.l.b16 %v125
  %v423 = vunpack.c.h.b16 %v125
  %v424 = vunpack.c.l.b16 %v126
  %v425 = vunpack.c.h.b16 %v126
  %v426 = vunpack.c.l.b16 %v127
  %v427 = vunpack.c.h.b16 %v127
  %v428 = vunpack.c.l.b16 %v128
  %v429 = vunpack.c.h.b16 %v128
  %v430 = vunpack.c.l.b16 %v129
  %v431 = vunpack.c.h.b16 %v129
  %v432 = vunpack.c.l.b16 %v130
  %v433 = vunpack.c.h.b16 %v130
  %v434 = vunpack.c.l.b16 %v131
  %v435 = vunpack.c.h.b16 %v131
  %v436 = vunpack.c.l.b16 %v132
  %v437 = vunpack.c.h.b16 %v132
  %v438 = vunpack.c.l.b16 %v133
  %v439 = vunpack.c.h.b16 %v133
  %v440 = vunpack.c.l.b16 %v134
  %v441 = vunpack.c.h.b16 %v134
  %v442 = vunpack.c.l.b16 %v135
  %v443 = vunpack.c.h.b16 %v135
  %v444 = vunpack.c.l.b16 %v136
  %v445 = vunpack.c.h.b16 %v136
  %v446 = vunpack.c.l.b16 %v137
  %v447 = vunpack.c.h.b16 %v137
  %v448 = vunpack.c.l.b16 %v138
  %v449 = vunpack.c.h.b16 %v138
  %v450 = vunpack.c.l.b16 %v139
  %v451 = vunpack.c.h.b16 %v139
  %v452 = vpack.c.b16 %v392, %v388
  %v453 = vpack.c.b16 %v393, %v389
  %v454 = vpack.c.b16 %v394, %v390
  %v455 = vpack.c.b16 %v395, %v391
  %v456 = vpack.c.b16 %v400, %v396
  %v457 = vpack.c.b16 %v401, %v397
  %v458 = vpack.c.b16 %v402, %v398
  %v459 = vpack.c.b16 %v403, %v399
  %v460 = vpack.c.b16 %v408, %v404
  %v461 = vpack.c.b16 %v409, %v405
  %v462 = vpack.c.b16 %v410, %v406
  %v463 = vpack.c.b16 %v411, %v407
  %v464 = vpack.c.b16 %v416, %v412
  %v465 = vpack.c.b16 %v417, %v413
  %v466 = vpack.c.b16 %v418, %v414
  %v467 = vpack.c.b16 %v419, %v415
  %v468 = vpack.c.b16 %v424, %v420
  %v469 = vpack.c.b16 %v425, %v421
  %v470 = vpack.c.b16 %v426, %v422
  %v471 = vpack.c.b16 %v427, %v423
  %v472 = vpack.c.b16 %v432, %v428
  %v473 = vpack.c.b16 %v433, %v429
  %v474 = vpack.c.b16 %v434, %v430
  %v475 = vpack.c.b16 %v435, %v431
  %v476 = vpack.c.b16 %v440, %v436
  %v477 = vpack.c.b16 %v441, %v437
  %v478 = vpack.c.b16 %v442, %v438
  %v479 = vpack.c.b16 %v443, %v439
  %v480 = vpack.c.b16 %v448, %v444
  %v481 = vpack.c.b16 %v449, %v445
  %v482 = vpack.c.b16 %v450, %v446
  %v483 = vpack.c.b16 %v451, %v447
  %516 = vmatprep.subr.bf16.mxu0 %v481
  %517 = vmatpush1.bf16.msra.mxu0 %v480
  %518 = vmatprep.subr.bf16.mxu0 %v477
  %519 = vmatpush1.bf16.msra.mxu0 %v476
  %520 = vmatprep.subr.bf16.mxu0 %v473
  %521 = vmatpush1.bf16.msra.mxu0 %v472
  %522 = vmatprep.subr.bf16.mxu0 %v469
  %523 = vmatpush1.bf16.msra.mxu0 %v468
  %524 = vmatprep.subr.bf16.mxu0 %v465
  %525 = vmatpush1.bf16.msra.mxu0 %v464
  %526 = vmatprep.subr.bf16.mxu0 %v461
  %527 = vmatpush1.bf16.msra.mxu0 %v460
  %528 = vmatprep.subr.bf16.mxu0 %v457
  %529 = vmatpush1.bf16.msra.mxu0 %v456
  %530 = vmatprep.subr.bf16.mxu0 %v453
  %531 = vmatpush1.bf16.msra.mxu0 %v452
  %532 = vmatprep.subr.bf16.mxu0 0
  %533 = vmatpush2.bf16.msra.mxu0 0
  %534 = vmatprep.subr.bf16.mxu0 0
  %535 = vmatpush2.bf16.msra.mxu0 0
  %536 = vmatprep.subr.bf16.mxu0 0
  %537 = vmatpush2.bf16.msra.mxu0 0
  %538 = vmatprep.subr.bf16.mxu0 0
  %539 = vmatpush2.bf16.msra.mxu0 0
  %540 = vmatprep.subr.bf16.mxu0 0
  %541 = vmatpush2.bf16.msra.mxu0 0
  %542 = vmatprep.subr.bf16.mxu0 0
  %543 = vmatpush2.bf16.msra.mxu0 0
  %544 = vmatprep.subr.bf16.mxu0 0
  %545 = vmatpush2.bf16.msra.mxu0 0
  %546 = vmatprep.subr.bf16.mxu0 0
  %547 = vmatpush2.bf16.msra.mxu0 0
  %548 = vmatprep.mubr.bf16.mxu0 0
  %549 = vmatmul.mubr.bf16.gmra.mxu0 %v284
  %v550 = vpop.f32.mrf.mxu0
  %v551 = vadd.f32 0.0, %v550
  %v552 = vpop.f32.mrf.mxu0
  %v553 = vadd.f32 0.0, %v552
  %v554 = vpop.f32.mrf.mxu0
  %v555 = vadd.f32 0.0, %v554
  %v556 = vpop.f32.mrf.mxu0
  %v557 = vadd.f32 0.0, %v556
  %558 = vmatprep.mubr.bf16.mxu0 0
  %559 = vmatmul.mubr.bf16.gmra.mxu0 %v285
  %v560 = vpop.f32.mrf.mxu0
  %v561 = vadd.f32 0.0, %v560
  %v562 = vpop.f32.mrf.mxu0
  %v563 = vadd.f32 0.0, %v562
  %v564 = vpop.f32.mrf.mxu0
  %v565 = vadd.f32 0.0, %v564
  %v566 = vpop.f32.mrf.mxu0
  %v567 = vadd.f32 0.0, %v566
  %568 = vmatprep.mubr.bf16.mxu0 0
  %569 = vmatmul.mubr.bf16.gmra.mxu0 %v286
  %v570 = vpop.f32.mrf.mxu0
  %v571 = vadd.f32 0.0, %v570
  %v572 = vpop.f32.mrf.mxu0
  %v573 = vadd.f32 0.0, %v572
  %v574 = vpop.f32.mrf.mxu0
  %v575 = vadd.f32 0.0, %v574
  %v576 = vpop.f32.mrf.mxu0
  %v577 = vadd.f32 0.0, %v576
  %578 = vmatprep.mubr.bf16.mxu0 0
  %579 = vmatmul.mubr.bf16.gmra.mxu0 %v287
  %v580 = vpop.f32.mrf.mxu0
  %v581 = vadd.f32 0.0, %v580
  %v582 = vpop.f32.mrf.mxu0
  %v583 = vadd.f32 0.0, %v582
  %v584 = vpop.f32.mrf.mxu0
  %v585 = vadd.f32 0.0, %v584
  %v586 = vpop.f32.mrf.mxu0
  %v587 = vadd.f32 0.0, %v586
  %588 = vmatprep.mubr.bf16.mxu0 0
  %589 = vmatmul.mubr.bf16.gmra.mxu0 %v288
  %v590 = vpop.f32.mrf.mxu0
  %v591 = vadd.f32 0.0, %v590
  %v592 = vpop.f32.mrf.mxu0
  %v593 = vadd.f32 0.0, %v592
  %v594 = vpop.f32.mrf.mxu0
  %v595 = vadd.f32 0.0, %v594
  %v596 = vpop.f32.mrf.mxu0
  %v597 = vadd.f32 0.0, %v596
  %598 = vmatprep.mubr.bf16.mxu0 0
  %599 = vmatmul.mubr.bf16.gmra.mxu0 %v289
  %v600 = vpop.f32.mrf.mxu0
  %v601 = vadd.f32 0.0, %v600
  %v602 = vpop.f32.mrf.mxu0
  %v603 = vadd.f32 0.0, %v602
  %v604 = vpop.f32.mrf.mxu0
  %v605 = vadd.f32 0.0, %v604
  %v606 = vpop.f32.mrf.mxu0
  %v607 = vadd.f32 0.0, %v606
  %608 = vmatprep.mubr.bf16.mxu0 0
  %609 = vmatmul.mubr.bf16.gmra.mxu0 %v290
  %v610 = vpop.f32.mrf.mxu0
  %v611 = vadd.f32 0.0, %v610
  %v612 = vpop.f32.mrf.mxu0
  %v613 = vadd.f32 0.0, %v612
  %v614 = vpop.f32.mrf.mxu0
  %v615 = vadd.f32 0.0, %v614
  %v616 = vpop.f32.mrf.mxu0
  %v617 = vadd.f32 0.0, %v616
  %618 = vmatprep.mubr.bf16.mxu0 0
  %619 = vmatmul.mubr.bf16.gmra.mxu0 %v291
  %v620 = vpop.f32.mrf.mxu0
  %v621 = vadd.f32 0.0, %v620
  %v622 = vpop.f32.mrf.mxu0
  %v623 = vadd.f32 0.0, %v622
  %v624 = vpop.f32.mrf.mxu0
  %v625 = vadd.f32 0.0, %v624
  %v626 = vpop.f32.mrf.mxu0
  %v627 = vadd.f32 0.0, %v626
  %628 = vmatprep.mubr.bf16.mxu0 0
  %629 = vmatmul.mubr.bf16.gmra.mxu0 %v292
  %v630 = vpop.f32.mrf.mxu0
  %v631 = vadd.f32 0.0, %v630
  %v632 = vpop.f32.mrf.mxu0
  %v633 = vadd.f32 0.0, %v632
  %v634 = vpop.f32.mrf.mxu0
  %v635 = vadd.f32 0.0, %v634
  %v636 = vpop.f32.mrf.mxu0
  %v637 = vadd.f32 0.0, %v636
  %638 = vmatprep.mubr.bf16.mxu0 0
  %639 = vmatmul.mubr.bf16.gmra.mxu0 %v293
  %v640 = vpop.f32.mrf.mxu0
  %v641 = vadd.f32 0.0, %v640
  %v642 = vpop.f32.mrf.mxu0
  %v643 = vadd.f32 0.0, %v642
  %v644 = vpop.f32.mrf.mxu0
  %v645 = vadd.f32 0.0, %v644
  %v646 = vpop.f32.mrf.mxu0
  %v647 = vadd.f32 0.0, %v646
  %648 = vmatprep.mubr.bf16.mxu0 0
  %649 = vmatmul.mubr.bf16.gmra.mxu0 %v294
  %v650 = vpop.f32.mrf.mxu0
  %v651 = vadd.f32 0.0, %v650
  %v652 = vpop.f32.mrf.mxu0
  %v653 = vadd.f32 0.0, %v652
  %v654 = vpop.f32.mrf.mxu0
  %v655 = vadd.f32 0.0, %v654
  %v656 = vpop.f32.mrf.mxu0
  %v657 = vadd.f32 0.0, %v656
  %658 = vmatprep.mubr.bf16.mxu0 0
  %659 = vmatmul.mubr.bf16.gmra.mxu0 %v295
  %v660 = vpop.f32.mrf.mxu0
  %v661 = vadd.f32 0.0, %v660
  %v662 = vpop.f32.mrf.mxu0
  %v663 = vadd.f32 0.0, %v662
  %v664 = vpop.f32.mrf.mxu0
  %v665 = vadd.f32 0.0, %v664
  %v666 = vpop.f32.mrf.mxu0
  %v667 = vadd.f32 0.0, %v666
  %668 = vmatprep.mubr.bf16.mxu0 0
  %669 = vmatmul.mubr.bf16.gmra.mxu0 %v296
  %v670 = vpop.f32.mrf.mxu0
  %v671 = vadd.f32 0.0, %v670
  %v672 = vpop.f32.mrf.mxu0
  %v673 = vadd.f32 0.0, %v672
  %v674 = vpop.f32.mrf.mxu0
  %v675 = vadd.f32 0.0, %v674
  %v676 = vpop.f32.mrf.mxu0
  %v677 = vadd.f32 0.0, %v676
  %678 = vmatprep.mubr.bf16.mxu0 0
  %679 = vmatmul.mubr.bf16.gmra.mxu0 %v297
  %v680 = vpop.f32.mrf.mxu0
  %v681 = vadd.f32 0.0, %v680
  %v682 = vpop.f32.mrf.mxu0
  %v683 = vadd.f32 0.0, %v682
  %v684 = vpop.f32.mrf.mxu0
  %v685 = vadd.f32 0.0, %v684
  %v686 = vpop.f32.mrf.mxu0
  %v687 = vadd.f32 0.0, %v686
  %688 = vmatprep.mubr.bf16.mxu0 0
  %689 = vmatmul.mubr.bf16.gmra.mxu0 %v298
  %v690 = vpop.f32.mrf.mxu0
  %v691 = vadd.f32 0.0, %v690
  %v692 = vpop.f32.mrf.mxu0
  %v693 = vadd.f32 0.0, %v692
  %v694 = vpop.f32.mrf.mxu0
  %v695 = vadd.f32 0.0, %v694
  %v696 = vpop.f32.mrf.mxu0
  %v697 = vadd.f32 0.0, %v696
  %698 = vmatprep.mubr.bf16.mxu0 0
  %699 = vmatmul.mubr.bf16.gmra.mxu0 %v299
  %v700 = vpop.f32.mrf.mxu0
  %v701 = vadd.f32 0.0, %v700
  %v702 = vpop.f32.mrf.mxu0
  %v703 = vadd.f32 0.0, %v702
  %v704 = vpop.f32.mrf.mxu0
  %v705 = vadd.f32 0.0, %v704
  %v706 = vpop.f32.mrf.mxu0
  %v707 = vadd.f32 0.0, %v706
  %708 = vmatprep.mubr.bf16.mxu0 0
  %709 = vmatmul.mubr.bf16.gmra.mxu0 %v300
  %v710 = vpop.f32.mrf.mxu0
  %v711 = vadd.f32 0.0, %v710
  %v712 = vpop.f32.mrf.mxu0
  %v713 = vadd.f32 0.0, %v712
  %v714 = vpop.f32.mrf.mxu0
  %v715 = vadd.f32 0.0, %v714
  %v716 = vpop.f32.mrf.mxu0
  %v717 = vadd.f32 0.0, %v716
  %718 = vmatprep.mubr.bf16.mxu0 0
  %719 = vmatmul.mubr.bf16.gmra.mxu0 %v301
  %v720 = vpop.f32.mrf.mxu0
  %v721 = vadd.f32 0.0, %v720
  %v722 = vpop.f32.mrf.mxu0
  %v723 = vadd.f32 0.0, %v722
  %v724 = vpop.f32.mrf.mxu0
  %v725 = vadd.f32 0.0, %v724
  %v726 = vpop.f32.mrf.mxu0
  %v727 = vadd.f32 0.0, %v726
  %728 = vmatprep.mubr.bf16.mxu0 0
  %729 = vmatmul.mubr.bf16.gmra.mxu0 %v302
  %v730 = vpop.f32.mrf.mxu0
  %v731 = vadd.f32 0.0, %v730
  %v732 = vpop.f32.mrf.mxu0
  %v733 = vadd.f32 0.0, %v732
  %v734 = vpop.f32.mrf.mxu0
  %v735 = vadd.f32 0.0, %v734
  %v736 = vpop.f32.mrf.mxu0
  %v737 = vadd.f32 0.0, %v736
  %738 = vmatprep.mubr.bf16.mxu0 0
  %739 = vmatmul.mubr.bf16.gmra.mxu0 %v303
  %v740 = vpop.f32.mrf.mxu0
  %v741 = vadd.f32 0.0, %v740
  %v742 = vpop.f32.mrf.mxu0
  %v743 = vadd.f32 0.0, %v742
  %v744 = vpop.f32.mrf.mxu0
  %v745 = vadd.f32 0.0, %v744
  %v746 = vpop.f32.mrf.mxu0
  %v747 = vadd.f32 0.0, %v746
  %748 = vmatprep.mubr.bf16.mxu0 0
  %749 = vmatmul.mubr.bf16.gmra.mxu0 %v304
  %v750 = vpop.f32.mrf.mxu0
  %v751 = vadd.f32 0.0, %v750
  %v752 = vpop.f32.mrf.mxu0
  %v753 = vadd.f32 0.0, %v752
  %v754 = vpop.f32.mrf.mxu0
  %v755 = vadd.f32 0.0, %v754
  %v756 = vpop.f32.mrf.mxu0
  %v757 = vadd.f32 0.0, %v756
  %758 = vmatprep.mubr.bf16.mxu0 0
  %759 = vmatmul.mubr.bf16.gmra.mxu0 %v305
  %v760 = vpop.f32.mrf.mxu0
  %v761 = vadd.f32 0.0, %v760
  %v762 = vpop.f32.mrf.mxu0
  %v763 = vadd.f32 0.0, %v762
  %v764 = vpop.f32.mrf.mxu0
  %v765 = vadd.f32 0.0, %v764
  %v766 = vpop.f32.mrf.mxu0
  %v767 = vadd.f32 0.0, %v766
  %768 = vmatprep.mubr.bf16.mxu0 0
  %769 = vmatmul.mubr.bf16.gmra.mxu0 %v306
  %v770 = vpop.f32.mrf.mxu0
  %v771 = vadd.f32 0.0, %v770
  %v772 = vpop.f32.mrf.mxu0
  %v773 = vadd.f32 0.0, %v772
  %v774 = vpop.f32.mrf.mxu0
  %v775 = vadd.f32 0.0, %v774
  %v776 = vpop.f32.mrf.mxu0
  %v777 = vadd.f32 0.0, %v776
  %778 = vmatprep.mubr.bf16.mxu0 0
  %779 = vmatmul.mubr.bf16.gmra.mxu0 %v307
  %v780 = vpop.f32.mrf.mxu0
  %v781 = vadd.f32 0.0, %v780
  %v782 = vpop.f32.mrf.mxu0
  %v783 = vadd.f32 0.0, %v782
  %v784 = vpop.f32.mrf.mxu0
  %v785 = vadd.f32 0.0, %v784
  %v786 = vpop.f32.mrf.mxu0
  %v787 = vadd.f32 0.0, %v786
  %788 = vmatprep.mubr.bf16.mxu0 0
  %789 = vmatmul.mubr.bf16.gmra.mxu0 %v308
  %v790 = vpop.f32.mrf.mxu0
  %v791 = vadd.f32 0.0, %v790
  %v792 = vpop.f32.mrf.mxu0
  %v793 = vadd.f32 0.0, %v792
  %v794 = vpop.f32.mrf.mxu0
  %v795 = vadd.f32 0.0, %v794
  %v796 = vpop.f32.mrf.mxu0
  %v797 = vadd.f32 0.0, %v796
  %798 = vmatprep.mubr.bf16.mxu0 0
  %799 = vmatmul.mubr.bf16.gmra.mxu0 %v309
  %v800 = vpop.f32.mrf.mxu0
  %v801 = vadd.f32 0.0, %v800
  %v802 = vpop.f32.mrf.mxu0
  %v803 = vadd.f32 0.0, %v802
  %v804 = vpop.f32.mrf.mxu0
  %v805 = vadd.f32 0.0, %v804
  %v806 = vpop.f32.mrf.mxu0
  %v807 = vadd.f32 0.0, %v806
  %808 = vmatprep.mubr.bf16.mxu0 0
  %809 = vmatmul.mubr.bf16.gmra.mxu0 %v310
  %v810 = vpop.f32.mrf.mxu0
  %v811 = vadd.f32 0.0, %v810
  %v812 = vpop.f32.mrf.mxu0
  %v813 = vadd.f32 0.0, %v812
  %v814 = vpop.f32.mrf.mxu0
  %v815 = vadd.f32 0.0, %v814
  %v816 = vpop.f32.mrf.mxu0
  %v817 = vadd.f32 0.0, %v816
  %818 = vmatprep.mubr.bf16.mxu0 0
  %819 = vmatmul.mubr.bf16.gmra.mxu0 %v311
  %v820 = vpop.f32.mrf.mxu0
  %v821 = vadd.f32 0.0, %v820
  %v822 = vpop.f32.mrf.mxu0
  %v823 = vadd.f32 0.0, %v822
  %v824 = vpop.f32.mrf.mxu0
  %v825 = vadd.f32 0.0, %v824
  %v826 = vpop.f32.mrf.mxu0
  %v827 = vadd.f32 0.0, %v826
  %828 = vmatprep.mubr.bf16.mxu0 0
  %829 = vmatmul.mubr.bf16.gmra.mxu0 %v312
  %v830 = vpop.f32.mrf.mxu0
  %v831 = vadd.f32 0.0, %v830
  %v832 = vpop.f32.mrf.mxu0
  %v833 = vadd.f32 0.0, %v832
  %v834 = vpop.f32.mrf.mxu0
  %v835 = vadd.f32 0.0, %v834
  %v836 = vpop.f32.mrf.mxu0
  %v837 = vadd.f32 0.0, %v836
  %838 = vmatprep.mubr.bf16.mxu0 0
  %839 = vmatmul.mubr.bf16.gmra.mxu0 %v313
  %v840 = vpop.f32.mrf.mxu0
  %v841 = vadd.f32 0.0, %v840
  %v842 = vpop.f32.mrf.mxu0
  %v843 = vadd.f32 0.0, %v842
  %v844 = vpop.f32.mrf.mxu0
  %v845 = vadd.f32 0.0, %v844
  %v846 = vpop.f32.mrf.mxu0
  %v847 = vadd.f32 0.0, %v846
  %848 = vmatprep.mubr.bf16.mxu0 0
  %849 = vmatmul.mubr.bf16.gmra.mxu0 %v314
  %v850 = vpop.f32.mrf.mxu0
  %v851 = vadd.f32 0.0, %v850
  %v852 = vpop.f32.mrf.mxu0
  %v853 = vadd.f32 0.0, %v852
  %v854 = vpop.f32.mrf.mxu0
  %v855 = vadd.f32 0.0, %v854
  %v856 = vpop.f32.mrf.mxu0
  %v857 = vadd.f32 0.0, %v856
  %858 = vmatprep.mubr.bf16.mxu0 0
  %859 = vmatmul.mubr.bf16.gmra.mxu0 %v315
  %v860 = vpop.f32.mrf.mxu0
  %v861 = vadd.f32 0.0, %v860
  %v862 = vpop.f32.mrf.mxu0
  %v863 = vadd.f32 0.0, %v862
  %v864 = vpop.f32.mrf.mxu0
  %v865 = vadd.f32 0.0, %v864
  %v866 = vpop.f32.mrf.mxu0
  %v867 = vadd.f32 0.0, %v866
  %868 = vmatprep.mubr.bf16.mxu0 0
  %869 = vmatmul.mubr.bf16.gmra.mxu0 %v316
  %v870 = vpop.f32.mrf.mxu0
  %v871 = vadd.f32 0.0, %v870
  %v872 = vpop.f32.mrf.mxu0
  %v873 = vadd.f32 0.0, %v872
  %v874 = vpop.f32.mrf.mxu0
  %v875 = vadd.f32 0.0, %v874
  %v876 = vpop.f32.mrf.mxu0
  %v877 = vadd.f32 0.0, %v876
  %878 = vmatprep.mubr.bf16.mxu0 0
  %879 = vmatmul.mubr.bf16.gmra.mxu0 %v317
  %v880 = vpop.f32.mrf.mxu0
  %v881 = vadd.f32 0.0, %v880
  %v882 = vpop.f32.mrf.mxu0
  %v883 = vadd.f32 0.0, %v882
  %v884 = vpop.f32.mrf.mxu0
  %v885 = vadd.f32 0.0, %v884
  %v886 = vpop.f32.mrf.mxu0
  %v887 = vadd.f32 0.0, %v886
  %888 = vmatprep.mubr.bf16.mxu0 0
  %889 = vmatmul.mubr.bf16.gmra.mxu0 %v318
  %v890 = vpop.f32.mrf.mxu0
  %v891 = vadd.f32 0.0, %v890
  %v892 = vpop.f32.mrf.mxu0
  %v893 = vadd.f32 0.0, %v892
  %v894 = vpop.f32.mrf.mxu0
  %v895 = vadd.f32 0.0, %v894
  %v896 = vpop.f32.mrf.mxu0
  %v897 = vadd.f32 0.0, %v896
  %898 = vmatprep.mubr.bf16.mxu0 0
  %899 = vmatmul.mubr.bf16.gmra.mxu0 %v319
  %v900 = vpop.f32.mrf.mxu0
  %v901 = vadd.f32 0.0, %v900
  %v902 = vpop.f32.mrf.mxu0
  %v903 = vadd.f32 0.0, %v902
  %v904 = vpop.f32.mrf.mxu0
  %v905 = vadd.f32 0.0, %v904
  %v906 = vpop.f32.mrf.mxu0
  %v907 = vadd.f32 0.0, %v906
  %908 = vdwg.mxu0
  %909 = vmatprep.subr.bf16.mxu0 %v483
  %910 = vmatpush1.bf16.msra.mxu0 %v482
  %911 = vmatprep.subr.bf16.mxu0 %v479
  %912 = vmatpush1.bf16.msra.mxu0 %v478
  %913 = vmatprep.subr.bf16.mxu0 %v475
  %914 = vmatpush1.bf16.msra.mxu0 %v474
  %915 = vmatprep.subr.bf16.mxu0 %v471
  %916 = vmatpush1.bf16.msra.mxu0 %v470
  %917 = vmatprep.subr.bf16.mxu0 %v467
  %918 = vmatpush1.bf16.msra.mxu0 %v466
  %919 = vmatprep.subr.bf16.mxu0 %v463
  %920 = vmatpush1.bf16.msra.mxu0 %v462
  %921 = vmatprep.subr.bf16.mxu0 %v459
  %922 = vmatpush1.bf16.msra.mxu0 %v458
  %923 = vmatprep.subr.bf16.mxu0 %v455
  %924 = vmatpush1.bf16.msra.mxu0 %v454
  %925 = vmatprep.subr.bf16.mxu0 0
  %926 = vmatpush2.bf16.msra.mxu0 0
  %927 = vmatprep.subr.bf16.mxu0 0
  %928 = vmatpush2.bf16.msra.mxu0 0
  %929 = vmatprep.subr.bf16.mxu0 0
  %930 = vmatpush2.bf16.msra.mxu0 0
  %931 = vmatprep.subr.bf16.mxu0 0
  %932 = vmatpush2.bf16.msra.mxu0 0
  %933 = vmatprep.subr.bf16.mxu0 0
  %934 = vmatpush2.bf16.msra.mxu0 0
  %935 = vmatprep.subr.bf16.mxu0 0
  %936 = vmatpush2.bf16.msra.mxu0 0
  %937 = vmatprep.subr.bf16.mxu0 0
  %938 = vmatpush2.bf16.msra.mxu0 0
  %939 = vmatprep.subr.bf16.mxu0 0
  %940 = vmatpush2.bf16.msra.mxu0 0
  %941 = vmatprep.mubr.bf16.mxu0 0
  %942 = vmatmul.mubr.bf16.gmra.mxu0 %v284
  %v943 = vpop.f32.mrf.mxu0
  %v944 = vadd.f32 0.0, %v943
  %v945 = vpop.f32.mrf.mxu0
  %v946 = vadd.f32 0.0, %v945
  %v947 = vpop.f32.mrf.mxu0
  %v948 = vadd.f32 0.0, %v947
  %v949 = vpop.f32.mrf.mxu0
  %v950 = vadd.f32 0.0, %v949
  %951 = vmatprep.mubr.bf16.mxu0 0
  %952 = vmatmul.mubr.bf16.gmra.mxu0 %v285
  %v953 = vpop.f32.mrf.mxu0
  %v954 = vadd.f32 0.0, %v953
  %v955 = vpop.f32.mrf.mxu0
  %v956 = vadd.f32 0.0, %v955
  %v957 = vpop.f32.mrf.mxu0
  %v958 = vadd.f32 0.0, %v957
  %v959 = vpop.f32.mrf.mxu0
  %v960 = vadd.f32 0.0, %v959
  %961 = vmatprep.mubr.bf16.mxu0 0
  %962 = vmatmul.mubr.bf16.gmra.mxu0 %v286
  %v963 = vpop.f32.mrf.mxu0
  %v964 = vadd.f32 0.0, %v963
  %v965 = vpop.f32.mrf.mxu0
  %v966 = vadd.f32 0.0, %v965
  %v967 = vpop.f32.mrf.mxu0
  %v968 = vadd.f32 0.0, %v967
  %v969 = vpop.f32.mrf.mxu0
  %v970 = vadd.f32 0.0, %v969
  %971 = vmatprep.mubr.bf16.mxu0 0
  %972 = vmatmul.mubr.bf16.gmra.mxu0 %v287
  %v973 = vpop.f32.mrf.mxu0
  %v974 = vadd.f32 0.0, %v973
  %v975 = vpop.f32.mrf.mxu0
  %v976 = vadd.f32 0.0, %v975
  %v977 = vpop.f32.mrf.mxu0
  %v978 = vadd.f32 0.0, %v977
  %v979 = vpop.f32.mrf.mxu0
  %v980 = vadd.f32 0.0, %v979
  %981 = vmatprep.mubr.bf16.mxu0 0
  %982 = vmatmul.mubr.bf16.gmra.mxu0 %v288
  %v983 = vpop.f32.mrf.mxu0
  %v984 = vadd.f32 0.0, %v983
  %v985 = vpop.f32.mrf.mxu0
  %v986 = vadd.f32 0.0, %v985
  %v987 = vpop.f32.mrf.mxu0
  %v988 = vadd.f32 0.0, %v987
  %v989 = vpop.f32.mrf.mxu0
  %v990 = vadd.f32 0.0, %v989
  %991 = vmatprep.mubr.bf16.mxu0 0
  %992 = vmatmul.mubr.bf16.gmra.mxu0 %v289
  %v993 = vpop.f32.mrf.mxu0
  %v994 = vadd.f32 0.0, %v993
  %v995 = vpop.f32.mrf.mxu0
  %v996 = vadd.f32 0.0, %v995
  %v997 = vpop.f32.mrf.mxu0
  %v998 = vadd.f32 0.0, %v997
  %v999 = vpop.f32.mrf.mxu0
  %v1000 = vadd.f32 0.0, %v999
  %1001 = vmatprep.mubr.bf16.mxu0 0
  %1002 = vmatmul.mubr.bf16.gmra.mxu0 %v290
  %v1003 = vpop.f32.mrf.mxu0
  %v1004 = vadd.f32 0.0, %v1003
  %v1005 = vpop.f32.mrf.mxu0
  %v1006 = vadd.f32 0.0, %v1005
  %v1007 = vpop.f32.mrf.mxu0
  %v1008 = vadd.f32 0.0, %v1007
  %v1009 = vpop.f32.mrf.mxu0
  %v1010 = vadd.f32 0.0, %v1009
  %1011 = vmatprep.mubr.bf16.mxu0 0
  %1012 = vmatmul.mubr.bf16.gmra.mxu0 %v291
  %v1013 = vpop.f32.mrf.mxu0
  %v1014 = vadd.f32 0.0, %v1013
  %v1015 = vpop.f32.mrf.mxu0
  %v1016 = vadd.f32 0.0, %v1015
  %v1017 = vpop.f32.mrf.mxu0
  %v1018 = vadd.f32 0.0, %v1017
  %v1019 = vpop.f32.mrf.mxu0
  %v1020 = vadd.f32 0.0, %v1019
  %1021 = vmatprep.mubr.bf16.mxu0 0
  %1022 = vmatmul.mubr.bf16.gmra.mxu0 %v292
  %v1023 = vpop.f32.mrf.mxu0
  %v1024 = vadd.f32 0.0, %v1023
  %v1025 = vpop.f32.mrf.mxu0
  %v1026 = vadd.f32 0.0, %v1025
  %v1027 = vpop.f32.mrf.mxu0
  %v1028 = vadd.f32 0.0, %v1027
  %v1029 = vpop.f32.mrf.mxu0
  %v1030 = vadd.f32 0.0, %v1029
  %1031 = vmatprep.mubr.bf16.mxu0 0
  %1032 = vmatmul.mubr.bf16.gmra.mxu0 %v293
  %v1033 = vpop.f32.mrf.mxu0
  %v1034 = vadd.f32 0.0, %v1033
  %v1035 = vpop.f32.mrf.mxu0
  %v1036 = vadd.f32 0.0, %v1035
  %v1037 = vpop.f32.mrf.mxu0
  %v1038 = vadd.f32 0.0, %v1037
  %v1039 = vpop.f32.mrf.mxu0
  %v1040 = vadd.f32 0.0, %v1039
  %1041 = vmatprep.mubr.bf16.mxu0 0
  %1042 = vmatmul.mubr.bf16.gmra.mxu0 %v294
  %v1043 = vpop.f32.mrf.mxu0
  %v1044 = vadd.f32 0.0, %v1043
  %v1045 = vpop.f32.mrf.mxu0
  %v1046 = vadd.f32 0.0, %v1045
  %v1047 = vpop.f32.mrf.mxu0
  %v1048 = vadd.f32 0.0, %v1047
  %v1049 = vpop.f32.mrf.mxu0
  %v1050 = vadd.f32 0.0, %v1049
  %1051 = vmatprep.mubr.bf16.mxu0 0
  %1052 = vmatmul.mubr.bf16.gmra.mxu0 %v295
  %v1053 = vpop.f32.mrf.mxu0
  %v1054 = vadd.f32 0.0, %v1053
  %v1055 = vpop.f32.mrf.mxu0
  %v1056 = vadd.f32 0.0, %v1055
  %v1057 = vpop.f32.mrf.mxu0
  %v1058 = vadd.f32 0.0, %v1057
  %v1059 = vpop.f32.mrf.mxu0
  %v1060 = vadd.f32 0.0, %v1059
  %1061 = vmatprep.mubr.bf16.mxu0 0
  %1062 = vmatmul.mubr.bf16.gmra.mxu0 %v296
  %v1063 = vpop.f32.mrf.mxu0
  %v1064 = vadd.f32 0.0, %v1063
  %v1065 = vpop.f32.mrf.mxu0
  %v1066 = vadd.f32 0.0, %v1065
  %v1067 = vpop.f32.mrf.mxu0
  %v1068 = vadd.f32 0.0, %v1067
  %v1069 = vpop.f32.mrf.mxu0
  %v1070 = vadd.f32 0.0, %v1069
  %1071 = vmatprep.mubr.bf16.mxu0 0
  %1072 = vmatmul.mubr.bf16.gmra.mxu0 %v297
  %v1073 = vpop.f32.mrf.mxu0
  %v1074 = vadd.f32 0.0, %v1073
  %v1075 = vpop.f32.mrf.mxu0
  %v1076 = vadd.f32 0.0, %v1075
  %v1077 = vpop.f32.mrf.mxu0
  %v1078 = vadd.f32 0.0, %v1077
  %v1079 = vpop.f32.mrf.mxu0
  %v1080 = vadd.f32 0.0, %v1079
  %1081 = vmatprep.mubr.bf16.mxu0 0
  %1082 = vmatmul.mubr.bf16.gmra.mxu0 %v298
  %v1083 = vpop.f32.mrf.mxu0
  %v1084 = vadd.f32 0.0, %v1083
  %v1085 = vpop.f32.mrf.mxu0
  %v1086 = vadd.f32 0.0, %v1085
  %v1087 = vpop.f32.mrf.mxu0
  %v1088 = vadd.f32 0.0, %v1087
  %v1089 = vpop.f32.mrf.mxu0
  %v1090 = vadd.f32 0.0, %v1089
  %1091 = vmatprep.mubr.bf16.mxu0 0
  %1092 = vmatmul.mubr.bf16.gmra.mxu0 %v299
  %v1093 = vpop.f32.mrf.mxu0
  %v1094 = vadd.f32 0.0, %v1093
  %v1095 = vpop.f32.mrf.mxu0
  %v1096 = vadd.f32 0.0, %v1095
  %v1097 = vpop.f32.mrf.mxu0
  %v1098 = vadd.f32 0.0, %v1097
  %v1099 = vpop.f32.mrf.mxu0
  %v1100 = vadd.f32 0.0, %v1099
  %1101 = vmatprep.mubr.bf16.mxu0 0
  %1102 = vmatmul.mubr.bf16.gmra.mxu0 %v300
  %v1103 = vpop.f32.mrf.mxu0
  %v1104 = vadd.f32 0.0, %v1103
  %v1105 = vpop.f32.mrf.mxu0
  %v1106 = vadd.f32 0.0, %v1105
  %v1107 = vpop.f32.mrf.mxu0
  %v1108 = vadd.f32 0.0, %v1107
  %v1109 = vpop.f32.mrf.mxu0
  %v1110 = vadd.f32 0.0, %v1109
  %1111 = vmatprep.mubr.bf16.mxu0 0
  %1112 = vmatmul.mubr.bf16.gmra.mxu0 %v301
  %v1113 = vpop.f32.mrf.mxu0
  %v1114 = vadd.f32 0.0, %v1113
  %v1115 = vpop.f32.mrf.mxu0
  %v1116 = vadd.f32 0.0, %v1115
  %v1117 = vpop.f32.mrf.mxu0
  %v1118 = vadd.f32 0.0, %v1117
  %v1119 = vpop.f32.mrf.mxu0
  %v1120 = vadd.f32 0.0, %v1119
  %1121 = vmatprep.mubr.bf16.mxu0 0
  %1122 = vmatmul.mubr.bf16.gmra.mxu0 %v302
  %v1123 = vpop.f32.mrf.mxu0
  %v1124 = vadd.f32 0.0, %v1123
  %v1125 = vpop.f32.mrf.mxu0
  %v1126 = vadd.f32 0.0, %v1125
  %v1127 = vpop.f32.mrf.mxu0
  %v1128 = vadd.f32 0.0, %v1127
  %v1129 = vpop.f32.mrf.mxu0
  %v1130 = vadd.f32 0.0, %v1129
  %1131 = vmatprep.mubr.bf16.mxu0 0
  %1132 = vmatmul.mubr.bf16.gmra.mxu0 %v303
  %v1133 = vpop.f32.mrf.mxu0
  %v1134 = vadd.f32 0.0, %v1133
  %v1135 = vpop.f32.mrf.mxu0
  %v1136 = vadd.f32 0.0, %v1135
  %v1137 = vpop.f32.mrf.mxu0
  %v1138 = vadd.f32 0.0, %v1137
  %v1139 = vpop.f32.mrf.mxu0
  %v1140 = vadd.f32 0.0, %v1139
  %1141 = vmatprep.mubr.bf16.mxu0 0
  %1142 = vmatmul.mubr.bf16.gmra.mxu0 %v304
  %v1143 = vpop.f32.mrf.mxu0
  %v1144 = vadd.f32 0.0, %v1143
  %v1145 = vpop.f32.mrf.mxu0
  %v1146 = vadd.f32 0.0, %v1145
  %v1147 = vpop.f32.mrf.mxu0
  %v1148 = vadd.f32 0.0, %v1147
  %v1149 = vpop.f32.mrf.mxu0
  %v1150 = vadd.f32 0.0, %v1149
  %1151 = vmatprep.mubr.bf16.mxu0 0
  %1152 = vmatmul.mubr.bf16.gmra.mxu0 %v305
  %v1153 = vpop.f32.mrf.mxu0
  %v1154 = vadd.f32 0.0, %v1153
  %v1155 = vpop.f32.mrf.mxu0
  %v1156 = vadd.f32 0.0, %v1155
  %v1157 = vpop.f32.mrf.mxu0
  %v1158 = vadd.f32 0.0, %v1157
  %v1159 = vpop.f32.mrf.mxu0
  %v1160 = vadd.f32 0.0, %v1159
  %1161 = vmatprep.mubr.bf16.mxu0 0
  %1162 = vmatmul.mubr.bf16.gmra.mxu0 %v306
  %v1163 = vpop.f32.mrf.mxu0
  %v1164 = vadd.f32 0.0, %v1163
  %v1165 = vpop.f32.mrf.mxu0
  %v1166 = vadd.f32 0.0, %v1165
  %v1167 = vpop.f32.mrf.mxu0
  %v1168 = vadd.f32 0.0, %v1167
  %v1169 = vpop.f32.mrf.mxu0
  %v1170 = vadd.f32 0.0, %v1169
  %1171 = vmatprep.mubr.bf16.mxu0 0
  %1172 = vmatmul.mubr.bf16.gmra.mxu0 %v307
  %v1173 = vpop.f32.mrf.mxu0
  %v1174 = vadd.f32 0.0, %v1173
  %v1175 = vpop.f32.mrf.mxu0
  %v1176 = vadd.f32 0.0, %v1175
  %v1177 = vpop.f32.mrf.mxu0
  %v1178 = vadd.f32 0.0, %v1177
  %v1179 = vpop.f32.mrf.mxu0
  %v1180 = vadd.f32 0.0, %v1179
  %1181 = vmatprep.mubr.bf16.mxu0 0
  %1182 = vmatmul.mubr.bf16.gmra.mxu0 %v308
  %v1183 = vpop.f32.mrf.mxu0
  %v1184 = vadd.f32 0.0, %v1183
  %v1185 = vpop.f32.mrf.mxu0
  %v1186 = vadd.f32 0.0, %v1185
  %v1187 = vpop.f32.mrf.mxu0
  %v1188 = vadd.f32 0.0, %v1187
  %v1189 = vpop.f32.mrf.mxu0
  %v1190 = vadd.f32 0.0, %v1189
  %1191 = vmatprep.mubr.bf16.mxu0 0
  %1192 = vmatmul.mubr.bf16.gmra.mxu0 %v309
  %v1193 = vpop.f32.mrf.mxu0
  %v1194 = vadd.f32 0.0, %v1193
  %v1195 = vpop.f32.mrf.mxu0
  %v1196 = vadd.f32 0.0, %v1195
  %v1197 = vpop.f32.mrf.mxu0
  %v1198 = vadd.f32 0.0, %v1197
  %v1199 = vpop.f32.mrf.mxu0
  %v1200 = vadd.f32 0.0, %v1199
  %1201 = vmatprep.mubr.bf16.mxu0 0
  %1202 = vmatmul.mubr.bf16.gmra.mxu0 %v310
  %v1203 = vpop.f32.mrf.mxu0
  %v1204 = vadd.f32 0.0, %v1203
  %v1205 = vpop.f32.mrf.mxu0
  %v1206 = vadd.f32 0.0, %v1205
  %v1207 = vpop.f32.mrf.mxu0
  %v1208 = vadd.f32 0.0, %v1207
  %v1209 = vpop.f32.mrf.mxu0
  %v1210 = vadd.f32 0.0, %v1209
  %1211 = vmatprep.mubr.bf16.mxu0 0
  %1212 = vmatmul.mubr.bf16.gmra.mxu0 %v311
  %v1213 = vpop.f32.mrf.mxu0
  %v1214 = vadd.f32 0.0, %v1213
  %v1215 = vpop.f32.mrf.mxu0
  %v1216 = vadd.f32 0.0, %v1215
  %v1217 = vpop.f32.mrf.mxu0
  %v1218 = vadd.f32 0.0, %v1217
  %v1219 = vpop.f32.mrf.mxu0
  %v1220 = vadd.f32 0.0, %v1219
  %1221 = vmatprep.mubr.bf16.mxu0 0
  %1222 = vmatmul.mubr.bf16.gmra.mxu0 %v312
  %v1223 = vpop.f32.mrf.mxu0
  %v1224 = vadd.f32 0.0, %v1223
  %v1225 = vpop.f32.mrf.mxu0
  %v1226 = vadd.f32 0.0, %v1225
  %v1227 = vpop.f32.mrf.mxu0
  %v1228 = vadd.f32 0.0, %v1227
  %v1229 = vpop.f32.mrf.mxu0
  %v1230 = vadd.f32 0.0, %v1229
  %1231 = vmatprep.mubr.bf16.mxu0 0
  %1232 = vmatmul.mubr.bf16.gmra.mxu0 %v313
  %v1233 = vpop.f32.mrf.mxu0
  %v1234 = vadd.f32 0.0, %v1233
  %v1235 = vpop.f32.mrf.mxu0
  %v1236 = vadd.f32 0.0, %v1235
  %v1237 = vpop.f32.mrf.mxu0
  %v1238 = vadd.f32 0.0, %v1237
  %v1239 = vpop.f32.mrf.mxu0
  %v1240 = vadd.f32 0.0, %v1239
  %1241 = vmatprep.mubr.bf16.mxu0 0
  %1242 = vmatmul.mubr.bf16.gmra.mxu0 %v314
  %v1243 = vpop.f32.mrf.mxu0
  %v1244 = vadd.f32 0.0, %v1243
  %v1245 = vpop.f32.mrf.mxu0
  %v1246 = vadd.f32 0.0, %v1245
  %v1247 = vpop.f32.mrf.mxu0
  %v1248 = vadd.f32 0.0, %v1247
  %v1249 = vpop.f32.mrf.mxu0
  %v1250 = vadd.f32 0.0, %v1249
  %1251 = vmatprep.mubr.bf16.mxu0 0
  %1252 = vmatmul.mubr.bf16.gmra.mxu0 %v315
  %v1253 = vpop.f32.mrf.mxu0
  %v1254 = vadd.f32 0.0, %v1253
  %v1255 = vpop.f32.mrf.mxu0
  %v1256 = vadd.f32 0.0, %v1255
  %v1257 = vpop.f32.mrf.mxu0
  %v1258 = vadd.f32 0.0, %v1257
  %v1259 = vpop.f32.mrf.mxu0
  %v1260 = vadd.f32 0.0, %v1259
  %1261 = vmatprep.mubr.bf16.mxu0 0
  %1262 = vmatmul.mubr.bf16.gmra.mxu0 %v316
  %v1263 = vpop.f32.mrf.mxu0
  %v1264 = vadd.f32 0.0, %v1263
  %v1265 = vpop.f32.mrf.mxu0
  %v1266 = vadd.f32 0.0, %v1265
  %v1267 = vpop.f32.mrf.mxu0
  %v1268 = vadd.f32 0.0, %v1267
  %v1269 = vpop.f32.mrf.mxu0
  %v1270 = vadd.f32 0.0, %v1269
  %1271 = vmatprep.mubr.bf16.mxu0 0
  %1272 = vmatmul.mubr.bf16.gmra.mxu0 %v317
  %v1273 = vpop.f32.mrf.mxu0
  %v1274 = vadd.f32 0.0, %v1273
  %v1275 = vpop.f32.mrf.mxu0
  %v1276 = vadd.f32 0.0, %v1275
  %v1277 = vpop.f32.mrf.mxu0
  %v1278 = vadd.f32 0.0, %v1277
  %v1279 = vpop.f32.mrf.mxu0
  %v1280 = vadd.f32 0.0, %v1279
  %1281 = vmatprep.mubr.bf16.mxu0 0
  %1282 = vmatmul.mubr.bf16.gmra.mxu0 %v318
  %v1283 = vpop.f32.mrf.mxu0
  %v1284 = vadd.f32 0.0, %v1283
  %v1285 = vpop.f32.mrf.mxu0
  %v1286 = vadd.f32 0.0, %v1285
  %v1287 = vpop.f32.mrf.mxu0
  %v1288 = vadd.f32 0.0, %v1287
  %v1289 = vpop.f32.mrf.mxu0
  %v1290 = vadd.f32 0.0, %v1289
  %1291 = vmatprep.mubr.bf16.mxu0 0
  %1292 = vmatmul.mubr.bf16.gmra.mxu0 %v319
  %v1293 = vpop.f32.mrf.mxu0
  %v1294 = vadd.f32 0.0, %v1293
  %v1295 = vpop.f32.mrf.mxu0
  %v1296 = vadd.f32 0.0, %v1295
  %v1297 = vpop.f32.mrf.mxu0
  %v1298 = vadd.f32 0.0, %v1297
  %v1299 = vpop.f32.mrf.mxu0
  %v1300 = vadd.f32 0.0, %v1299
  %1301 = vdwg.mxu0
  %v1302 = vmax.f32 %v551, %v553
  %v1303 = vmax.f32 %v555, %v557
  %v1304 = vmax.f32 %v561, %v563
  %v1305 = vmax.f32 %v565, %v567
  %v1306 = vmax.f32 %v571, %v573
  %v1307 = vmax.f32 %v575, %v577
  %v1308 = vmax.f32 %v581, %v583
  %v1309 = vmax.f32 %v585, %v587
  %v1310 = vmax.f32 %v591, %v593
  %v1311 = vmax.f32 %v595, %v597
  %v1312 = vmax.f32 %v601, %v603
  %v1313 = vmax.f32 %v605, %v607
  %v1314 = vmax.f32 %v611, %v613
  %v1315 = vmax.f32 %v615, %v617
  %v1316 = vmax.f32 %v621, %v623
  %v1317 = vmax.f32 %v625, %v627
  %v1318 = vmax.f32 %v631, %v633
  %v1319 = vmax.f32 %v635, %v637
  %v1320 = vmax.f32 %v641, %v643
  %v1321 = vmax.f32 %v645, %v647
  %v1322 = vmax.f32 %v651, %v653
  %v1323 = vmax.f32 %v655, %v657
  %v1324 = vmax.f32 %v661, %v663
  %v1325 = vmax.f32 %v665, %v667
  %v1326 = vmax.f32 %v671, %v673
  %v1327 = vmax.f32 %v675, %v677
  %v1328 = vmax.f32 %v681, %v683
  %v1329 = vmax.f32 %v685, %v687
  %v1330 = vmax.f32 %v691, %v693
  %v1331 = vmax.f32 %v695, %v697
  %v1332 = vmax.f32 %v701, %v703
  %v1333 = vmax.f32 %v705, %v707
  %v1334 = vmax.f32 %v711, %v713
  %v1335 = vmax.f32 %v715, %v717
  %v1336 = vmax.f32 %v721, %v723
  %v1337 = vmax.f32 %v725, %v727
  %v1338 = vmax.f32 %v731, %v733
  %v1339 = vmax.f32 %v735, %v737
  %v1340 = vmax.f32 %v741, %v743
  %v1341 = vmax.f32 %v745, %v747
  %v1342 = vmax.f32 %v751, %v753
  %v1343 = vmax.f32 %v755, %v757
  %v1344 = vmax.f32 %v761, %v763
  %v1345 = vmax.f32 %v765, %v767
  %v1346 = vmax.f32 %v771, %v773
  %v1347 = vmax.f32 %v775, %v777
  %v1348 = vmax.f32 %v781, %v783
  %v1349 = vmax.f32 %v785, %v787
  %v1350 = vmax.f32 %v791, %v793
  %v1351 = vmax.f32 %v795, %v797
  %v1352 = vmax.f32 %v801, %v803
  %v1353 = vmax.f32 %v805, %v807
  %v1354 = vmax.f32 %v811, %v813
  %v1355 = vmax.f32 %v815, %v817
  %v1356 = vmax.f32 %v821, %v823
  %v1357 = vmax.f32 %v825, %v827
  %v1358 = vmax.f32 %v831, %v833
  %v1359 = vmax.f32 %v835, %v837
  %v1360 = vmax.f32 %v841, %v843
  %v1361 = vmax.f32 %v845, %v847
  %v1362 = vmax.f32 %v851, %v853
  %v1363 = vmax.f32 %v855, %v857
  %v1364 = vmax.f32 %v861, %v863
  %v1365 = vmax.f32 %v865, %v867
  %v1366 = vmax.f32 %v871, %v873
  %v1367 = vmax.f32 %v875, %v877
  %v1368 = vmax.f32 %v881, %v883
  %v1369 = vmax.f32 %v885, %v887
  %v1370 = vmax.f32 %v891, %v893
  %v1371 = vmax.f32 %v895, %v897
  %v1372 = vmax.f32 %v901, %v903
  %v1373 = vmax.f32 %v905, %v907
  %v1374 = vmax.f32 %v944, %v946
  %v1375 = vmax.f32 %v948, %v950
  %v1376 = vmax.f32 %v954, %v956
  %v1377 = vmax.f32 %v958, %v960
  %v1378 = vmax.f32 %v964, %v966
  %v1379 = vmax.f32 %v968, %v970
  %v1380 = vmax.f32 %v974, %v976
  %v1381 = vmax.f32 %v978, %v980
  %v1382 = vmax.f32 %v984, %v986
  %v1383 = vmax.f32 %v988, %v990
  %v1384 = vmax.f32 %v994, %v996
  %v1385 = vmax.f32 %v998, %v1000
  %v1386 = vmax.f32 %v1004, %v1006
  %v1387 = vmax.f32 %v1008, %v1010
  %v1388 = vmax.f32 %v1014, %v1016
  %v1389 = vmax.f32 %v1018, %v1020
  %v1390 = vmax.f32 %v1024, %v1026
  %v1391 = vmax.f32 %v1028, %v1030
  %v1392 = vmax.f32 %v1034, %v1036
  %v1393 = vmax.f32 %v1038, %v1040
  %v1394 = vmax.f32 %v1044, %v1046
  %v1395 = vmax.f32 %v1048, %v1050
  %v1396 = vmax.f32 %v1054, %v1056
  %v1397 = vmax.f32 %v1058, %v1060
  %v1398 = vmax.f32 %v1064, %v1066
  %v1399 = vmax.f32 %v1068, %v1070
  %v1400 = vmax.f32 %v1074, %v1076
  %v1401 = vmax.f32 %v1078, %v1080
  %v1402 = vmax.f32 %v1084, %v1086
  %v1403 = vmax.f32 %v1088, %v1090
  %v1404 = vmax.f32 %v1094, %v1096
  %v1405 = vmax.f32 %v1098, %v1100
  %v1406 = vmax.f32 %v1104, %v1106
  %v1407 = vmax.f32 %v1108, %v1110
  %v1408 = vmax.f32 %v1114, %v1116
  %v1409 = vmax.f32 %v1118, %v1120
  %v1410 = vmax.f32 %v1124, %v1126
  %v1411 = vmax.f32 %v1128, %v1130
  %v1412 = vmax.f32 %v1134, %v1136
  %v1413 = vmax.f32 %v1138, %v1140
  %v1414 = vmax.f32 %v1144, %v1146
  %v1415 = vmax.f32 %v1148, %v1150
  %v1416 = vmax.f32 %v1154, %v1156
  %v1417 = vmax.f32 %v1158, %v1160
  %v1418 = vmax.f32 %v1164, %v1166
  %v1419 = vmax.f32 %v1168, %v1170
  %v1420 = vmax.f32 %v1174, %v1176
  %v1421 = vmax.f32 %v1178, %v1180
  %v1422 = vmax.f32 %v1184, %v1186
  %v1423 = vmax.f32 %v1188, %v1190
  %v1424 = vmax.f32 %v1194, %v1196
  %v1425 = vmax.f32 %v1198, %v1200
  %v1426 = vmax.f32 %v1204, %v1206
  %v1427 = vmax.f32 %v1208, %v1210
  %v1428 = vmax.f32 %v1214, %v1216
  %v1429 = vmax.f32 %v1218, %v1220
  %v1430 = vmax.f32 %v1224, %v1226
  %v1431 = vmax.f32 %v1228, %v1230
  %v1432 = vmax.f32 %v1234, %v1236
  %v1433 = vmax.f32 %v1238, %v1240
  %v1434 = vmax.f32 %v1244, %v1246
  %v1435 = vmax.f32 %v1248, %v1250
  %v1436 = vmax.f32 %v1254, %v1256
  %v1437 = vmax.f32 %v1258, %v1260
  %v1438 = vmax.f32 %v1264, %v1266
  %v1439 = vmax.f32 %v1268, %v1270
  %v1440 = vmax.f32 %v1274, %v1276
  %v1441 = vmax.f32 %v1278, %v1280
  %v1442 = vmax.f32 %v1284, %v1286
  %v1443 = vmax.f32 %v1288, %v1290
  %v1444 = vmax.f32 %v1294, %v1296
  %v1445 = vmax.f32 %v1298, %v1300
  %v1446 = vmax.f32 %v1302, %v1374
  %v1447 = vmax.f32 %v1303, %v1375
  %v1448 = vmax.f32 %v1304, %v1376
  %v1449 = vmax.f32 %v1305, %v1377
  %v1450 = vmax.f32 %v1306, %v1378
  %v1451 = vmax.f32 %v1307, %v1379
  %v1452 = vmax.f32 %v1308, %v1380
  %v1453 = vmax.f32 %v1309, %v1381
  %v1454 = vmax.f32 %v1310, %v1382
  %v1455 = vmax.f32 %v1311, %v1383
  %v1456 = vmax.f32 %v1312, %v1384
  %v1457 = vmax.f32 %v1313, %v1385
  %v1458 = vmax.f32 %v1314, %v1386
  %v1459 = vmax.f32 %v1315, %v1387
  %v1460 = vmax.f32 %v1316, %v1388
  %v1461 = vmax.f32 %v1317, %v1389
  %v1462 = vmax.f32 %v1318, %v1390
  %v1463 = vmax.f32 %v1319, %v1391
  %v1464 = vmax.f32 %v1320, %v1392
  %v1465 = vmax.f32 %v1321, %v1393
  %v1466 = vmax.f32 %v1322, %v1394
  %v1467 = vmax.f32 %v1323, %v1395
  %v1468 = vmax.f32 %v1324, %v1396
  %v1469 = vmax.f32 %v1325, %v1397
  %v1470 = vmax.f32 %v1326, %v1398
  %v1471 = vmax.f32 %v1327, %v1399
  %v1472 = vmax.f32 %v1328, %v1400
  %v1473 = vmax.f32 %v1329, %v1401
  %v1474 = vmax.f32 %v1330, %v1402
  %v1475 = vmax.f32 %v1331, %v1403
  %v1476 = vmax.f32 %v1332, %v1404
  %v1477 = vmax.f32 %v1333, %v1405
  %v1478 = vmax.f32 %v1334, %v1406
  %v1479 = vmax.f32 %v1335, %v1407
  %v1480 = vmax.f32 %v1336, %v1408
  %v1481 = vmax.f32 %v1337, %v1409
  %v1482 = vmax.f32 %v1338, %v1410
  %v1483 = vmax.f32 %v1339, %v1411
  %v1484 = vmax.f32 %v1340, %v1412
  %v1485 = vmax.f32 %v1341, %v1413
  %v1486 = vmax.f32 %v1342, %v1414
  %v1487 = vmax.f32 %v1343, %v1415
  %v1488 = vmax.f32 %v1344, %v1416
  %v1489 = vmax.f32 %v1345, %v1417
  %v1490 = vmax.f32 %v1346, %v1418
  %v1491 = vmax.f32 %v1347, %v1419
  %v1492 = vmax.f32 %v1348, %v1420
  %v1493 = vmax.f32 %v1349, %v1421
  %v1494 = vmax.f32 %v1350, %v1422
  %v1495 = vmax.f32 %v1351, %v1423
  %v1496 = vmax.f32 %v1352, %v1424
  %v1497 = vmax.f32 %v1353, %v1425
  %v1498 = vmax.f32 %v1354, %v1426
  %v1499 = vmax.f32 %v1355, %v1427
  %v1500 = vmax.f32 %v1356, %v1428
  %v1501 = vmax.f32 %v1357, %v1429
  %v1502 = vmax.f32 %v1358, %v1430
  %v1503 = vmax.f32 %v1359, %v1431
  %v1504 = vmax.f32 %v1360, %v1432
  %v1505 = vmax.f32 %v1361, %v1433
  %v1506 = vmax.f32 %v1362, %v1434
  %v1507 = vmax.f32 %v1363, %v1435
  %v1508 = vmax.f32 %v1364, %v1436
  %v1509 = vmax.f32 %v1365, %v1437
  %v1510 = vmax.f32 %v1366, %v1438
  %v1511 = vmax.f32 %v1367, %v1439
  %v1512 = vmax.f32 %v1368, %v1440
  %v1513 = vmax.f32 %v1369, %v1441
  %v1514 = vmax.f32 %v1370, %v1442
  %v1515 = vmax.f32 %v1371, %v1443
  %v1516 = vmax.f32 %v1372, %v1444
  %v1517 = vmax.f32 %v1373, %v1445
  %v1518 = vlaneseq
  %v1519 = vshrl.u32 %v1518, 7
  %v1520 = vsub.s32 0, %v1519
  %v1521 = vrot.slane %v30, %v1520
  %v1522 = vadd.f32 %v1446, %v1521
  %v1523 = vadd.f32 %v1447, %v1521
  %v1524 = vadd.f32 %v1448, %v1521
  %v1525 = vadd.f32 %v1449, %v1521
  %v1526 = vadd.f32 %v1450, %v1521
  %v1527 = vadd.f32 %v1451, %v1521
  %v1528 = vadd.f32 %v1452, %v1521
  %v1529 = vadd.f32 %v1453, %v1521
  %v1530 = vadd.f32 %v1454, %v1521
  %v1531 = vadd.f32 %v1455, %v1521
  %v1532 = vadd.f32 %v1456, %v1521
  %v1533 = vadd.f32 %v1457, %v1521
  %v1534 = vadd.f32 %v1458, %v1521
  %v1535 = vadd.f32 %v1459, %v1521
  %v1536 = vadd.f32 %v1460, %v1521
  %v1537 = vadd.f32 %v1461, %v1521
  %v1538 = vadd.f32 %v1462, %v1521
  %v1539 = vadd.f32 %v1463, %v1521
  %v1540 = vadd.f32 %v1464, %v1521
  %v1541 = vadd.f32 %v1465, %v1521
  %v1542 = vadd.f32 %v1466, %v1521
  %v1543 = vadd.f32 %v1467, %v1521
  %v1544 = vadd.f32 %v1468, %v1521
  %v1545 = vadd.f32 %v1469, %v1521
  %v1546 = vadd.f32 %v1470, %v1521
  %v1547 = vadd.f32 %v1471, %v1521
  %v1548 = vadd.f32 %v1472, %v1521
  %v1549 = vadd.f32 %v1473, %v1521
  %v1550 = vadd.f32 %v1474, %v1521
  %v1551 = vadd.f32 %v1475, %v1521
  %v1552 = vadd.f32 %v1476, %v1521
  %v1553 = vadd.f32 %v1477, %v1521
  %v1554 = vadd.f32 %v1478, %v1521
  %v1555 = vadd.f32 %v1479, %v1521
  %v1556 = vadd.f32 %v1480, %v1521
  %v1557 = vadd.f32 %v1481, %v1521
  %v1558 = vadd.f32 %v1482, %v1521
  %v1559 = vadd.f32 %v1483, %v1521
  %v1560 = vadd.f32 %v1484, %v1521
  %v1561 = vadd.f32 %v1485, %v1521
  %v1562 = vadd.f32 %v1486, %v1521
  %v1563 = vadd.f32 %v1487, %v1521
  %v1564 = vadd.f32 %v1488, %v1521
  %v1565 = vadd.f32 %v1489, %v1521
  %v1566 = vadd.f32 %v1490, %v1521
  %v1567 = vadd.f32 %v1491, %v1521
  %v1568 = vadd.f32 %v1492, %v1521
  %v1569 = vadd.f32 %v1493, %v1521
  %v1570 = vadd.f32 %v1494, %v1521
  %v1571 = vadd.f32 %v1495, %v1521
  %v1572 = vadd.f32 %v1496, %v1521
  %v1573 = vadd.f32 %v1497, %v1521
  %v1574 = vadd.f32 %v1498, %v1521
  %v1575 = vadd.f32 %v1499, %v1521
  %v1576 = vadd.f32 %v1500, %v1521
  %v1577 = vadd.f32 %v1501, %v1521
  %v1578 = vadd.f32 %v1502, %v1521
  %v1579 = vadd.f32 %v1503, %v1521
  %v1580 = vadd.f32 %v1504, %v1521
  %v1581 = vadd.f32 %v1505, %v1521
  %v1582 = vadd.f32 %v1506, %v1521
  %v1583 = vadd.f32 %v1507, %v1521
  %v1584 = vadd.f32 %v1508, %v1521
  %v1585 = vadd.f32 %v1509, %v1521
  %v1586 = vadd.f32 %v1510, %v1521
  %v1587 = vadd.f32 %v1511, %v1521
  %v1588 = vadd.f32 %v1512, %v1521
  %v1589 = vadd.f32 %v1513, %v1521
  %v1590 = vadd.f32 %v1514, %v1521
  %v1591 = vadd.f32 %v1515, %v1521
  %v1592 = vadd.f32 %v1516, %v1521
  %v1593 = vadd.f32 %v1517, %v1521
  %v1594 = vmax.f32 %v1522, 0.0
  %v1595 = vmax.f32 %v1523, 0.0
  %v1596 = vmax.f32 %v1524, 0.0
  %v1597 = vmax.f32 %v1525, 0.0
  %v1598 = vmax.f32 %v1526, 0.0
  %v1599 = vmax.f32 %v1527, 0.0
  %v1600 = vmax.f32 %v1528, 0.0
  %v1601 = vmax.f32 %v1529, 0.0
  %v1602 = vmax.f32 %v1530, 0.0
  %v1603 = vmax.f32 %v1531, 0.0
  %v1604 = vmax.f32 %v1532, 0.0
  %v1605 = vmax.f32 %v1533, 0.0
  %v1606 = vmax.f32 %v1534, 0.0
  %v1607 = vmax.f32 %v1535, 0.0
  %v1608 = vmax.f32 %v1536, 0.0
  %v1609 = vmax.f32 %v1537, 0.0
  %v1610 = vmax.f32 %v1538, 0.0
  %v1611 = vmax.f32 %v1539, 0.0
  %v1612 = vmax.f32 %v1540, 0.0
  %v1613 = vmax.f32 %v1541, 0.0
  %v1614 = vmax.f32 %v1542, 0.0
  %v1615 = vmax.f32 %v1543, 0.0
  %v1616 = vmax.f32 %v1544, 0.0
  %v1617 = vmax.f32 %v1545, 0.0
  %v1618 = vmax.f32 %v1546, 0.0
  %v1619 = vmax.f32 %v1547, 0.0
  %v1620 = vmax.f32 %v1548, 0.0
  %v1621 = vmax.f32 %v1549, 0.0
  %v1622 = vmax.f32 %v1550, 0.0
  %v1623 = vmax.f32 %v1551, 0.0
  %v1624 = vmax.f32 %v1552, 0.0
  %v1625 = vmax.f32 %v1553, 0.0
  %v1626 = vmax.f32 %v1554, 0.0
  %v1627 = vmax.f32 %v1555, 0.0
  %v1628 = vmax.f32 %v1556, 0.0
  %v1629 = vmax.f32 %v1557, 0.0
  %v1630 = vmax.f32 %v1558, 0.0
  %v1631 = vmax.f32 %v1559, 0.0
  %v1632 = vmax.f32 %v1560, 0.0
  %v1633 = vmax.f32 %v1561, 0.0
  %v1634 = vmax.f32 %v1562, 0.0
  %v1635 = vmax.f32 %v1563, 0.0
  %v1636 = vmax.f32 %v1564, 0.0
  %v1637 = vmax.f32 %v1565, 0.0
  %v1638 = vmax.f32 %v1566, 0.0
  %v1639 = vmax.f32 %v1567, 0.0
  %v1640 = vmax.f32 %v1568, 0.0
  %v1641 = vmax.f32 %v1569, 0.0
  %v1642 = vmax.f32 %v1570, 0.0
  %v1643 = vmax.f32 %v1571, 0.0
  %v1644 = vmax.f32 %v1572, 0.0
  %v1645 = vmax.f32 %v1573, 0.0
  %v1646 = vmax.f32 %v1574, 0.0
  %v1647 = vmax.f32 %v1575, 0.0
  %v1648 = vmax.f32 %v1576, 0.0
  %v1649 = vmax.f32 %v1577, 0.0
  %v1650 = vmax.f32 %v1578, 0.0
  %v1651 = vmax.f32 %v1579, 0.0
  %v1652 = vmax.f32 %v1580, 0.0
  %v1653 = vmax.f32 %v1581, 0.0
  %v1654 = vmax.f32 %v1582, 0.0
  %v1655 = vmax.f32 %v1583, 0.0
  %v1656 = vmax.f32 %v1584, 0.0
  %v1657 = vmax.f32 %v1585, 0.0
  %v1658 = vmax.f32 %v1586, 0.0
  %v1659 = vmax.f32 %v1587, 0.0
  %v1660 = vmax.f32 %v1588, 0.0
  %v1661 = vmax.f32 %v1589, 0.0
  %v1662 = vmax.f32 %v1590, 0.0
  %v1663 = vmax.f32 %v1591, 0.0
  %v1664 = vmax.f32 %v1592, 0.0
  %v1665 = vmax.f32 %v1593, 0.0
  %v1666 = vpack.c.bf16 %v1595, %v1594
  %v1667 = vpack.c.bf16 %v1597, %v1596
  %v1668 = vpack.c.bf16 %v1599, %v1598
  %v1669 = vpack.c.bf16 %v1601, %v1600
  %v1670 = vpack.c.bf16 %v1603, %v1602
  %v1671 = vpack.c.bf16 %v1605, %v1604
  %v1672 = vpack.c.bf16 %v1607, %v1606
  %v1673 = vpack.c.bf16 %v1609, %v1608
  %v1674 = vpack.c.bf16 %v1611, %v1610
  %v1675 = vpack.c.bf16 %v1613, %v1612
  %v1676 = vpack.c.bf16 %v1615, %v1614
  %v1677 = vpack.c.bf16 %v1617, %v1616
  %v1678 = vpack.c.bf16 %v1619, %v1618
  %v1679 = vpack.c.bf16 %v1621, %v1620
  %v1680 = vpack.c.bf16 %v1623, %v1622
  %v1681 = vpack.c.bf16 %v1625, %v1624
  %v1682 = vpack.c.bf16 %v1627, %v1626
  %v1683 = vpack.c.bf16 %v1629, %v1628
  %v1684 = vpack.c.bf16 %v1631, %v1630
  %v1685 = vpack.c.bf16 %v1633, %v1632
  %v1686 = vpack.c.bf16 %v1635, %v1634
  %v1687 = vpack.c.bf16 %v1637, %v1636
  %v1688 = vpack.c.bf16 %v1639, %v1638
  %v1689 = vpack.c.bf16 %v1641, %v1640
  %v1690 = vpack.c.bf16 %v1643, %v1642
  %v1691 = vpack.c.bf16 %v1645, %v1644
  %v1692 = vpack.c.bf16 %v1647, %v1646
  %v1693 = vpack.c.bf16 %v1649, %v1648
  %v1694 = vpack.c.bf16 %v1651, %v1650
  %v1695 = vpack.c.bf16 %v1653, %v1652
  %v1696 = vpack.c.bf16 %v1655, %v1654
  %v1697 = vpack.c.bf16 %v1657, %v1656
  %v1698 = vpack.c.bf16 %v1659, %v1658
  %v1699 = vpack.c.bf16 %v1661, %v1660
  %v1700 = vpack.c.bf16 %v1663, %v1662
  %v1701 = vpack.c.bf16 %v1665, %v1664
  %v1702 = vld [vmem:[%s2] sm:$0xf]
  %v1703 = vld [vmem:[%s2 + $0x4] sm:$0xf]
  %v1704 = vld [vmem:[%s2 + $0x8] sm:$0xf]
  %v1705 = vld [vmem:[%s2 + $0xc] sm:$0xf]
  %v1706 = vld [vmem:[%s2 + $0x10] sm:$0xf]
  %v1707 = vld [vmem:[%s2 + $0x14] sm:$0xf]
  %v1708 = vld [vmem:[%s2 + $0x18] sm:$0xf]
  %v1709 = vld [vmem:[%s2 + $0x1c] sm:$0xf]
  %v1710 = vld [vmem:[%s2 + $0x20] sm:$0xf]
  %v1711 = vld [vmem:[%s2 + $0x24] sm:$0xf]
  %v1712 = vld [vmem:[%s2 + $0x28] sm:$0xf]
  %v1713 = vld [vmem:[%s2 + $0x2c] sm:$0xf]
  %v1714 = vld [vmem:[%s2 + $0x30] sm:$0xf]
  %v1715 = vld [vmem:[%s2 + $0x34] sm:$0xf]
  %v1716 = vld [vmem:[%s2 + $0x38] sm:$0xf]
  %v1717 = vld [vmem:[%s2 + $0x3c] sm:$0xf]
  %v1718 = vld [vmem:[%s2 + $0x40] sm:$0xf]
  %v1719 = vld [vmem:[%s2 + $0x44] sm:$0xf]
  %v1720 = vld [vmem:[%s2 + $0x48] sm:$0xf]
  %v1721 = vld [vmem:[%s2 + $0x4c] sm:$0xf]
  %v1722 = vld [vmem:[%s2 + $0x50] sm:$0xf]
  %v1723 = vld [vmem:[%s2 + $0x54] sm:$0xf]
  %v1724 = vld [vmem:[%s2 + $0x58] sm:$0xf]
  %v1725 = vld [vmem:[%s2 + $0x5c] sm:$0xf]
  %v1726 = vld [vmem:[%s2 + $0x60] sm:$0xf]
  %v1727 = vld [vmem:[%s2 + $0x64] sm:$0xf]
  %v1728 = vld [vmem:[%s2 + $0x68] sm:$0xf]
  %v1729 = vld [vmem:[%s2 + $0x6c] sm:$0xf]
  %v1730 = vld [vmem:[%s2 + $0x70] sm:$0xf]
  %v1731 = vld [vmem:[%s2 + $0x74] sm:$0xf]
  %v1732 = vld [vmem:[%s2 + $0x78] sm:$0xf]
  %v1733 = vld [vmem:[%s2 + $0x7c] sm:$0xf]
  %v1734 = vld [vmem:[%s2 + $0x80] sm:$0xf]
  %v1735 = vld [vmem:[%s2 + $0x84] sm:$0xf]
  %v1736 = vld [vmem:[%s2 + $0x88] sm:$0xf]
  %v1737 = vld [vmem:[%s2 + $0x8c] sm:$0xf]
  %v1738 = vld [vmem:[%s2 + $0x90] sm:$0xf]
  %v1739 = vld [vmem:[%s2 + $0x94] sm:$0xf]
  %v1740 = vld [vmem:[%s2 + $0x98] sm:$0xf]
  %v1741 = vld [vmem:[%s2 + $0x9c] sm:$0xf]
  %v1742 = vld [vmem:[%s2 + $0xa0] sm:$0xf]
  %v1743 = vld [vmem:[%s2 + $0xa4] sm:$0xf]
  %v1744 = vld [vmem:[%s2 + $0xa8] sm:$0xf]
  %v1745 = vld [vmem:[%s2 + $0xac] sm:$0xf]
  %v1746 = vld [vmem:[%s2 + $0xb0] sm:$0xf]
  %v1747 = vld [vmem:[%s2 + $0xb4] sm:$0xf]
  %v1748 = vld [vmem:[%s2 + $0xb8] sm:$0xf]
  %v1749 = vld [vmem:[%s2 + $0xbc] sm:$0xf]
  %v1750 = vld [vmem:[%s2 + $0xc0] sm:$0xf]
  %v1751 = vld [vmem:[%s2 + $0xc4] sm:$0xf]
  %v1752 = vld [vmem:[%s2 + $0xc8] sm:$0xf]
  %v1753 = vld [vmem:[%s2 + $0xcc] sm:$0xf]
  %v1754 = vld [vmem:[%s2 + $0xd0] sm:$0xf]
  %v1755 = vld [vmem:[%s2 + $0xd4] sm:$0xf]
  %v1756 = vld [vmem:[%s2 + $0xd8] sm:$0xf]
  %v1757 = vld [vmem:[%s2 + $0xdc] sm:$0xf]
  %v1758 = vld [vmem:[%s2 + $0xe0] sm:$0xf]
  %v1759 = vld [vmem:[%s2 + $0xe4] sm:$0xf]
  %v1760 = vld [vmem:[%s2 + $0xe8] sm:$0xf]
  %v1761 = vld [vmem:[%s2 + $0xec] sm:$0xf]
  %v1762 = vld [vmem:[%s2 + $0xf0] sm:$0xf]
  %v1763 = vld [vmem:[%s2 + $0xf4] sm:$0xf]
  %v1764 = vld [vmem:[%s2 + $0xf8] sm:$0xf]
  %v1765 = vld [vmem:[%s2 + $0xfc] sm:$0xf]
  %v1766 = vld [vmem:[%s2 + $0x100] sm:$0xf]
  %v1767 = vld [vmem:[%s2 + $0x104] sm:$0xf]
  %v1768 = vld [vmem:[%s2 + $0x108] sm:$0xf]
  %v1769 = vld [vmem:[%s2 + $0x10c] sm:$0xf]
  %v1770 = vld [vmem:[%s2 + $0x110] sm:$0xf]
  %v1771 = vld [vmem:[%s2 + $0x114] sm:$0xf]
  %v1772 = vld [vmem:[%s2 + $0x118] sm:$0xf]
  %v1773 = vld [vmem:[%s2 + $0x11c] sm:$0xf]
  %v1774 = vld [vmem:[%s2 + $0x120] sm:$0xf]
  %v1775 = vld [vmem:[%s2 + $0x124] sm:$0xf]
  %v1776 = vld [vmem:[%s2 + $0x128] sm:$0xf]
  %v1777 = vld [vmem:[%s2 + $0x12c] sm:$0xf]
  %v1778 = vld [vmem:[%s2 + $0x130] sm:$0xf]
  %v1779 = vld [vmem:[%s2 + $0x134] sm:$0xf]
  %v1780 = vld [vmem:[%s2 + $0x138] sm:$0xf]
  %v1781 = vld [vmem:[%s2 + $0x13c] sm:$0xf]
  %v1782 = vld [vmem:[%s2 + $0x140] sm:$0xf]
  %v1783 = vld [vmem:[%s2 + $0x144] sm:$0xf]
  %v1784 = vld [vmem:[%s2 + $0x148] sm:$0xf]
  %v1785 = vld [vmem:[%s2 + $0x14c] sm:$0xf]
  %v1786 = vld [vmem:[%s2 + $0x150] sm:$0xf]
  %v1787 = vld [vmem:[%s2 + $0x154] sm:$0xf]
  %v1788 = vld [vmem:[%s2 + $0x158] sm:$0xf]
  %v1789 = vld [vmem:[%s2 + $0x15c] sm:$0xf]
  %v1790 = vld [vmem:[%s2 + $0x160] sm:$0xf]
  %v1791 = vld [vmem:[%s2 + $0x164] sm:$0xf]
  %v1792 = vld [vmem:[%s2 + $0x168] sm:$0xf]
  %v1793 = vld [vmem:[%s2 + $0x16c] sm:$0xf]
  %v1794 = vld [vmem:[%s2 + $0x170] sm:$0xf]
  %v1795 = vld [vmem:[%s2 + $0x174] sm:$0xf]
  %v1796 = vld [vmem:[%s2 + $0x178] sm:$0xf]
  %v1797 = vld [vmem:[%s2 + $0x17c] sm:$0xf]
  %v1798 = vld [vmem:[%s2 + $0x180] sm:$0xf]
  %v1799 = vld [vmem:[%s2 + $0x184] sm:$0xf]
  %v1800 = vld [vmem:[%s2 + $0x188] sm:$0xf]
  %v1801 = vld [vmem:[%s2 + $0x18c] sm:$0xf]
  %v1802 = vld [vmem:[%s2 + $0x190] sm:$0xf]
  %v1803 = vld [vmem:[%s2 + $0x194] sm:$0xf]
  %v1804 = vld [vmem:[%s2 + $0x198] sm:$0xf]
  %v1805 = vld [vmem:[%s2 + $0x19c] sm:$0xf]
  %v1806 = vld [vmem:[%s2 + $0x1a0] sm:$0xf]
  %v1807 = vld [vmem:[%s2 + $0x1a4] sm:$0xf]
  %v1808 = vld [vmem:[%s2 + $0x1a8] sm:$0xf]
  %v1809 = vld [vmem:[%s2 + $0x1ac] sm:$0xf]
  %v1810 = vld [vmem:[%s2 + $0x1b0] sm:$0xf]
  %v1811 = vld [vmem:[%s2 + $0x1b4] sm:$0xf]
  %v1812 = vld [vmem:[%s2 + $0x1b8] sm:$0xf]
  %v1813 = vld [vmem:[%s2 + $0x1bc] sm:$0xf]
  %v1814 = vld [vmem:[%s2 + $0x1c0] sm:$0xf]
  %v1815 = vld [vmem:[%s2 + $0x1c4] sm:$0xf]
  %v1816 = vld [vmem:[%s2 + $0x1c8] sm:$0xf]
  %v1817 = vld [vmem:[%s2 + $0x1cc] sm:$0xf]
  %v1818 = vld [vmem:[%s2 + $0x1d0] sm:$0xf]
  %v1819 = vld [vmem:[%s2 + $0x1d4] sm:$0xf]
  %v1820 = vld [vmem:[%s2 + $0x1d8] sm:$0xf]
  %v1821 = vld [vmem:[%s2 + $0x1dc] sm:$0xf]
  %v1822 = vld [vmem:[%s2 + $0x1e0] sm:$0xf]
  %v1823 = vld [vmem:[%s2 + $0x1e4] sm:$0xf]
  %v1824 = vld [vmem:[%s2 + $0x1e8] sm:$0xf]
  %v1825 = vld [vmem:[%s2 + $0x1ec] sm:$0xf]
  %v1826 = vld [vmem:[%s2 + $0x1f0] sm:$0xf]
  %v1827 = vld [vmem:[%s2 + $0x1f4] sm:$0xf]
  %v1828 = vld [vmem:[%s2 + $0x1f8] sm:$0xf]
  %v1829 = vld [vmem:[%s2 + $0x1fc] sm:$0xf]
  %v1830 = vld [vmem:[%s2 + $0x200] sm:$0xf]
  %v1831 = vld [vmem:[%s2 + $0x204] sm:$0xf]
  %v1832 = vld [vmem:[%s2 + $0x208] sm:$0xf]
  %v1833 = vld [vmem:[%s2 + $0x20c] sm:$0xf]
  %v1834 = vld [vmem:[%s2 + $0x210] sm:$0xf]
  %v1835 = vld [vmem:[%s2 + $0x214] sm:$0xf]
  %v1836 = vld [vmem:[%s2 + $0x218] sm:$0xf]
  %v1837 = vld [vmem:[%s2 + $0x21c] sm:$0xf]
  %v1838 = vld [vmem:[%s2 + $0x220] sm:$0xf]
  %v1839 = vld [vmem:[%s2 + $0x224] sm:$0xf]
  %v1840 = vld [vmem:[%s2 + $0x228] sm:$0xf]
  %v1841 = vld [vmem:[%s2 + $0x22c] sm:$0xf]
  %v1842 = vld [vmem:[%s2 + $0x230] sm:$0xf]
  %v1843 = vld [vmem:[%s2 + $0x234] sm:$0xf]
  %v1844 = vld [vmem:[%s2 + $0x238] sm:$0xf]
  %v1845 = vld [vmem:[%s2 + $0x23c] sm:$0xf]
  %v1846 = vlaneseq
  %v1847 = vshrl.u32 %v1846, 7
  %v1848 = vsub.s32 0, %v1847
  %v1849 = vrot.slane %v31, %v1848
  %v1994 = vunpack.c.l.b16 %v1702
  %v1995 = vunpack.c.l.b16 %v1703
  %v1996 = vunpack.c.l.b16 %v1704
  %v1997 = vunpack.c.l.b16 %v1705
  %v1998 = vunpack.c.l.b16 %v1706
  %v1999 = vunpack.c.l.b16 %v1707
  %v2000 = vunpack.c.l.b16 %v1708
  %v2001 = vunpack.c.l.b16 %v1709
  %v2002 = vunpack.c.l.b16 %v1710
  %v2003 = vunpack.c.l.b16 %v1711
  %v2004 = vunpack.c.l.b16 %v1712
  %v2005 = vunpack.c.l.b16 %v1713
  %v2006 = vunpack.c.l.b16 %v1714
  %v2007 = vunpack.c.l.b16 %v1715
  %v2008 = vunpack.c.l.b16 %v1716
  %v2009 = vunpack.c.l.b16 %v1717
  %v2010 = vunpack.c.l.b16 %v1718
  %v2011 = vunpack.c.l.b16 %v1719
  %v2012 = vunpack.c.l.b16 %v1720
  %v2013 = vunpack.c.l.b16 %v1721
  %v2014 = vunpack.c.l.b16 %v1722
  %v2015 = vunpack.c.l.b16 %v1723
  %v2016 = vunpack.c.l.b16 %v1724
  %v2017 = vunpack.c.l.b16 %v1725
  %v2018 = vunpack.c.l.b16 %v1726
  %v2019 = vunpack.c.l.b16 %v1727
  %v2020 = vunpack.c.l.b16 %v1728
  %v2021 = vunpack.c.l.b16 %v1729
  %v2022 = vunpack.c.l.b16 %v1730
  %v2023 = vunpack.c.l.b16 %v1731
  %v2024 = vunpack.c.l.b16 %v1732
  %v2025 = vunpack.c.l.b16 %v1733
  %v2026 = vunpack.c.l.b16 %v1734
  %v2027 = vunpack.c.l.b16 %v1735
  %v2028 = vunpack.c.l.b16 %v1736
  %v2029 = vunpack.c.l.b16 %v1737
  %v2030 = vunpack.c.l.b16 %v1738
  %v2031 = vunpack.c.l.b16 %v1739
  %v2032 = vunpack.c.l.b16 %v1740
  %v2033 = vunpack.c.l.b16 %v1741
  %v2034 = vunpack.c.l.b16 %v1742
  %v2035 = vunpack.c.l.b16 %v1743
  %v2036 = vunpack.c.l.b16 %v1744
  %v2037 = vunpack.c.l.b16 %v1745
  %v2038 = vunpack.c.l.b16 %v1746
  %v2039 = vunpack.c.l.b16 %v1747
  %v2040 = vunpack.c.l.b16 %v1748
  %v2041 = vunpack.c.l.b16 %v1749
  %v2042 = vunpack.c.l.b16 %v1750
  %v2043 = vunpack.c.l.b16 %v1751
  %v2044 = vunpack.c.l.b16 %v1752
  %v2045 = vunpack.c.l.b16 %v1753
  %v2046 = vunpack.c.l.b16 %v1754
  %v2047 = vunpack.c.l.b16 %v1755
  %v2048 = vunpack.c.l.b16 %v1756
  %v2049 = vunpack.c.l.b16 %v1757
  %v2050 = vunpack.c.l.b16 %v1758
  %v2051 = vunpack.c.l.b16 %v1759
  %v2052 = vunpack.c.l.b16 %v1760
  %v2053 = vunpack.c.l.b16 %v1761
  %v2054 = vunpack.c.l.b16 %v1762
  %v2055 = vunpack.c.l.b16 %v1763
  %v2056 = vunpack.c.l.b16 %v1764
  %v2057 = vunpack.c.l.b16 %v1765
  %v2058 = vunpack.c.l.b16 %v1766
  %v2059 = vunpack.c.l.b16 %v1767
  %v2060 = vunpack.c.l.b16 %v1768
  %v2061 = vunpack.c.l.b16 %v1769
  %v2062 = vunpack.c.l.b16 %v1770
  %v2063 = vunpack.c.l.b16 %v1771
  %v2064 = vunpack.c.l.b16 %v1772
  %v2065 = vunpack.c.l.b16 %v1773
  %v2066 = vunpack.c.l.b16 %v1774
  %v2067 = vunpack.c.l.b16 %v1775
  %v2068 = vunpack.c.l.b16 %v1776
  %v2069 = vunpack.c.l.b16 %v1777
  %v2070 = vunpack.c.l.b16 %v1778
  %v2071 = vunpack.c.l.b16 %v1779
  %v2072 = vunpack.c.l.b16 %v1780
  %v2073 = vunpack.c.l.b16 %v1781
  %v2074 = vunpack.c.l.b16 %v1782
  %v2075 = vunpack.c.l.b16 %v1783
  %v2076 = vunpack.c.l.b16 %v1784
  %v2077 = vunpack.c.l.b16 %v1785
  %v2078 = vunpack.c.l.b16 %v1786
  %v2079 = vunpack.c.l.b16 %v1787
  %v2080 = vunpack.c.l.b16 %v1788
  %v2081 = vunpack.c.l.b16 %v1789
  %v2082 = vunpack.c.l.b16 %v1790
  %v2083 = vunpack.c.l.b16 %v1791
  %v2084 = vunpack.c.l.b16 %v1792
  %v2085 = vunpack.c.l.b16 %v1793
  %v2086 = vunpack.c.l.b16 %v1794
  %v2087 = vunpack.c.l.b16 %v1795
  %v2088 = vunpack.c.l.b16 %v1796
  %v2089 = vunpack.c.l.b16 %v1797
  %v2090 = vunpack.c.l.b16 %v1798
  %v2091 = vunpack.c.l.b16 %v1799
  %v2092 = vunpack.c.l.b16 %v1800
  %v2093 = vunpack.c.l.b16 %v1801
  %v2094 = vunpack.c.l.b16 %v1802
  %v2095 = vunpack.c.l.b16 %v1803
  %v2096 = vunpack.c.l.b16 %v1804
  %v2097 = vunpack.c.l.b16 %v1805
  %v2098 = vunpack.c.l.b16 %v1806
  %v2099 = vunpack.c.l.b16 %v1807
  %v2100 = vunpack.c.l.b16 %v1808
  %v2101 = vunpack.c.l.b16 %v1809
  %v2102 = vunpack.c.l.b16 %v1810
  %v2103 = vunpack.c.l.b16 %v1811
  %v2104 = vunpack.c.l.b16 %v1812
  %v2105 = vunpack.c.l.b16 %v1813
  %v2106 = vunpack.c.l.b16 %v1814
  %v2107 = vunpack.c.l.b16 %v1815
  %v2108 = vunpack.c.l.b16 %v1816
  %v2109 = vunpack.c.l.b16 %v1817
  %v2110 = vunpack.c.l.b16 %v1818
  %v2111 = vunpack.c.l.b16 %v1819
  %v2112 = vunpack.c.l.b16 %v1820
  %v2113 = vunpack.c.l.b16 %v1821
  %v2114 = vunpack.c.l.b16 %v1822
  %v2115 = vunpack.c.l.b16 %v1823
  %v2116 = vunpack.c.l.b16 %v1824
  %v2117 = vunpack.c.l.b16 %v1825
  %v2118 = vunpack.c.l.b16 %v1826
  %v2119 = vunpack.c.l.b16 %v1827
  %v2120 = vunpack.c.l.b16 %v1828
  %v2121 = vunpack.c.l.b16 %v1829
  %v2122 = vunpack.c.l.b16 %v1830
  %v2123 = vunpack.c.l.b16 %v1831
  %v2124 = vunpack.c.l.b16 %v1832
  %v2125 = vunpack.c.l.b16 %v1833
  %v2126 = vunpack.c.l.b16 %v1834
  %v2127 = vunpack.c.l.b16 %v1835
  %v2128 = vunpack.c.l.b16 %v1836
  %v2129 = vunpack.c.l.b16 %v1837
  %v2130 = vunpack.c.l.b16 %v1838
  %v2131 = vunpack.c.l.b16 %v1839
  %v2132 = vunpack.c.l.b16 %v1840
  %v2133 = vunpack.c.l.b16 %v1841
  %v2134 = vunpack.c.l.b16 %v1842
  %v2135 = vunpack.c.l.b16 %v1843
  %v2136 = vunpack.c.l.b16 %v1844
  %v2137 = vunpack.c.l.b16 %v1845
  %v2138 = vpack.c.b16 %v1995, %v1994
  %v2139 = vpack.c.b16 %v1997, %v1996
  %v2140 = vpack.c.b16 %v1999, %v1998
  %v2141 = vpack.c.b16 %v2001, %v2000
  %v2142 = vpack.c.b16 %v2003, %v2002
  %v2143 = vpack.c.b16 %v2005, %v2004
  %v2144 = vpack.c.b16 %v2007, %v2006
  %v2145 = vpack.c.b16 %v2009, %v2008
  %v2146 = vpack.c.b16 %v2011, %v2010
  %v2147 = vpack.c.b16 %v2013, %v2012
  %v2148 = vpack.c.b16 %v2015, %v2014
  %v2149 = vpack.c.b16 %v2017, %v2016
  %v2150 = vpack.c.b16 %v2019, %v2018
  %v2151 = vpack.c.b16 %v2021, %v2020
  %v2152 = vpack.c.b16 %v2023, %v2022
  %v2153 = vpack.c.b16 %v2025, %v2024
  %v2154 = vpack.c.b16 %v2027, %v2026
  %v2155 = vpack.c.b16 %v2029, %v2028
  %v2156 = vpack.c.b16 %v2031, %v2030
  %v2157 = vpack.c.b16 %v2033, %v2032
  %v2158 = vpack.c.b16 %v2035, %v2034
  %v2159 = vpack.c.b16 %v2037, %v2036
  %v2160 = vpack.c.b16 %v2039, %v2038
  %v2161 = vpack.c.b16 %v2041, %v2040
  %v2162 = vpack.c.b16 %v2043, %v2042
  %v2163 = vpack.c.b16 %v2045, %v2044
  %v2164 = vpack.c.b16 %v2047, %v2046
  %v2165 = vpack.c.b16 %v2049, %v2048
  %v2166 = vpack.c.b16 %v2051, %v2050
  %v2167 = vpack.c.b16 %v2053, %v2052
  %v2168 = vpack.c.b16 %v2055, %v2054
  %v2169 = vpack.c.b16 %v2057, %v2056
  %v2170 = vpack.c.b16 %v2059, %v2058
  %v2171 = vpack.c.b16 %v2061, %v2060
  %v2172 = vpack.c.b16 %v2063, %v2062
  %v2173 = vpack.c.b16 %v2065, %v2064
  %v2174 = vpack.c.b16 %v2067, %v2066
  %v2175 = vpack.c.b16 %v2069, %v2068
  %v2176 = vpack.c.b16 %v2071, %v2070
  %v2177 = vpack.c.b16 %v2073, %v2072
  %v2178 = vpack.c.b16 %v2075, %v2074
  %v2179 = vpack.c.b16 %v2077, %v2076
  %v2180 = vpack.c.b16 %v2079, %v2078
  %v2181 = vpack.c.b16 %v2081, %v2080
  %v2182 = vpack.c.b16 %v2083, %v2082
  %v2183 = vpack.c.b16 %v2085, %v2084
  %v2184 = vpack.c.b16 %v2087, %v2086
  %v2185 = vpack.c.b16 %v2089, %v2088
  %v2186 = vpack.c.b16 %v2091, %v2090
  %v2187 = vpack.c.b16 %v2093, %v2092
  %v2188 = vpack.c.b16 %v2095, %v2094
  %v2189 = vpack.c.b16 %v2097, %v2096
  %v2190 = vpack.c.b16 %v2099, %v2098
  %v2191 = vpack.c.b16 %v2101, %v2100
  %v2192 = vpack.c.b16 %v2103, %v2102
  %v2193 = vpack.c.b16 %v2105, %v2104
  %v2194 = vpack.c.b16 %v2107, %v2106
  %v2195 = vpack.c.b16 %v2109, %v2108
  %v2196 = vpack.c.b16 %v2111, %v2110
  %v2197 = vpack.c.b16 %v2113, %v2112
  %v2198 = vpack.c.b16 %v2115, %v2114
  %v2199 = vpack.c.b16 %v2117, %v2116
  %v2200 = vpack.c.b16 %v2119, %v2118
  %v2201 = vpack.c.b16 %v2121, %v2120
  %v2202 = vpack.c.b16 %v2123, %v2122
  %v2203 = vpack.c.b16 %v2125, %v2124
  %v2204 = vpack.c.b16 %v2127, %v2126
  %v2205 = vpack.c.b16 %v2129, %v2128
  %v2206 = vpack.c.b16 %v2131, %v2130
  %v2207 = vpack.c.b16 %v2133, %v2132
  %v2208 = vpack.c.b16 %v2135, %v2134
  %v2209 = vpack.c.b16 %v2137, %v2136
  %2282 = vmatprep.subr.bf16.mxu0 0
  %2283 = vmatpush1.bf16.msra.mxu0 %v2145
  %2284 = vmatprep.subr.bf16.mxu0 0
  %2285 = vmatpush1.bf16.msra.mxu0 %v2144
  %2286 = vmatprep.subr.bf16.mxu0 0
  %2287 = vmatpush1.bf16.msra.mxu0 %v2143
  %2288 = vmatprep.subr.bf16.mxu0 0
  %2289 = vmatpush1.bf16.msra.mxu0 %v2142
  %2290 = vmatprep.subr.bf16.mxu0 0
  %2291 = vmatpush1.bf16.msra.mxu0 %v2141
  %2292 = vmatprep.subr.bf16.mxu0 0
  %2293 = vmatpush1.bf16.msra.mxu0 %v2140
  %2294 = vmatprep.subr.bf16.mxu0 0
  %2295 = vmatpush1.bf16.msra.mxu0 %v2139
  %2296 = vmatprep.subr.bf16.mxu0 0
  %2297 = vmatpush1.bf16.msra.mxu0 %v2138
  %2298 = vmatprep.subr.bf16.mxu0 0
  %2299 = vmatpush2.bf16.msra.mxu0 %v2153
  %2300 = vmatprep.subr.bf16.mxu0 0
  %2301 = vmatpush2.bf16.msra.mxu0 %v2152
  %2302 = vmatprep.subr.bf16.mxu0 0
  %2303 = vmatpush2.bf16.msra.mxu0 %v2151
  %2304 = vmatprep.subr.bf16.mxu0 0
  %2305 = vmatpush2.bf16.msra.mxu0 %v2150
  %2306 = vmatprep.subr.bf16.mxu0 0
  %2307 = vmatpush2.bf16.msra.mxu0 %v2149
  %2308 = vmatprep.subr.bf16.mxu0 0
  %2309 = vmatpush2.bf16.msra.mxu0 %v2148
  %2310 = vmatprep.subr.bf16.mxu0 0
  %2311 = vmatpush2.bf16.msra.mxu0 %v2147
  %2312 = vmatprep.subr.bf16.mxu0 0
  %2313 = vmatpush2.bf16.msra.mxu0 %v2146
  %2314 = vmatprep.mubr.bf16.mxu0 %v1667
  %2315 = vmatmul.mubr.bf16.gmra.mxu0 %v1666
  %v2316 = vpop.f32.mrf.mxu0
  %v2317 = vadd.f32 %v1849, %v2316
  %v2318 = vpop.f32.mrf.mxu0
  %v2319 = vpop.f32.mrf.mxu0
  %v2320 = vadd.f32 %v1849, %v2319
  %v2321 = vpop.f32.mrf.mxu0
  %2322 = vmatprep.mubr.bf16.mxu0 %v1668
  %2323 = vmatmul.mubr.bf16.gmra.mxu0 %v1667
  %v2324 = vpop.f32.mrf.mxu0
  %v2325 = vadd.f32 %v1849, %v2324
  %v2326 = vpop.f32.mrf.mxu0
  %v2327 = vpop.f32.mrf.mxu0
  %v2328 = vadd.f32 %v1849, %v2327
  %v2329 = vpop.f32.mrf.mxu0
  %2330 = vmatprep.mubr.bf16.mxu0 %v1669
  %2331 = vmatmul.mubr.bf16.gmra.mxu0 %v1668
  %v2332 = vpop.f32.mrf.mxu0
  %v2333 = vadd.f32 %v1849, %v2332
  %v2334 = vpop.f32.mrf.mxu0
  %v2335 = vpop.f32.mrf.mxu0
  %v2336 = vadd.f32 %v1849, %v2335
  %v2337 = vpop.f32.mrf.mxu0
  %2338 = vmatprep.mubr.bf16.mxu0 %v1670
  %2339 = vmatmul.mubr.bf16.gmra.mxu0 %v1669
  %v2340 = vpop.f32.mrf.mxu0
  %v2341 = vadd.f32 %v1849, %v2340
  %v2342 = vpop.f32.mrf.mxu0
  %v2343 = vpop.f32.mrf.mxu0
  %v2344 = vadd.f32 %v1849, %v2343
  %v2345 = vpop.f32.mrf.mxu0
  %2346 = vmatprep.mubr.bf16.mxu0 %v1673
  %2347 = vmatmul.mubr.bf16.gmra.mxu0 %v1672
  %v2348 = vpop.f32.mrf.mxu0
  %v2349 = vadd.f32 %v1849, %v2348
  %v2350 = vpop.f32.mrf.mxu0
  %v2351 = vpop.f32.mrf.mxu0
  %v2352 = vadd.f32 %v1849, %v2351
  %v2353 = vpop.f32.mrf.mxu0
  %2354 = vmatprep.mubr.bf16.mxu0 %v1674
  %2355 = vmatmul.mubr.bf16.gmra.mxu0 %v1673
  %v2356 = vpop.f32.mrf.mxu0
  %v2357 = vadd.f32 %v1849, %v2356
  %v2358 = vpop.f32.mrf.mxu0
  %v2359 = vpop.f32.mrf.mxu0
  %v2360 = vadd.f32 %v1849, %v2359
  %v2361 = vpop.f32.mrf.mxu0
  %2362 = vmatprep.mubr.bf16.mxu0 %v1675
  %2363 = vmatmul.mubr.bf16.gmra.mxu0 %v1674
  %v2364 = vpop.f32.mrf.mxu0
  %v2365 = vadd.f32 %v1849, %v2364
  %v2366 = vpop.f32.mrf.mxu0
  %v2367 = vpop.f32.mrf.mxu0
  %v2368 = vadd.f32 %v1849, %v2367
  %v2369 = vpop.f32.mrf.mxu0
  %2370 = vmatprep.mubr.bf16.mxu0 %v1676
  %2371 = vmatmul.mubr.bf16.gmra.mxu0 %v1675
  %v2372 = vpop.f32.mrf.mxu0
  %v2373 = vadd.f32 %v1849, %v2372
  %v2374 = vpop.f32.mrf.mxu0
  %v2375 = vpop.f32.mrf.mxu0
  %v2376 = vadd.f32 %v1849, %v2375
  %v2377 = vpop.f32.mrf.mxu0
  %2378 = vmatprep.mubr.bf16.mxu0 %v1679
  %2379 = vmatmul.mubr.bf16.gmra.mxu0 %v1678
  %v2380 = vpop.f32.mrf.mxu0
  %v2381 = vadd.f32 %v1849, %v2380
  %v2382 = vpop.f32.mrf.mxu0
  %v2383 = vpop.f32.mrf.mxu0
  %v2384 = vadd.f32 %v1849, %v2383
  %v2385 = vpop.f32.mrf.mxu0
  %2386 = vmatprep.mubr.bf16.mxu0 %v1680
  %2387 = vmatmul.mubr.bf16.gmra.mxu0 %v1679
  %v2388 = vpop.f32.mrf.mxu0
  %v2389 = vadd.f32 %v1849, %v2388
  %v2390 = vpop.f32.mrf.mxu0
  %v2391 = vpop.f32.mrf.mxu0
  %v2392 = vadd.f32 %v1849, %v2391
  %v2393 = vpop.f32.mrf.mxu0
  %2394 = vmatprep.mubr.bf16.mxu0 %v1681
  %2395 = vmatmul.mubr.bf16.gmra.mxu0 %v1680
  %v2396 = vpop.f32.mrf.mxu0
  %v2397 = vadd.f32 %v1849, %v2396
  %v2398 = vpop.f32.mrf.mxu0
  %v2399 = vpop.f32.mrf.mxu0
  %v2400 = vadd.f32 %v1849, %v2399
  %v2401 = vpop.f32.mrf.mxu0
  %2402 = vmatprep.mubr.bf16.mxu0 %v1682
  %2403 = vmatmul.mubr.bf16.gmra.mxu0 %v1681
  %v2404 = vpop.f32.mrf.mxu0
  %v2405 = vadd.f32 %v1849, %v2404
  %v2406 = vpop.f32.mrf.mxu0
  %v2407 = vpop.f32.mrf.mxu0
  %v2408 = vadd.f32 %v1849, %v2407
  %v2409 = vpop.f32.mrf.mxu0
  %2410 = vmatprep.mubr.bf16.mxu0 %v1685
  %2411 = vmatmul.mubr.bf16.gmra.mxu0 %v1684
  %v2412 = vpop.f32.mrf.mxu0
  %v2413 = vadd.f32 %v1849, %v2412
  %v2414 = vpop.f32.mrf.mxu0
  %v2415 = vpop.f32.mrf.mxu0
  %v2416 = vadd.f32 %v1849, %v2415
  %v2417 = vpop.f32.mrf.mxu0
  %2418 = vmatprep.mubr.bf16.mxu0 %v1686
  %2419 = vmatmul.mubr.bf16.gmra.mxu0 %v1685
  %v2420 = vpop.f32.mrf.mxu0
  %v2421 = vadd.f32 %v1849, %v2420
  %v2422 = vpop.f32.mrf.mxu0
  %v2423 = vpop.f32.mrf.mxu0
  %v2424 = vadd.f32 %v1849, %v2423
  %v2425 = vpop.f32.mrf.mxu0
  %2426 = vmatprep.mubr.bf16.mxu0 %v1687
  %2427 = vmatmul.mubr.bf16.gmra.mxu0 %v1686
  %v2428 = vpop.f32.mrf.mxu0
  %v2429 = vadd.f32 %v1849, %v2428
  %v2430 = vpop.f32.mrf.mxu0
  %v2431 = vpop.f32.mrf.mxu0
  %v2432 = vadd.f32 %v1849, %v2431
  %v2433 = vpop.f32.mrf.mxu0
  %2434 = vmatprep.mubr.bf16.mxu0 %v1688
  %2435 = vmatmul.mubr.bf16.gmra.mxu0 %v1687
  %v2436 = vpop.f32.mrf.mxu0
  %v2437 = vadd.f32 %v1849, %v2436
  %v2438 = vpop.f32.mrf.mxu0
  %v2439 = vpop.f32.mrf.mxu0
  %v2440 = vadd.f32 %v1849, %v2439
  %v2441 = vpop.f32.mrf.mxu0
  %2442 = vdwg.mxu0
  %2443 = vmatprep.subr.bf16.mxu0 0
  %2444 = vmatpush1.bf16.msra.mxu0 %v2161
  %2445 = vmatprep.subr.bf16.mxu0 0
  %2446 = vmatpush1.bf16.msra.mxu0 %v2160
  %2447 = vmatprep.subr.bf16.mxu0 0
  %2448 = vmatpush1.bf16.msra.mxu0 %v2159
  %2449 = vmatprep.subr.bf16.mxu0 0
  %2450 = vmatpush1.bf16.msra.mxu0 %v2158
  %2451 = vmatprep.subr.bf16.mxu0 0
  %2452 = vmatpush1.bf16.msra.mxu0 %v2157
  %2453 = vmatprep.subr.bf16.mxu0 0
  %2454 = vmatpush1.bf16.msra.mxu0 %v2156
  %2455 = vmatprep.subr.bf16.mxu0 0
  %2456 = vmatpush1.bf16.msra.mxu0 %v2155
  %2457 = vmatprep.subr.bf16.mxu0 0
  %2458 = vmatpush1.bf16.msra.mxu0 %v2154
  %2459 = vmatprep.subr.bf16.mxu0 0
  %2460 = vmatpush2.bf16.msra.mxu0 %v2169
  %2461 = vmatprep.subr.bf16.mxu0 0
  %2462 = vmatpush2.bf16.msra.mxu0 %v2168
  %2463 = vmatprep.subr.bf16.mxu0 0
  %2464 = vmatpush2.bf16.msra.mxu0 %v2167
  %2465 = vmatprep.subr.bf16.mxu0 0
  %2466 = vmatpush2.bf16.msra.mxu0 %v2166
  %2467 = vmatprep.subr.bf16.mxu0 0
  %2468 = vmatpush2.bf16.msra.mxu0 %v2165
  %2469 = vmatprep.subr.bf16.mxu0 0
  %2470 = vmatpush2.bf16.msra.mxu0 %v2164
  %2471 = vmatprep.subr.bf16.mxu0 0
  %2472 = vmatpush2.bf16.msra.mxu0 %v2163
  %2473 = vmatprep.subr.bf16.mxu0 0
  %2474 = vmatpush2.bf16.msra.mxu0 %v2162
  %2475 = vmatprep.mubr.bf16.mxu0 %v1672
  %2476 = vmatmul.mubr.bf16.gmra.mxu0 %v1668
  %v2477 = vpop.f32.mrf.mxu0
  %v2478 = vadd.f32 %v2317, %v2477
  %v2479 = vpop.f32.mrf.mxu0
  %v2480 = vpop.f32.mrf.mxu0
  %v2481 = vadd.f32 %v2320, %v2480
  %v2482 = vpop.f32.mrf.mxu0
  %2483 = vmatprep.mubr.bf16.mxu0 %v1673
  %2484 = vmatmul.mubr.bf16.gmra.mxu0 %v1669
  %v2485 = vpop.f32.mrf.mxu0
  %v2486 = vadd.f32 %v2325, %v2485
  %v2487 = vpop.f32.mrf.mxu0
  %v2488 = vpop.f32.mrf.mxu0
  %v2489 = vadd.f32 %v2328, %v2488
  %v2490 = vpop.f32.mrf.mxu0
  %2491 = vmatprep.mubr.bf16.mxu0 %v1674
  %2492 = vmatmul.mubr.bf16.gmra.mxu0 %v1670
  %v2493 = vpop.f32.mrf.mxu0
  %v2494 = vadd.f32 %v2333, %v2493
  %v2495 = vpop.f32.mrf.mxu0
  %v2496 = vpop.f32.mrf.mxu0
  %v2497 = vadd.f32 %v2336, %v2496
  %v2498 = vpop.f32.mrf.mxu0
  %2499 = vmatprep.mubr.bf16.mxu0 %v1675
  %2500 = vmatmul.mubr.bf16.gmra.mxu0 %v1671
  %v2501 = vpop.f32.mrf.mxu0
  %v2502 = vadd.f32 %v2341, %v2501
  %v2503 = vpop.f32.mrf.mxu0
  %v2504 = vpop.f32.mrf.mxu0
  %v2505 = vadd.f32 %v2344, %v2504
  %v2506 = vpop.f32.mrf.mxu0
  %2507 = vmatprep.mubr.bf16.mxu0 %v1678
  %2508 = vmatmul.mubr.bf16.gmra.mxu0 %v1674
  %v2509 = vpop.f32.mrf.mxu0
  %v2510 = vadd.f32 %v2349, %v2509
  %v2511 = vpop.f32.mrf.mxu0
  %v2512 = vpop.f32.mrf.mxu0
  %v2513 = vadd.f32 %v2352, %v2512
  %v2514 = vpop.f32.mrf.mxu0
  %2515 = vmatprep.mubr.bf16.mxu0 %v1679
  %2516 = vmatmul.mubr.bf16.gmra.mxu0 %v1675
  %v2517 = vpop.f32.mrf.mxu0
  %v2518 = vadd.f32 %v2357, %v2517
  %v2519 = vpop.f32.mrf.mxu0
  %v2520 = vpop.f32.mrf.mxu0
  %v2521 = vadd.f32 %v2360, %v2520
  %v2522 = vpop.f32.mrf.mxu0
  %2523 = vmatprep.mubr.bf16.mxu0 %v1680
  %2524 = vmatmul.mubr.bf16.gmra.mxu0 %v1676
  %v2525 = vpop.f32.mrf.mxu0
  %v2526 = vadd.f32 %v2365, %v2525
  %v2527 = vpop.f32.mrf.mxu0
  %v2528 = vpop.f32.mrf.mxu0
  %v2529 = vadd.f32 %v2368, %v2528
  %v2530 = vpop.f32.mrf.mxu0
  %2531 = vmatprep.mubr.bf16.mxu0 %v1681
  %2532 = vmatmul.mubr.bf16.gmra.mxu0 %v1677
  %v2533 = vpop.f32.mrf.mxu0
  %v2534 = vadd.f32 %v2373, %v2533
  %v2535 = vpop.f32.mrf.mxu0
  %v2536 = vpop.f32.mrf.mxu0
  %v2537 = vadd.f32 %v2376, %v2536
  %v2538 = vpop.f32.mrf.mxu0
  %2539 = vmatprep.mubr.bf16.mxu0 %v1684
  %2540 = vmatmul.mubr.bf16.gmra.mxu0 %v1680
  %v2541 = vpop.f32.mrf.mxu0
  %v2542 = vadd.f32 %v2381, %v2541
  %v2543 = vpop.f32.mrf.mxu0
  %v2544 = vpop.f32.mrf.mxu0
  %v2545 = vadd.f32 %v2384, %v2544
  %v2546 = vpop.f32.mrf.mxu0
  %2547 = vmatprep.mubr.bf16.mxu0 %v1685
  %2548 = vmatmul.mubr.bf16.gmra.mxu0 %v1681
  %v2549 = vpop.f32.mrf.mxu0
  %v2550 = vadd.f32 %v2389, %v2549
  %v2551 = vpop.f32.mrf.mxu0
  %v2552 = vpop.f32.mrf.mxu0
  %v2553 = vadd.f32 %v2392, %v2552
  %v2554 = vpop.f32.mrf.mxu0
  %2555 = vmatprep.mubr.bf16.mxu0 %v1686
  %2556 = vmatmul.mubr.bf16.gmra.mxu0 %v1682
  %v2557 = vpop.f32.mrf.mxu0
  %v2558 = vadd.f32 %v2397, %v2557
  %v2559 = vpop.f32.mrf.mxu0
  %v2560 = vpop.f32.mrf.mxu0
  %v2561 = vadd.f32 %v2400, %v2560
  %v2562 = vpop.f32.mrf.mxu0
  %2563 = vmatprep.mubr.bf16.mxu0 %v1687
  %2564 = vmatmul.mubr.bf16.gmra.mxu0 %v1683
  %v2565 = vpop.f32.mrf.mxu0
  %v2566 = vadd.f32 %v2405, %v2565
  %v2567 = vpop.f32.mrf.mxu0
  %v2568 = vpop.f32.mrf.mxu0
  %v2569 = vadd.f32 %v2408, %v2568
  %v2570 = vpop.f32.mrf.mxu0
  %2571 = vmatprep.mubr.bf16.mxu0 %v1690
  %2572 = vmatmul.mubr.bf16.gmra.mxu0 %v1686
  %v2573 = vpop.f32.mrf.mxu0
  %v2574 = vadd.f32 %v2413, %v2573
  %v2575 = vpop.f32.mrf.mxu0
  %v2576 = vpop.f32.mrf.mxu0
  %v2577 = vadd.f32 %v2416, %v2576
  %v2578 = vpop.f32.mrf.mxu0
  %2579 = vmatprep.mubr.bf16.mxu0 %v1691
  %2580 = vmatmul.mubr.bf16.gmra.mxu0 %v1687
  %v2581 = vpop.f32.mrf.mxu0
  %v2582 = vadd.f32 %v2421, %v2581
  %v2583 = vpop.f32.mrf.mxu0
  %v2584 = vpop.f32.mrf.mxu0
  %v2585 = vadd.f32 %v2424, %v2584
  %v2586 = vpop.f32.mrf.mxu0
  %2587 = vmatprep.mubr.bf16.mxu0 %v1692
  %2588 = vmatmul.mubr.bf16.gmra.mxu0 %v1688
  %v2589 = vpop.f32.mrf.mxu0
  %v2590 = vadd.f32 %v2429, %v2589
  %v2591 = vpop.f32.mrf.mxu0
  %v2592 = vpop.f32.mrf.mxu0
  %v2593 = vadd.f32 %v2432, %v2592
  %v2594 = vpop.f32.mrf.mxu0
  %2595 = vmatprep.mubr.bf16.mxu0 %v1693
  %2596 = vmatmul.mubr.bf16.gmra.mxu0 %v1689
  %v2597 = vpop.f32.mrf.mxu0
  %v2598 = vadd.f32 %v2437, %v2597
  %v2599 = vpop.f32.mrf.mxu0
  %v2600 = vpop.f32.mrf.mxu0
  %v2601 = vadd.f32 %v2440, %v2600
  %v2602 = vpop.f32.mrf.mxu0
  %2603 = vdwg.mxu0
  %2604 = vmatprep.subr.bf16.mxu0 0
  %2605 = vmatpush1.bf16.msra.mxu0 %v2177
  %2606 = vmatprep.subr.bf16.mxu0 0
  %2607 = vmatpush1.bf16.msra.mxu0 %v2176
  %2608 = vmatprep.subr.bf16.mxu0 0
  %2609 = vmatpush1.bf16.msra.mxu0 %v2175
  %2610 = vmatprep.subr.bf16.mxu0 0
  %2611 = vmatpush1.bf16.msra.mxu0 %v2174
  %2612 = vmatprep.subr.bf16.mxu0 0
  %2613 = vmatpush1.bf16.msra.mxu0 %v2173
  %2614 = vmatprep.subr.bf16.mxu0 0
  %2615 = vmatpush1.bf16.msra.mxu0 %v2172
  %2616 = vmatprep.subr.bf16.mxu0 0
  %2617 = vmatpush1.bf16.msra.mxu0 %v2171
  %2618 = vmatprep.subr.bf16.mxu0 0
  %2619 = vmatpush1.bf16.msra.mxu0 %v2170
  %2620 = vmatprep.subr.bf16.mxu0 0
  %2621 = vmatpush2.bf16.msra.mxu0 %v2185
  %2622 = vmatprep.subr.bf16.mxu0 0
  %2623 = vmatpush2.bf16.msra.mxu0 %v2184
  %2624 = vmatprep.subr.bf16.mxu0 0
  %2625 = vmatpush2.bf16.msra.mxu0 %v2183
  %2626 = vmatprep.subr.bf16.mxu0 0
  %2627 = vmatpush2.bf16.msra.mxu0 %v2182
  %2628 = vmatprep.subr.bf16.mxu0 0
  %2629 = vmatpush2.bf16.msra.mxu0 %v2181
  %2630 = vmatprep.subr.bf16.mxu0 0
  %2631 = vmatpush2.bf16.msra.mxu0 %v2180
  %2632 = vmatprep.subr.bf16.mxu0 0
  %2633 = vmatpush2.bf16.msra.mxu0 %v2179
  %2634 = vmatprep.subr.bf16.mxu0 0
  %2635 = vmatpush2.bf16.msra.mxu0 %v2178
  %2636 = vmatprep.mubr.bf16.mxu0 %v1674
  %2637 = vmatmul.mubr.bf16.gmra.mxu0 %v1673
  %v2638 = vpop.f32.mrf.mxu0
  %v2639 = vadd.f32 %v2478, %v2638
  %v2640 = vpop.f32.mrf.mxu0
  %v2641 = vpop.f32.mrf.mxu0
  %v2642 = vadd.f32 %v2481, %v2641
  %v2643 = vpop.f32.mrf.mxu0
  %2644 = vmatprep.mubr.bf16.mxu0 %v1675
  %2645 = vmatmul.mubr.bf16.gmra.mxu0 %v1674
  %v2646 = vpop.f32.mrf.mxu0
  %v2647 = vadd.f32 %v2486, %v2646
  %v2648 = vpop.f32.mrf.mxu0
  %v2649 = vpop.f32.mrf.mxu0
  %v2650 = vadd.f32 %v2489, %v2649
  %v2651 = vpop.f32.mrf.mxu0
  %2652 = vmatprep.mubr.bf16.mxu0 %v1676
  %2653 = vmatmul.mubr.bf16.gmra.mxu0 %v1675
  %v2654 = vpop.f32.mrf.mxu0
  %v2655 = vadd.f32 %v2494, %v2654
  %v2656 = vpop.f32.mrf.mxu0
  %v2657 = vpop.f32.mrf.mxu0
  %v2658 = vadd.f32 %v2497, %v2657
  %v2659 = vpop.f32.mrf.mxu0
  %2660 = vmatprep.mubr.bf16.mxu0 %v1677
  %2661 = vmatmul.mubr.bf16.gmra.mxu0 %v1676
  %v2662 = vpop.f32.mrf.mxu0
  %v2663 = vadd.f32 %v2502, %v2662
  %v2664 = vpop.f32.mrf.mxu0
  %v2665 = vpop.f32.mrf.mxu0
  %v2666 = vadd.f32 %v2505, %v2665
  %v2667 = vpop.f32.mrf.mxu0
  %2668 = vmatprep.mubr.bf16.mxu0 %v1680
  %2669 = vmatmul.mubr.bf16.gmra.mxu0 %v1679
  %v2670 = vpop.f32.mrf.mxu0
  %v2671 = vadd.f32 %v2510, %v2670
  %v2672 = vpop.f32.mrf.mxu0
  %v2673 = vpop.f32.mrf.mxu0
  %v2674 = vadd.f32 %v2513, %v2673
  %v2675 = vpop.f32.mrf.mxu0
  %2676 = vmatprep.mubr.bf16.mxu0 %v1681
  %2677 = vmatmul.mubr.bf16.gmra.mxu0 %v1680
  %v2678 = vpop.f32.mrf.mxu0
  %v2679 = vadd.f32 %v2518, %v2678
  %v2680 = vpop.f32.mrf.mxu0
  %v2681 = vpop.f32.mrf.mxu0
  %v2682 = vadd.f32 %v2521, %v2681
  %v2683 = vpop.f32.mrf.mxu0
  %2684 = vmatprep.mubr.bf16.mxu0 %v1682
  %2685 = vmatmul.mubr.bf16.gmra.mxu0 %v1681
  %v2686 = vpop.f32.mrf.mxu0
  %v2687 = vadd.f32 %v2526, %v2686
  %v2688 = vpop.f32.mrf.mxu0
  %v2689 = vpop.f32.mrf.mxu0
  %v2690 = vadd.f32 %v2529, %v2689
  %v2691 = vpop.f32.mrf.mxu0
  %2692 = vmatprep.mubr.bf16.mxu0 %v1683
  %2693 = vmatmul.mubr.bf16.gmra.mxu0 %v1682
  %v2694 = vpop.f32.mrf.mxu0
  %v2695 = vadd.f32 %v2534, %v2694
  %v2696 = vpop.f32.mrf.mxu0
  %v2697 = vpop.f32.mrf.mxu0
  %v2698 = vadd.f32 %v2537, %v2697
  %v2699 = vpop.f32.mrf.mxu0
  %2700 = vmatprep.mubr.bf16.mxu0 %v1686
  %2701 = vmatmul.mubr.bf16.gmra.mxu0 %v1685
  %v2702 = vpop.f32.mrf.mxu0
  %v2703 = vadd.f32 %v2542, %v2702
  %v2704 = vpop.f32.mrf.mxu0
  %v2705 = vpop.f32.mrf.mxu0
  %v2706 = vadd.f32 %v2545, %v2705
  %v2707 = vpop.f32.mrf.mxu0
  %2708 = vmatprep.mubr.bf16.mxu0 %v1687
  %2709 = vmatmul.mubr.bf16.gmra.mxu0 %v1686
  %v2710 = vpop.f32.mrf.mxu0
  %v2711 = vadd.f32 %v2550, %v2710
  %v2712 = vpop.f32.mrf.mxu0
  %v2713 = vpop.f32.mrf.mxu0
  %v2714 = vadd.f32 %v2553, %v2713
  %v2715 = vpop.f32.mrf.mxu0
  %2716 = vmatprep.mubr.bf16.mxu0 %v1688
  %2717 = vmatmul.mubr.bf16.gmra.mxu0 %v1687
  %v2718 = vpop.f32.mrf.mxu0
  %v2719 = vadd.f32 %v2558, %v2718
  %v2720 = vpop.f32.mrf.mxu0
  %v2721 = vpop.f32.mrf.mxu0
  %v2722 = vadd.f32 %v2561, %v2721
  %v2723 = vpop.f32.mrf.mxu0
  %2724 = vmatprep.mubr.bf16.mxu0 %v1689
  %2725 = vmatmul.mubr.bf16.gmra.mxu0 %v1688
  %v2726 = vpop.f32.mrf.mxu0
  %v2727 = vadd.f32 %v2566, %v2726
  %v2728 = vpop.f32.mrf.mxu0
  %v2729 = vpop.f32.mrf.mxu0
  %v2730 = vadd.f32 %v2569, %v2729
  %v2731 = vpop.f32.mrf.mxu0
  %2732 = vmatprep.mubr.bf16.mxu0 %v1692
  %2733 = vmatmul.mubr.bf16.gmra.mxu0 %v1691
  %v2734 = vpop.f32.mrf.mxu0
  %v2735 = vadd.f32 %v2574, %v2734
  %v2736 = vpop.f32.mrf.mxu0
  %v2737 = vpop.f32.mrf.mxu0
  %v2738 = vadd.f32 %v2577, %v2737
  %v2739 = vpop.f32.mrf.mxu0
  %2740 = vmatprep.mubr.bf16.mxu0 %v1693
  %2741 = vmatmul.mubr.bf16.gmra.mxu0 %v1692
  %v2742 = vpop.f32.mrf.mxu0
  %v2743 = vadd.f32 %v2582, %v2742
  %v2744 = vpop.f32.mrf.mxu0
  %v2745 = vpop.f32.mrf.mxu0
  %v2746 = vadd.f32 %v2585, %v2745
  %v2747 = vpop.f32.mrf.mxu0
  %2748 = vmatprep.mubr.bf16.mxu0 %v1694
  %2749 = vmatmul.mubr.bf16.gmra.mxu0 %v1693
  %v2750 = vpop.f32.mrf.mxu0
  %v2751 = vadd.f32 %v2590, %v2750
  %v2752 = vpop.f32.mrf.mxu0
  %v2753 = vpop.f32.mrf.mxu0
  %v2754 = vadd.f32 %v2593, %v2753
  %v2755 = vpop.f32.mrf.mxu0
  %2756 = vmatprep.mubr.bf16.mxu0 %v1695
  %2757 = vmatmul.mubr.bf16.gmra.mxu0 %v1694
  %v2758 = vpop.f32.mrf.mxu0
  %v2759 = vadd.f32 %v2598, %v2758
  %v2760 = vpop.f32.mrf.mxu0
  %v2761 = vpop.f32.mrf.mxu0
  %v2762 = vadd.f32 %v2601, %v2761
  %v2763 = vpop.f32.mrf.mxu0
  %2764 = vdwg.mxu0
  %2765 = vmatprep.subr.bf16.mxu0 0
  %2766 = vmatpush1.bf16.msra.mxu0 %v2193
  %2767 = vmatprep.subr.bf16.mxu0 0
  %2768 = vmatpush1.bf16.msra.mxu0 %v2192
  %2769 = vmatprep.subr.bf16.mxu0 0
  %2770 = vmatpush1.bf16.msra.mxu0 %v2191
  %2771 = vmatprep.subr.bf16.mxu0 0
  %2772 = vmatpush1.bf16.msra.mxu0 %v2190
  %2773 = vmatprep.subr.bf16.mxu0 0
  %2774 = vmatpush1.bf16.msra.mxu0 %v2189
  %2775 = vmatprep.subr.bf16.mxu0 0
  %2776 = vmatpush1.bf16.msra.mxu0 %v2188
  %2777 = vmatprep.subr.bf16.mxu0 0
  %2778 = vmatpush1.bf16.msra.mxu0 %v2187
  %2779 = vmatprep.subr.bf16.mxu0 0
  %2780 = vmatpush1.bf16.msra.mxu0 %v2186
  %2781 = vmatprep.subr.bf16.mxu0 0
  %2782 = vmatpush2.bf16.msra.mxu0 %v2201
  %2783 = vmatprep.subr.bf16.mxu0 0
  %2784 = vmatpush2.bf16.msra.mxu0 %v2200
  %2785 = vmatprep.subr.bf16.mxu0 0
  %2786 = vmatpush2.bf16.msra.mxu0 %v2199
  %2787 = vmatprep.subr.bf16.mxu0 0
  %2788 = vmatpush2.bf16.msra.mxu0 %v2198
  %2789 = vmatprep.subr.bf16.mxu0 0
  %2790 = vmatpush2.bf16.msra.mxu0 %v2197
  %2791 = vmatprep.subr.bf16.mxu0 0
  %2792 = vmatpush2.bf16.msra.mxu0 %v2196
  %2793 = vmatprep.subr.bf16.mxu0 0
  %2794 = vmatpush2.bf16.msra.mxu0 %v2195
  %2795 = vmatprep.subr.bf16.mxu0 0
  %2796 = vmatpush2.bf16.msra.mxu0 %v2194
  %2797 = vmatprep.mubr.bf16.mxu0 %v1679
  %2798 = vmatmul.mubr.bf16.gmra.mxu0 %v1678
  %v2799 = vpop.f32.mrf.mxu0
  %v2800 = vadd.f32 %v2639, %v2799
  %v2801 = vpop.f32.mrf.mxu0
  %v2802 = vpop.f32.mrf.mxu0
  %v2803 = vadd.f32 %v2642, %v2802
  %v2804 = vpop.f32.mrf.mxu0
  %2805 = vmatprep.mubr.bf16.mxu0 %v1680
  %2806 = vmatmul.mubr.bf16.gmra.mxu0 %v1679
  %v2807 = vpop.f32.mrf.mxu0
  %v2808 = vadd.f32 %v2647, %v2807
  %v2809 = vpop.f32.mrf.mxu0
  %v2810 = vpop.f32.mrf.mxu0
  %v2811 = vadd.f32 %v2650, %v2810
  %v2812 = vpop.f32.mrf.mxu0
  %2813 = vmatprep.mubr.bf16.mxu0 %v1681
  %2814 = vmatmul.mubr.bf16.gmra.mxu0 %v1680
  %v2815 = vpop.f32.mrf.mxu0
  %v2816 = vadd.f32 %v2655, %v2815
  %v2817 = vpop.f32.mrf.mxu0
  %v2818 = vpop.f32.mrf.mxu0
  %v2819 = vadd.f32 %v2658, %v2818
  %v2820 = vpop.f32.mrf.mxu0
  %2821 = vmatprep.mubr.bf16.mxu0 %v1682
  %2822 = vmatmul.mubr.bf16.gmra.mxu0 %v1681
  %v2823 = vpop.f32.mrf.mxu0
  %v2824 = vadd.f32 %v2663, %v2823
  %v2825 = vpop.f32.mrf.mxu0
  %v2826 = vpop.f32.mrf.mxu0
  %v2827 = vadd.f32 %v2666, %v2826
  %v2828 = vpop.f32.mrf.mxu0
  %2829 = vmatprep.mubr.bf16.mxu0 %v1685
  %2830 = vmatmul.mubr.bf16.gmra.mxu0 %v1684
  %v2831 = vpop.f32.mrf.mxu0
  %v2832 = vadd.f32 %v2671, %v2831
  %v2833 = vpop.f32.mrf.mxu0
  %v2834 = vpop.f32.mrf.mxu0
  %v2835 = vadd.f32 %v2674, %v2834
  %v2836 = vpop.f32.mrf.mxu0
  %2837 = vmatprep.mubr.bf16.mxu0 %v1686
  %2838 = vmatmul.mubr.bf16.gmra.mxu0 %v1685
  %v2839 = vpop.f32.mrf.mxu0
  %v2840 = vadd.f32 %v2679, %v2839
  %v2841 = vpop.f32.mrf.mxu0
  %v2842 = vpop.f32.mrf.mxu0
  %v2843 = vadd.f32 %v2682, %v2842
  %v2844 = vpop.f32.mrf.mxu0
  %2845 = vmatprep.mubr.bf16.mxu0 %v1687
  %2846 = vmatmul.mubr.bf16.gmra.mxu0 %v1686
  %v2847 = vpop.f32.mrf.mxu0
  %v2848 = vadd.f32 %v2687, %v2847
  %v2849 = vpop.f32.mrf.mxu0
  %v2850 = vpop.f32.mrf.mxu0
  %v2851 = vadd.f32 %v2690, %v2850
  %v2852 = vpop.f32.mrf.mxu0
  %2853 = vmatprep.mubr.bf16.mxu0 %v1688
  %2854 = vmatmul.mubr.bf16.gmra.mxu0 %v1687
  %v2855 = vpop.f32.mrf.mxu0
  %v2856 = vadd.f32 %v2695, %v2855
  %v2857 = vpop.f32.mrf.mxu0
  %v2858 = vpop.f32.mrf.mxu0
  %v2859 = vadd.f32 %v2698, %v2858
  %v2860 = vpop.f32.mrf.mxu0
  %2861 = vmatprep.mubr.bf16.mxu0 %v1691
  %2862 = vmatmul.mubr.bf16.gmra.mxu0 %v1690
  %v2863 = vpop.f32.mrf.mxu0
  %v2864 = vadd.f32 %v2703, %v2863
  %v2865 = vpop.f32.mrf.mxu0
  %v2866 = vpop.f32.mrf.mxu0
  %v2867 = vadd.f32 %v2706, %v2866
  %v2868 = vpop.f32.mrf.mxu0
  %2869 = vmatprep.mubr.bf16.mxu0 %v1692
  %2870 = vmatmul.mubr.bf16.gmra.mxu0 %v1691
  %v2871 = vpop.f32.mrf.mxu0
  %v2872 = vadd.f32 %v2711, %v2871
  %v2873 = vpop.f32.mrf.mxu0
  %v2874 = vpop.f32.mrf.mxu0
  %v2875 = vadd.f32 %v2714, %v2874
  %v2876 = vpop.f32.mrf.mxu0
  %2877 = vmatprep.mubr.bf16.mxu0 %v1693
  %2878 = vmatmul.mubr.bf16.gmra.mxu0 %v1692
  %v2879 = vpop.f32.mrf.mxu0
  %v2880 = vadd.f32 %v2719, %v2879
  %v2881 = vpop.f32.mrf.mxu0
  %v2882 = vpop.f32.mrf.mxu0
  %v2883 = vadd.f32 %v2722, %v2882
  %v2884 = vpop.f32.mrf.mxu0
  %2885 = vmatprep.mubr.bf16.mxu0 %v1694
  %2886 = vmatmul.mubr.bf16.gmra.mxu0 %v1693
  %v2887 = vpop.f32.mrf.mxu0
  %v2888 = vadd.f32 %v2727, %v2887
  %v2889 = vpop.f32.mrf.mxu0
  %v2890 = vpop.f32.mrf.mxu0
  %v2891 = vadd.f32 %v2730, %v2890
  %v2892 = vpop.f32.mrf.mxu0
  %2893 = vmatprep.mubr.bf16.mxu0 %v1697
  %2894 = vmatmul.mubr.bf16.gmra.mxu0 %v1696
  %v2895 = vpop.f32.mrf.mxu0
  %v2896 = vadd.f32 %v2735, %v2895
  %v2897 = vpop.f32.mrf.mxu0
  %v2898 = vpop.f32.mrf.mxu0
  %v2899 = vadd.f32 %v2738, %v2898
  %v2900 = vpop.f32.mrf.mxu0
  %2901 = vmatprep.mubr.bf16.mxu0 %v1698
  %2902 = vmatmul.mubr.bf16.gmra.mxu0 %v1697
  %v2903 = vpop.f32.mrf.mxu0
  %v2904 = vadd.f32 %v2743, %v2903
  %v2905 = vpop.f32.mrf.mxu0
  %v2906 = vpop.f32.mrf.mxu0
  %v2907 = vadd.f32 %v2746, %v2906
  %v2908 = vpop.f32.mrf.mxu0
  %2909 = vmatprep.mubr.bf16.mxu0 %v1699
  %2910 = vmatmul.mubr.bf16.gmra.mxu0 %v1698
  %v2911 = vpop.f32.mrf.mxu0
  %v2912 = vadd.f32 %v2751, %v2911
  %v2913 = vpop.f32.mrf.mxu0
  %v2914 = vpop.f32.mrf.mxu0
  %v2915 = vadd.f32 %v2754, %v2914
  %v2916 = vpop.f32.mrf.mxu0
  %2917 = vmatprep.mubr.bf16.mxu0 %v1700
  %2918 = vmatmul.mubr.bf16.gmra.mxu0 %v1699
  %v2919 = vpop.f32.mrf.mxu0
  %v2920 = vadd.f32 %v2759, %v2919
  %v2921 = vpop.f32.mrf.mxu0
  %v2922 = vpop.f32.mrf.mxu0
  %v2923 = vadd.f32 %v2762, %v2922
  %v2924 = vpop.f32.mrf.mxu0
  %2925 = vdwg.mxu0
  %2926 = vmatprep.subr.bf16.mxu0 0
  %2927 = vmatpush1.bf16.msra.mxu0 %v2209
  %2928 = vmatprep.subr.bf16.mxu0 0
  %2929 = vmatpush1.bf16.msra.mxu0 %v2208
  %2930 = vmatprep.subr.bf16.mxu0 0
  %2931 = vmatpush1.bf16.msra.mxu0 %v2207
  %2932 = vmatprep.subr.bf16.mxu0 0
  %2933 = vmatpush1.bf16.msra.mxu0 %v2206
  %2934 = vmatprep.subr.bf16.mxu0 0
  %2935 = vmatpush1.bf16.msra.mxu0 %v2205
  %2936 = vmatprep.subr.bf16.mxu0 0
  %2937 = vmatpush1.bf16.msra.mxu0 %v2204
  %2938 = vmatprep.subr.bf16.mxu0 0
  %2939 = vmatpush1.bf16.msra.mxu0 %v2203
  %2940 = vmatprep.subr.bf16.mxu0 0
  %2941 = vmatpush1.bf16.msra.mxu0 %v2202
  %2942 = vmatprep.subr.bf16.mxu0 0
  %2943 = vmatpush2.bf16.msra.mxu0 0
  %2944 = vmatprep.subr.bf16.mxu0 0
  %2945 = vmatpush2.bf16.msra.mxu0 0
  %2946 = vmatprep.subr.bf16.mxu0 0
  %2947 = vmatpush2.bf16.msra.mxu0 0
  %2948 = vmatprep.subr.bf16.mxu0 0
  %2949 = vmatpush2.bf16.msra.mxu0 0
  %2950 = vmatprep.subr.bf16.mxu0 0
  %2951 = vmatpush2.bf16.msra.mxu0 0
  %2952 = vmatprep.subr.bf16.mxu0 0
  %2953 = vmatpush2.bf16.msra.mxu0 0
  %2954 = vmatprep.subr.bf16.mxu0 0
  %2955 = vmatpush2.bf16.msra.mxu0 0
  %2956 = vmatprep.subr.bf16.mxu0 0
  %2957 = vmatpush2.bf16.msra.mxu0 0
  %2958 = vmatprep.mubr.bf16.mxu0 0
  %2959 = vmatmul.mubr.bf16.gmra.mxu0 %v1680
  %v2960 = vpop.f32.mrf.mxu0
  %v2961 = vadd.f32 %v2800, %v2960
  %v2962 = vpop.f32.mrf.mxu0
  %v2963 = vpop.f32.mrf.mxu0
  %v2964 = vadd.f32 %v2803, %v2963
  %v2965 = vpop.f32.mrf.mxu0
  %2966 = vmatprep.mubr.bf16.mxu0 0
  %2967 = vmatmul.mubr.bf16.gmra.mxu0 %v1681
  %v2968 = vpop.f32.mrf.mxu0
  %v2969 = vadd.f32 %v2808, %v2968
  %v2970 = vpop.f32.mrf.mxu0
  %v2971 = vpop.f32.mrf.mxu0
  %v2972 = vadd.f32 %v2811, %v2971
  %v2973 = vpop.f32.mrf.mxu0
  %2974 = vmatprep.mubr.bf16.mxu0 0
  %2975 = vmatmul.mubr.bf16.gmra.mxu0 %v1682
  %v2976 = vpop.f32.mrf.mxu0
  %v2977 = vadd.f32 %v2816, %v2976
  %v2978 = vpop.f32.mrf.mxu0
  %v2979 = vpop.f32.mrf.mxu0
  %v2980 = vadd.f32 %v2819, %v2979
  %v2981 = vpop.f32.mrf.mxu0
  %2982 = vmatprep.mubr.bf16.mxu0 0
  %2983 = vmatmul.mubr.bf16.gmra.mxu0 %v1683
  %v2984 = vpop.f32.mrf.mxu0
  %v2985 = vadd.f32 %v2824, %v2984
  %v2986 = vpop.f32.mrf.mxu0
  %v2987 = vpop.f32.mrf.mxu0
  %v2988 = vadd.f32 %v2827, %v2987
  %v2989 = vpop.f32.mrf.mxu0
  %2990 = vmatprep.mubr.bf16.mxu0 0
  %2991 = vmatmul.mubr.bf16.gmra.mxu0 %v1686
  %v2992 = vpop.f32.mrf.mxu0
  %v2993 = vadd.f32 %v2832, %v2992
  %v2994 = vpop.f32.mrf.mxu0
  %v2995 = vpop.f32.mrf.mxu0
  %v2996 = vadd.f32 %v2835, %v2995
  %v2997 = vpop.f32.mrf.mxu0
  %2998 = vmatprep.mubr.bf16.mxu0 0
  %2999 = vmatmul.mubr.bf16.gmra.mxu0 %v1687
  %v3000 = vpop.f32.mrf.mxu0
  %v3001 = vadd.f32 %v2840, %v3000
  %v3002 = vpop.f32.mrf.mxu0
  %v3003 = vpop.f32.mrf.mxu0
  %v3004 = vadd.f32 %v2843, %v3003
  %v3005 = vpop.f32.mrf.mxu0
  %3006 = vmatprep.mubr.bf16.mxu0 0
  %3007 = vmatmul.mubr.bf16.gmra.mxu0 %v1688
  %v3008 = vpop.f32.mrf.mxu0
  %v3009 = vadd.f32 %v2848, %v3008
  %v3010 = vpop.f32.mrf.mxu0
  %v3011 = vpop.f32.mrf.mxu0
  %v3012 = vadd.f32 %v2851, %v3011
  %v3013 = vpop.f32.mrf.mxu0
  %3014 = vmatprep.mubr.bf16.mxu0 0
  %3015 = vmatmul.mubr.bf16.gmra.mxu0 %v1689
  %v3016 = vpop.f32.mrf.mxu0
  %v3017 = vadd.f32 %v2856, %v3016
  %v3018 = vpop.f32.mrf.mxu0
  %v3019 = vpop.f32.mrf.mxu0
  %v3020 = vadd.f32 %v2859, %v3019
  %v3021 = vpop.f32.mrf.mxu0
  %3022 = vmatprep.mubr.bf16.mxu0 0
  %3023 = vmatmul.mubr.bf16.gmra.mxu0 %v1692
  %v3024 = vpop.f32.mrf.mxu0
  %v3025 = vadd.f32 %v2864, %v3024
  %v3026 = vpop.f32.mrf.mxu0
  %v3027 = vpop.f32.mrf.mxu0
  %v3028 = vadd.f32 %v2867, %v3027
  %v3029 = vpop.f32.mrf.mxu0
  %3030 = vmatprep.mubr.bf16.mxu0 0
  %3031 = vmatmul.mubr.bf16.gmra.mxu0 %v1693
  %v3032 = vpop.f32.mrf.mxu0
  %v3033 = vadd.f32 %v2872, %v3032
  %v3034 = vpop.f32.mrf.mxu0
  %v3035 = vpop.f32.mrf.mxu0
  %v3036 = vadd.f32 %v2875, %v3035
  %v3037 = vpop.f32.mrf.mxu0
  %3038 = vmatprep.mubr.bf16.mxu0 0
  %3039 = vmatmul.mubr.bf16.gmra.mxu0 %v1694
  %v3040 = vpop.f32.mrf.mxu0
  %v3041 = vadd.f32 %v2880, %v3040
  %v3042 = vpop.f32.mrf.mxu0
  %v3043 = vpop.f32.mrf.mxu0
  %v3044 = vadd.f32 %v2883, %v3043
  %v3045 = vpop.f32.mrf.mxu0
  %3046 = vmatprep.mubr.bf16.mxu0 0
  %3047 = vmatmul.mubr.bf16.gmra.mxu0 %v1695
  %v3048 = vpop.f32.mrf.mxu0
  %v3049 = vadd.f32 %v2888, %v3048
  %v3050 = vpop.f32.mrf.mxu0
  %v3051 = vpop.f32.mrf.mxu0
  %v3052 = vadd.f32 %v2891, %v3051
  %v3053 = vpop.f32.mrf.mxu0
  %3054 = vmatprep.mubr.bf16.mxu0 0
  %3055 = vmatmul.mubr.bf16.gmra.mxu0 %v1698
  %v3056 = vpop.f32.mrf.mxu0
  %v3057 = vadd.f32 %v2896, %v3056
  %v3058 = vpop.f32.mrf.mxu0
  %v3059 = vpop.f32.mrf.mxu0
  %v3060 = vadd.f32 %v2899, %v3059
  %v3061 = vpop.f32.mrf.mxu0
  %3062 = vmatprep.mubr.bf16.mxu0 0
  %3063 = vmatmul.mubr.bf16.gmra.mxu0 %v1699
  %v3064 = vpop.f32.mrf.mxu0
  %v3065 = vadd.f32 %v2904, %v3064
  %v3066 = vpop.f32.mrf.mxu0
  %v3067 = vpop.f32.mrf.mxu0
  %v3068 = vadd.f32 %v2907, %v3067
  %v3069 = vpop.f32.mrf.mxu0
  %3070 = vmatprep.mubr.bf16.mxu0 0
  %3071 = vmatmul.mubr.bf16.gmra.mxu0 %v1700
  %v3072 = vpop.f32.mrf.mxu0
  %v3073 = vadd.f32 %v2912, %v3072
  %v3074 = vpop.f32.mrf.mxu0
  %v3075 = vpop.f32.mrf.mxu0
  %v3076 = vadd.f32 %v2915, %v3075
  %v3077 = vpop.f32.mrf.mxu0
  %3078 = vmatprep.mubr.bf16.mxu0 0
  %3079 = vmatmul.mubr.bf16.gmra.mxu0 %v1701
  %v3080 = vpop.f32.mrf.mxu0
  %v3081 = vadd.f32 %v2920, %v3080
  %v3082 = vpop.f32.mrf.mxu0
  %v3083 = vpop.f32.mrf.mxu0
  %v3084 = vadd.f32 %v2923, %v3083
  %v3085 = vpop.f32.mrf.mxu0
  %3086 = vdwg.mxu0
  %v3087 = vmax.f32 %v2961, %v2969
  %v3088 = vmax.f32 %v2964, %v2972
  %v3089 = vmax.f32 %v2993, %v3001
  %v3090 = vmax.f32 %v2996, %v3004
  %v3091 = vmax.f32 %v3087, %v3089
  %v3092 = vmax.f32 %v3088, %v3090
  %v3093 = vmax.f32 %v3091, 0.0
  %v3094 = vmax.f32 %v3092, 0.0
  %v3095 = vmax.f32 %v2977, %v2985
  %v3096 = vmax.f32 %v2980, %v2988
  %v3097 = vmax.f32 %v3009, %v3017
  %v3098 = vmax.f32 %v3012, %v3020
  %v3099 = vmax.f32 %v3095, %v3097
  %v3100 = vmax.f32 %v3096, %v3098
  %v3101 = vmax.f32 %v3099, 0.0
  %v3102 = vmax.f32 %v3100, 0.0
  %v3103 = vmax.f32 %v3025, %v3033
  %v3104 = vmax.f32 %v3028, %v3036
  %v3105 = vmax.f32 %v3057, %v3065
  %v3106 = vmax.f32 %v3060, %v3068
  %v3107 = vmax.f32 %v3103, %v3105
  %v3108 = vmax.f32 %v3104, %v3106
  %v3109 = vmax.f32 %v3107, 0.0
  %v3110 = vmax.f32 %v3108, 0.0
  %v3111 = vmax.f32 %v3041, %v3049
  %v3112 = vmax.f32 %v3044, %v3052
  %v3113 = vmax.f32 %v3073, %v3081
  %v3114 = vmax.f32 %v3076, %v3084
  %v3115 = vmax.f32 %v3111, %v3113
  %v3116 = vmax.f32 %v3112, %v3114
  %v3117 = vmax.f32 %v3115, 0.0
  %v3118 = vmax.f32 %v3116, 0.0
  %v3119 = vpack.c.bf16 %v3094, %v3093
  %v3120 = vpack.c.bf16 %v3102, %v3101
  %v3121 = vpack.c.bf16 %v3110, %v3109
  %v3122 = vpack.c.bf16 %v3118, %v3117
  %v3123 = vld [vmem:[%s3] sm:$0xf]
  %v3124 = vld [vmem:[%s3 + $0x4] sm:$0xf]
  %v3125 = vld [vmem:[%s3 + $0x8] sm:$0xf]
  %v3126 = vld [vmem:[%s3 + $0xc] sm:$0xf]
  %v3127 = vld [vmem:[%s3 + $0x10] sm:$0xf]
  %v3128 = vld [vmem:[%s3 + $0x14] sm:$0xf]
  %v3129 = vld [vmem:[%s3 + $0x18] sm:$0xf]
  %v3130 = vld [vmem:[%s3 + $0x1c] sm:$0xf]
  %v3131 = vld [vmem:[%s3 + $0x20] sm:$0xf]
  %v3132 = vld [vmem:[%s3 + $0x24] sm:$0xf]
  %v3133 = vld [vmem:[%s3 + $0x28] sm:$0xf]
  %v3134 = vld [vmem:[%s3 + $0x2c] sm:$0xf]
  %v3135 = vld [vmem:[%s3 + $0x30] sm:$0xf]
  %v3136 = vld [vmem:[%s3 + $0x34] sm:$0xf]
  %v3137 = vld [vmem:[%s3 + $0x38] sm:$0xf]
  %v3138 = vld [vmem:[%s3 + $0x3c] sm:$0xf]
  %v3139 = vld [vmem:[%s3 + $0x40] sm:$0xf]
  %v3140 = vld [vmem:[%s3 + $0x44] sm:$0xf]
  %v3141 = vld [vmem:[%s3 + $0x48] sm:$0xf]
  %v3142 = vld [vmem:[%s3 + $0x4c] sm:$0xf]
  %v3143 = vld [vmem:[%s3 + $0x50] sm:$0xf]
  %v3144 = vld [vmem:[%s3 + $0x54] sm:$0xf]
  %v3145 = vld [vmem:[%s3 + $0x58] sm:$0xf]
  %v3146 = vld [vmem:[%s3 + $0x5c] sm:$0xf]
  %v3147 = vld [vmem:[%s3 + $0x60] sm:$0xf]
  %v3148 = vld [vmem:[%s3 + $0x64] sm:$0xf]
  %v3149 = vld [vmem:[%s3 + $0x68] sm:$0xf]
  %v3150 = vld [vmem:[%s3 + $0x6c] sm:$0xf]
  %v3151 = vld [vmem:[%s3 + $0x70] sm:$0xf]
  %v3152 = vld [vmem:[%s3 + $0x74] sm:$0xf]
  %v3153 = vld [vmem:[%s3 + $0x78] sm:$0xf]
  %v3154 = vld [vmem:[%s3 + $0x7c] sm:$0xf]
  %v3155 = vld [vmem:[%s3 + $0x80] sm:$0xf]
  %v3156 = vld [vmem:[%s3 + $0x84] sm:$0xf]
  %v3157 = vld [vmem:[%s3 + $0x88] sm:$0xf]
  %v3158 = vld [vmem:[%s3 + $0x8c] sm:$0xf]
  %v3159 = vld [vmem:[%s3 + $0x90] sm:$0xf]
  %v3160 = vld [vmem:[%s3 + $0x94] sm:$0xf]
  %v3161 = vld [vmem:[%s3 + $0x98] sm:$0xf]
  %v3162 = vld [vmem:[%s3 + $0x9c] sm:$0xf]
  %v3163 = vld [vmem:[%s3 + $0xa0] sm:$0xf]
  %v3164 = vld [vmem:[%s3 + $0xa4] sm:$0xf]
  %v3165 = vld [vmem:[%s3 + $0xa8] sm:$0xf]
  %v3166 = vld [vmem:[%s3 + $0xac] sm:$0xf]
  %v3167 = vld [vmem:[%s3 + $0xb0] sm:$0xf]
  %v3168 = vld [vmem:[%s3 + $0xb4] sm:$0xf]
  %v3169 = vld [vmem:[%s3 + $0xb8] sm:$0xf]
  %v3170 = vld [vmem:[%s3 + $0xbc] sm:$0xf]
  %v3171 = vld [vmem:[%s3 + $0xc0] sm:$0xf]
  %v3172 = vld [vmem:[%s3 + $0xc4] sm:$0xf]
  %v3173 = vld [vmem:[%s3 + $0xc8] sm:$0xf]
  %v3174 = vld [vmem:[%s3 + $0xcc] sm:$0xf]
  %v3175 = vld [vmem:[%s3 + $0xd0] sm:$0xf]
  %v3176 = vld [vmem:[%s3 + $0xd4] sm:$0xf]
  %v3177 = vld [vmem:[%s3 + $0xd8] sm:$0xf]
  %v3178 = vld [vmem:[%s3 + $0xdc] sm:$0xf]
  %v3179 = vld [vmem:[%s3 + $0xe0] sm:$0xf]
  %v3180 = vld [vmem:[%s3 + $0xe4] sm:$0xf]
  %v3181 = vld [vmem:[%s3 + $0xe8] sm:$0xf]
  %v3182 = vld [vmem:[%s3 + $0xec] sm:$0xf]
  %v3183 = vld [vmem:[%s3 + $0xf0] sm:$0xf]
  %v3184 = vld [vmem:[%s3 + $0xf4] sm:$0xf]
  %v3185 = vld [vmem:[%s3 + $0xf8] sm:$0xf]
  %v3186 = vld [vmem:[%s3 + $0xfc] sm:$0xf]
  %v3187 = vlaneseq
  %v3188 = vshrl.u32 %v3187, 7
  %v3189 = vsub.s32 0, %v3188
  %v3190 = vrot.slane %v32, %v3189
  %v3255 = vunpack.c.l.b16 %v3123
  %v3256 = vunpack.c.l.b16 %v3124
  %v3257 = vunpack.c.l.b16 %v3125
  %v3258 = vunpack.c.l.b16 %v3126
  %v3259 = vunpack.c.l.b16 %v3127
  %v3260 = vunpack.c.l.b16 %v3128
  %v3261 = vunpack.c.l.b16 %v3129
  %v3262 = vunpack.c.l.b16 %v3130
  %v3263 = vunpack.c.l.b16 %v3131
  %v3264 = vunpack.c.l.b16 %v3132
  %v3265 = vunpack.c.l.b16 %v3133
  %v3266 = vunpack.c.l.b16 %v3134
  %v3267 = vunpack.c.l.b16 %v3135
  %v3268 = vunpack.c.l.b16 %v3136
  %v3269 = vunpack.c.l.b16 %v3137
  %v3270 = vunpack.c.l.b16 %v3138
  %v3271 = vunpack.c.l.b16 %v3139
  %v3272 = vunpack.c.l.b16 %v3140
  %v3273 = vunpack.c.l.b16 %v3141
  %v3274 = vunpack.c.l.b16 %v3142
  %v3275 = vunpack.c.l.b16 %v3143
  %v3276 = vunpack.c.l.b16 %v3144
  %v3277 = vunpack.c.l.b16 %v3145
  %v3278 = vunpack.c.l.b16 %v3146
  %v3279 = vunpack.c.l.b16 %v3147
  %v3280 = vunpack.c.l.b16 %v3148
  %v3281 = vunpack.c.l.b16 %v3149
  %v3282 = vunpack.c.l.b16 %v3150
  %v3283 = vunpack.c.l.b16 %v3151
  %v3284 = vunpack.c.l.b16 %v3152
  %v3285 = vunpack.c.l.b16 %v3153
  %v3286 = vunpack.c.l.b16 %v3154
  %v3287 = vunpack.c.l.b16 %v3155
  %v3288 = vunpack.c.l.b16 %v3156
  %v3289 = vunpack.c.l.b16 %v3157
  %v3290 = vunpack.c.l.b16 %v3158
  %v3291 = vunpack.c.l.b16 %v3159
  %v3292 = vunpack.c.l.b16 %v3160
  %v3293 = vunpack.c.l.b16 %v3161
  %v3294 = vunpack.c.l.b16 %v3162
  %v3295 = vunpack.c.l.b16 %v3163
  %v3296 = vunpack.c.l.b16 %v3164
  %v3297 = vunpack.c.l.b16 %v3165
  %v3298 = vunpack.c.l.b16 %v3166
  %v3299 = vunpack.c.l.b16 %v3167
  %v3300 = vunpack.c.l.b16 %v3168
  %v3301 = vunpack.c.l.b16 %v3169
  %v3302 = vunpack.c.l.b16 %v3170
  %v3303 = vunpack.c.l.b16 %v3171
  %v3304 = vunpack.c.l.b16 %v3172
  %v3305 = vunpack.c.l.b16 %v3173
  %v3306 = vunpack.c.l.b16 %v3174
  %v3307 = vunpack.c.l.b16 %v3175
  %v3308 = vunpack.c.l.b16 %v3176
  %v3309 = vunpack.c.l.b16 %v3177
  %v3310 = vunpack.c.l.b16 %v3178
  %v3311 = vunpack.c.l.b16 %v3179
  %v3312 = vunpack.c.l.b16 %v3180
  %v3313 = vunpack.c.l.b16 %v3181
  %v3314 = vunpack.c.l.b16 %v3182
  %v3315 = vunpack.c.l.b16 %v3183
  %v3316 = vunpack.c.l.b16 %v3184
  %v3317 = vunpack.c.l.b16 %v3185
  %v3318 = vunpack.c.l.b16 %v3186
  %v3319 = vpack.c.b16 %v3256, %v3255
  %v3320 = vpack.c.b16 %v3258, %v3257
  %v3321 = vpack.c.b16 %v3260, %v3259
  %v3322 = vpack.c.b16 %v3262, %v3261
  %v3323 = vpack.c.b16 %v3264, %v3263
  %v3324 = vpack.c.b16 %v3266, %v3265
  %v3325 = vpack.c.b16 %v3268, %v3267
  %v3326 = vpack.c.b16 %v3270, %v3269
  %v3327 = vpack.c.b16 %v3272, %v3271
  %v3328 = vpack.c.b16 %v3274, %v3273
  %v3329 = vpack.c.b16 %v3276, %v3275
  %v3330 = vpack.c.b16 %v3278, %v3277
  %v3331 = vpack.c.b16 %v3280, %v3279
  %v3332 = vpack.c.b16 %v3282, %v3281
  %v3333 = vpack.c.b16 %v3284, %v3283
  %v3334 = vpack.c.b16 %v3286, %v3285
  %v3335 = vpack.c.b16 %v3288, %v3287
  %v3336 = vpack.c.b16 %v3290, %v3289
  %v3337 = vpack.c.b16 %v3292, %v3291
  %v3338 = vpack.c.b16 %v3294, %v3293
  %v3339 = vpack.c.b16 %v3296, %v3295
  %v3340 = vpack.c.b16 %v3298, %v3297
  %v3341 = vpack.c.b16 %v3300, %v3299
  %v3342 = vpack.c.b16 %v3302, %v3301
  %v3343 = vpack.c.b16 %v3304, %v3303
  %v3344 = vpack.c.b16 %v3306, %v3305
  %v3345 = vpack.c.b16 %v3308, %v3307
  %v3346 = vpack.c.b16 %v3310, %v3309
  %v3347 = vpack.c.b16 %v3312, %v3311
  %v3348 = vpack.c.b16 %v3314, %v3313
  %v3349 = vpack.c.b16 %v3316, %v3315
  %v3350 = vpack.c.b16 %v3318, %v3317
  %3383 = vmatprep.subr.bf16.mxu0 0
  %3384 = vmatpush1.bf16.msra.mxu0 %v3326
  %3385 = vmatprep.subr.bf16.mxu0 0
  %3386 = vmatpush1.bf16.msra.mxu0 %v3325
  %3387 = vmatprep.subr.bf16.mxu0 0
  %3388 = vmatpush1.bf16.msra.mxu0 %v3324
  %3389 = vmatprep.subr.bf16.mxu0 0
  %3390 = vmatpush1.bf16.msra.mxu0 %v3323
  %3391 = vmatprep.subr.bf16.mxu0 0
  %3392 = vmatpush1.bf16.msra.mxu0 %v3322
  %3393 = vmatprep.subr.bf16.mxu0 0
  %3394 = vmatpush1.bf16.msra.mxu0 %v3321
  %3395 = vmatprep.subr.bf16.mxu0 0
  %3396 = vmatpush1.bf16.msra.mxu0 %v3320
  %3397 = vmatprep.subr.bf16.mxu0 0
  %3398 = vmatpush1.bf16.msra.mxu0 %v3319
  %3399 = vmatprep.subr.bf16.mxu0 0
  %3400 = vmatpush2.bf16.msra.mxu0 %v3334
  %3401 = vmatprep.subr.bf16.mxu0 0
  %3402 = vmatpush2.bf16.msra.mxu0 %v3333
  %3403 = vmatprep.subr.bf16.mxu0 0
  %3404 = vmatpush2.bf16.msra.mxu0 %v3332
  %3405 = vmatprep.subr.bf16.mxu0 0
  %3406 = vmatpush2.bf16.msra.mxu0 %v3331
  %3407 = vmatprep.subr.bf16.mxu0 0
  %3408 = vmatpush2.bf16.msra.mxu0 %v3330
  %3409 = vmatprep.subr.bf16.mxu0 0
  %3410 = vmatpush2.bf16.msra.mxu0 %v3329
  %3411 = vmatprep.subr.bf16.mxu0 0
  %3412 = vmatpush2.bf16.msra.mxu0 %v3328
  %3413 = vmatprep.subr.bf16.mxu0 0
  %3414 = vmatpush2.bf16.msra.mxu0 %v3327
  %3415 = vmatprep.mubr.bf16.mxu0 %v3120
  %3416 = vmatmul.mubr.bf16.gmra.mxu0 %v3119
  %v3417 = vpop.f32.mrf.mxu0
  %v3418 = vadd.f32 %v3190, %v3417
  %v3419 = vpop.f32.mrf.mxu0
  %v3420 = vpop.f32.mrf.mxu0
  %v3421 = vadd.f32 %v3190, %v3420
  %v3422 = vpop.f32.mrf.mxu0
  %3423 = vdwg.mxu0
  %3424 = vmatprep.subr.bf16.mxu0 0
  %3425 = vmatpush1.bf16.msra.mxu0 %v3342
  %3426 = vmatprep.subr.bf16.mxu0 0
  %3427 = vmatpush1.bf16.msra.mxu0 %v3341
  %3428 = vmatprep.subr.bf16.mxu0 0
  %3429 = vmatpush1.bf16.msra.mxu0 %v3340
  %3430 = vmatprep.subr.bf16.mxu0 0
  %3431 = vmatpush1.bf16.msra.mxu0 %v3339
  %3432 = vmatprep.subr.bf16.mxu0 0
  %3433 = vmatpush1.bf16.msra.mxu0 %v3338
  %3434 = vmatprep.subr.bf16.mxu0 0
  %3435 = vmatpush1.bf16.msra.mxu0 %v3337
  %3436 = vmatprep.subr.bf16.mxu0 0
  %3437 = vmatpush1.bf16.msra.mxu0 %v3336
  %3438 = vmatprep.subr.bf16.mxu0 0
  %3439 = vmatpush1.bf16.msra.mxu0 %v3335
  %3440 = vmatprep.subr.bf16.mxu0 0
  %3441 = vmatpush2.bf16.msra.mxu0 %v3350
  %3442 = vmatprep.subr.bf16.mxu0 0
  %3443 = vmatpush2.bf16.msra.mxu0 %v3349
  %3444 = vmatprep.subr.bf16.mxu0 0
  %3445 = vmatpush2.bf16.msra.mxu0 %v3348
  %3446 = vmatprep.subr.bf16.mxu0 0
  %3447 = vmatpush2.bf16.msra.mxu0 %v3347
  %3448 = vmatprep.subr.bf16.mxu0 0
  %3449 = vmatpush2.bf16.msra.mxu0 %v3346
  %3450 = vmatprep.subr.bf16.mxu0 0
  %3451 = vmatpush2.bf16.msra.mxu0 %v3345
  %3452 = vmatprep.subr.bf16.mxu0 0
  %3453 = vmatpush2.bf16.msra.mxu0 %v3344
  %3454 = vmatprep.subr.bf16.mxu0 0
  %3455 = vmatpush2.bf16.msra.mxu0 %v3343
  %3456 = vmatprep.mubr.bf16.mxu0 %v3122
  %3457 = vmatmul.mubr.bf16.gmra.mxu0 %v3121
  %v3458 = vpop.f32.mrf.mxu0
  %v3459 = vadd.f32 %v3418, %v3458
  %v3460 = vpop.f32.mrf.mxu0
  %v3461 = vpop.f32.mrf.mxu0
  %v3462 = vadd.f32 %v3421, %v3461
  %v3463 = vpop.f32.mrf.mxu0
  %3464 = vdwg.mxu0
  %v3465 = vmax.f32 %v3459, 0.0
  %v3466 = vmax.f32 %v3462, 0.0
  %v3467 = vpack.c.bf16 %v3466, %v3465
  %v3468 = vld [vmem:[%s4] sm:$0xf]
  %v3469 = vld [vmem:[%s4 + $0x4] sm:$0xf]
  %v3470 = vld [vmem:[%s4 + $0x8] sm:$0xf]
  %v3471 = vld [vmem:[%s4 + $0xc] sm:$0xf]
  %v3472 = vld [vmem:[%s4 + $0x10] sm:$0xf]
  %v3473 = vld [vmem:[%s4 + $0x14] sm:$0xf]
  %v3474 = vld [vmem:[%s4 + $0x18] sm:$0xf]
  %v3475 = vld [vmem:[%s4 + $0x1c] sm:$0xf]
  %v3476 = vld [vmem:[%s4 + $0x20] sm:$0xf]
  %v3477 = vld [vmem:[%s4 + $0x24] sm:$0xf]
  %v3478 = vld [vmem:[%s4 + $0x28] sm:$0xf]
  %v3479 = vld [vmem:[%s4 + $0x2c] sm:$0xf]
  %v3480 = vld [vmem:[%s4 + $0x30] sm:$0xf]
  %v3481 = vld [vmem:[%s4 + $0x34] sm:$0xf]
  %v3482 = vld [vmem:[%s4 + $0x38] sm:$0xf]
  %v3483 = vld [vmem:[%s4 + $0x3c] sm:$0xf]
  %v3484 = vlaneseq
  %v3485 = vshrl.u32 %v3484, 7
  %v3486 = vsub.s32 0, %v3485
  %v3487 = vrot.slane %v33, %v3486
  %v3504 = vunpack.c.l.b16 %v3468
  %v3505 = vunpack.c.l.b16 %v3469
  %v3506 = vunpack.c.l.b16 %v3470
  %v3507 = vunpack.c.l.b16 %v3471
  %v3508 = vunpack.c.l.b16 %v3472
  %v3509 = vunpack.c.l.b16 %v3473
  %v3510 = vunpack.c.l.b16 %v3474
  %v3511 = vunpack.c.l.b16 %v3475
  %v3512 = vunpack.c.l.b16 %v3476
  %v3513 = vunpack.c.l.b16 %v3477
  %v3514 = vunpack.c.l.b16 %v3478
  %v3515 = vunpack.c.l.b16 %v3479
  %v3516 = vunpack.c.l.b16 %v3480
  %v3517 = vunpack.c.l.b16 %v3481
  %v3518 = vunpack.c.l.b16 %v3482
  %v3519 = vunpack.c.l.b16 %v3483
  %v3520 = vpack.c.b16 %v3505, %v3504
  %v3521 = vpack.c.b16 %v3507, %v3506
  %v3522 = vpack.c.b16 %v3509, %v3508
  %v3523 = vpack.c.b16 %v3511, %v3510
  %v3524 = vpack.c.b16 %v3513, %v3512
  %v3525 = vpack.c.b16 %v3515, %v3514
  %v3526 = vpack.c.b16 %v3517, %v3516
  %v3527 = vpack.c.b16 %v3519, %v3518
  %3536 = vmatprep.subr.bf16.mxu0 0
  %3537 = vmatpush1.bf16.msra.mxu0 %v3527
  %3538 = vmatprep.subr.bf16.mxu0 0
  %3539 = vmatpush1.bf16.msra.mxu0 %v3526
  %3540 = vmatprep.subr.bf16.mxu0 0
  %3541 = vmatpush1.bf16.msra.mxu0 %v3525
  %3542 = vmatprep.subr.bf16.mxu0 0
  %3543 = vmatpush1.bf16.msra.mxu0 %v3524
  %3544 = vmatprep.subr.bf16.mxu0 0
  %3545 = vmatpush1.bf16.msra.mxu0 %v3523
  %3546 = vmatprep.subr.bf16.mxu0 0
  %3547 = vmatpush1.bf16.msra.mxu0 %v3522
  %3548 = vmatprep.subr.bf16.mxu0 0
  %3549 = vmatpush1.bf16.msra.mxu0 %v3521
  %3550 = vmatprep.subr.bf16.mxu0 0
  %3551 = vmatpush1.bf16.msra.mxu0 %v3520
  %3552 = vmatprep.subr.bf16.mxu0 0
  %3553 = vmatpush2.bf16.msra.mxu0 0
  %3554 = vmatprep.subr.bf16.mxu0 0
  %3555 = vmatpush2.bf16.msra.mxu0 0
  %3556 = vmatprep.subr.bf16.mxu0 0
  %3557 = vmatpush2.bf16.msra.mxu0 0
  %3558 = vmatprep.subr.bf16.mxu0 0
  %3559 = vmatpush2.bf16.msra.mxu0 0
  %3560 = vmatprep.subr.bf16.mxu0 0
  %3561 = vmatpush2.bf16.msra.mxu0 0
  %3562 = vmatprep.subr.bf16.mxu0 0
  %3563 = vmatpush2.bf16.msra.mxu0 0
  %3564 = vmatprep.subr.bf16.mxu0 0
  %3565 = vmatpush2.bf16.msra.mxu0 0
  %3566 = vmatprep.subr.bf16.mxu0 0
  %3567 = vmatpush2.bf16.msra.mxu0 0
  %3568 = vmatprep.mubr.bf16.mxu0 0
  %3569 = vmatmul.mubr.bf16.gmra.mxu0 %v3467
  %v3570 = vpop.f32.mrf.mxu0
  %v3571 = vadd.f32 %v3487, %v3570
  %v3572 = vpop.f32.mrf.mxu0
  %v3573 = vpop.f32.mrf.mxu0
  %v3574 = vadd.f32 %v3487, %v3573
  %v3575 = vpop.f32.mrf.mxu0
  %3576 = vdwg.mxu0
  %v3577 = vmax.f32 %v3571, 0.0
  %v3578 = vmax.f32 %v3574, 0.0
  %v3579 = vpack.c.bf16 %v3577, %v3577
  %v3580 = vpack.c.bf16 %v3578, %v3578
  %v3581 = vld [vmem:[%s5] sm:$0xf]
  %v3582 = vld [vmem:[%s5 + $0x4] sm:$0xf]
  %v3583 = vld [vmem:[%s5 + $0x8] sm:$0xf]
  %v3584 = vld [vmem:[%s5 + $0xc] sm:$0xf]
  %v3585 = vld [vmem:[%s5 + $0x10] sm:$0xf]
  %v3586 = vld [vmem:[%s5 + $0x14] sm:$0xf]
  %v3587 = vld [vmem:[%s5 + $0x18] sm:$0xf]
  %v3588 = vld [vmem:[%s5 + $0x1c] sm:$0xf]
  %v3589 = vld [vmem:[%s5 + $0x20] sm:$0xf]
  %v3590 = vld [vmem:[%s5 + $0x24] sm:$0xf]
  %v3591 = vld [vmem:[%s5 + $0x28] sm:$0xf]
  %v3592 = vld [vmem:[%s5 + $0x2c] sm:$0xf]
  %v3593 = vld [vmem:[%s5 + $0x30] sm:$0xf]
  %v3594 = vld [vmem:[%s5 + $0x34] sm:$0xf]
  %v3595 = vld [vmem:[%s5 + $0x38] sm:$0xf]
  %v3596 = vld [vmem:[%s5 + $0x3c] sm:$0xf]
  %v3597 = vld [vmem:[%s5 + $0x40] sm:$0xf]
  %v3598 = vld [vmem:[%s5 + $0x44] sm:$0xf]
  %v3599 = vld [vmem:[%s5 + $0x48] sm:$0xf]
  %v3600 = vld [vmem:[%s5 + $0x4c] sm:$0xf]
  %v3601 = vld [vmem:[%s5 + $0x50] sm:$0xf]
  %v3602 = vld [vmem:[%s5 + $0x54] sm:$0xf]
  %v3603 = vld [vmem:[%s5 + $0x58] sm:$0xf]
  %v3604 = vld [vmem:[%s5 + $0x5c] sm:$0xf]
  %v3605 = vld [vmem:[%s5 + $0x60] sm:$0xf]
  %v3606 = vld [vmem:[%s5 + $0x64] sm:$0xf]
  %v3607 = vld [vmem:[%s5 + $0x68] sm:$0xf]
  %v3608 = vld [vmem:[%s5 + $0x6c] sm:$0xf]
  %v3609 = vld [vmem:[%s5 + $0x70] sm:$0xf]
  %v3610 = vld [vmem:[%s5 + $0x74] sm:$0xf]
  %v3611 = vld [vmem:[%s5 + $0x78] sm:$0xf]
  %v3612 = vld [vmem:[%s5 + $0x7c] sm:$0xf]
  %v3613 = vlaneseq
  %v3614 = vshrl.u32 %v3613, 7
  %v3615 = vsub.s32 0, %v3614
  %v3616 = vrot.slane %v34, %v3615
  %v3649 = vunpack.c.l.b16 %v3581
  %v3650 = vunpack.c.l.b16 %v3582
  %v3651 = vunpack.c.l.b16 %v3583
  %v3652 = vunpack.c.l.b16 %v3584
  %v3653 = vunpack.c.l.b16 %v3585
  %v3654 = vunpack.c.l.b16 %v3586
  %v3655 = vunpack.c.l.b16 %v3587
  %v3656 = vunpack.c.l.b16 %v3588
  %v3657 = vunpack.c.l.b16 %v3589
  %v3658 = vunpack.c.l.b16 %v3590
  %v3659 = vunpack.c.l.b16 %v3591
  %v3660 = vunpack.c.l.b16 %v3592
  %v3661 = vunpack.c.l.b16 %v3593
  %v3662 = vunpack.c.l.b16 %v3594
  %v3663 = vunpack.c.l.b16 %v3595
  %v3664 = vunpack.c.l.b16 %v3596
  %v3665 = vunpack.c.l.b16 %v3597
  %v3666 = vunpack.c.l.b16 %v3598
  %v3667 = vunpack.c.l.b16 %v3599
  %v3668 = vunpack.c.l.b16 %v3600
  %v3669 = vunpack.c.l.b16 %v3601
  %v3670 = vunpack.c.l.b16 %v3602
  %v3671 = vunpack.c.l.b16 %v3603
  %v3672 = vunpack.c.l.b16 %v3604
  %v3673 = vunpack.c.l.b16 %v3605
  %v3674 = vunpack.c.l.b16 %v3606
  %v3675 = vunpack.c.l.b16 %v3607
  %v3676 = vunpack.c.l.b16 %v3608
  %v3677 = vunpack.c.l.b16 %v3609
  %v3678 = vunpack.c.l.b16 %v3610
  %v3679 = vunpack.c.l.b16 %v3611
  %v3680 = vunpack.c.l.b16 %v3612
  %v3681 = vpack.c.b16 %v3650, %v3649
  %v3682 = vpack.c.b16 %v3652, %v3651
  %v3683 = vpack.c.b16 %v3654, %v3653
  %v3684 = vpack.c.b16 %v3656, %v3655
  %v3685 = vpack.c.b16 %v3658, %v3657
  %v3686 = vpack.c.b16 %v3660, %v3659
  %v3687 = vpack.c.b16 %v3662, %v3661
  %v3688 = vpack.c.b16 %v3664, %v3663
  %v3689 = vpack.c.b16 %v3666, %v3665
  %v3690 = vpack.c.b16 %v3668, %v3667
  %v3691 = vpack.c.b16 %v3670, %v3669
  %v3692 = vpack.c.b16 %v3672, %v3671
  %v3693 = vpack.c.b16 %v3674, %v3673
  %v3694 = vpack.c.b16 %v3676, %v3675
  %v3695 = vpack.c.b16 %v3678, %v3677
  %v3696 = vpack.c.b16 %v3680, %v3679
  %3713 = vmatprep.subr.bf16.mxu0 0
  %3714 = vmatpush1.bf16.msra.mxu0 %v3688
  %3715 = vmatprep.subr.bf16.mxu0 0
  %3716 = vmatpush1.bf16.msra.mxu0 %v3687
  %3717 = vmatprep.subr.bf16.mxu0 0
  %3718 = vmatpush1.bf16.msra.mxu0 %v3686
  %3719 = vmatprep.subr.bf16.mxu0 0
  %3720 = vmatpush1.bf16.msra.mxu0 %v3685
  %3721 = vmatprep.subr.bf16.mxu0 0
  %3722 = vmatpush1.bf16.msra.mxu0 %v3684
  %3723 = vmatprep.subr.bf16.mxu0 0
  %3724 = vmatpush1.bf16.msra.mxu0 %v3683
  %3725 = vmatprep.subr.bf16.mxu0 0
  %3726 = vmatpush1.bf16.msra.mxu0 %v3682
  %3727 = vmatprep.subr.bf16.mxu0 0
  %3728 = vmatpush1.bf16.msra.mxu0 %v3681
  %3729 = vmatprep.subr.bf16.mxu0 0
  %3730 = vmatpush2.bf16.msra.mxu0 %v3696
  %3731 = vmatprep.subr.bf16.mxu0 0
  %3732 = vmatpush2.bf16.msra.mxu0 %v3695
  %3733 = vmatprep.subr.bf16.mxu0 0
  %3734 = vmatpush2.bf16.msra.mxu0 %v3694
  %3735 = vmatprep.subr.bf16.mxu0 0
  %3736 = vmatpush2.bf16.msra.mxu0 %v3693
  %3737 = vmatprep.subr.bf16.mxu0 0
  %3738 = vmatpush2.bf16.msra.mxu0 %v3692
  %3739 = vmatprep.subr.bf16.mxu0 0
  %3740 = vmatpush2.bf16.msra.mxu0 %v3691
  %3741 = vmatprep.subr.bf16.mxu0 0
  %3742 = vmatpush2.bf16.msra.mxu0 %v3690
  %3743 = vmatprep.subr.bf16.mxu0 0
  %3744 = vmatpush2.bf16.msra.mxu0 %v3689
  %3745 = vmatprep.mubr.bf16.mxu0 %v3580
  %3746 = vmatmul.mubr.bf16.gmra.mxu0 %v3579
  %v3747 = vpop.f32.mrf.mxu0
  %v3748 = vadd.f32 %v3616, %v3747
  %v3749 = vpop.f32.mrf.mxu0
  %v3750 = vpop.f32.mrf.mxu0
  %v3751 = vpop.f32.mrf.mxu0
  %3752 = vdwg.mxu0
  %v3753 = vmax.f32 %v3748, 0.0
  %v3754 = vpack.c.bf16 %v3753, %v3753
  %v3755 = vld [vmem:[%s6] sm:$0xf]
  %v3756 = vld [vmem:[%s6 + $0x4] sm:$0xf]
  %v3757 = vld [vmem:[%s6 + $0x8] sm:$0xf]
  %v3758 = vld [vmem:[%s6 + $0xc] sm:$0xf]
  %v3759 = vld [vmem:[%s6 + $0x10] sm:$0xf]
  %v3760 = vld [vmem:[%s6 + $0x14] sm:$0xf]
  %v3761 = vld [vmem:[%s6 + $0x18] sm:$0xf]
  %v3762 = vld [vmem:[%s6 + $0x1c] sm:$0xf]
  %v3763 = vld [vmem:[%s6 + $0x20] sm:$0xf]
  %v3764 = vld [vmem:[%s6 + $0x24] sm:$0xf]
  %v3765 = vld [vmem:[%s6 + $0x28] sm:$0xf]
  %v3766 = vld [vmem:[%s6 + $0x2c] sm:$0xf]
  %v3767 = vld [vmem:[%s6 + $0x30] sm:$0xf]
  %v3768 = vld [vmem:[%s6 + $0x34] sm:$0xf]
  %v3769 = vld [vmem:[%s6 + $0x38] sm:$0xf]
  %v3770 = vld [vmem:[%s6 + $0x3c] sm:$0xf]
  %v3771 = vlaneseq
  %v3772 = vshrl.u32 %v3771, 7
  %v3773 = vsub.s32 0, %v3772
  %v3774 = vrot.slane %v35, %v3773
  %v3791 = vunpack.c.l.b16 %v3755
  %v3792 = vunpack.c.l.b16 %v3756
  %v3793 = vunpack.c.l.b16 %v3757
  %v3794 = vunpack.c.l.b16 %v3758
  %v3795 = vunpack.c.l.b16 %v3759
  %v3796 = vunpack.c.l.b16 %v3760
  %v3797 = vunpack.c.l.b16 %v3761
  %v3798 = vunpack.c.l.b16 %v3762
  %v3799 = vunpack.c.l.b16 %v3763
  %v3800 = vunpack.c.l.b16 %v3764
  %v3801 = vunpack.c.l.b16 %v3765
  %v3802 = vunpack.c.l.b16 %v3766
  %v3803 = vunpack.c.l.b16 %v3767
  %v3804 = vunpack.c.l.b16 %v3768
  %v3805 = vunpack.c.l.b16 %v3769
  %v3806 = vunpack.c.l.b16 %v3770
  %v3807 = vpack.c.b16 %v3792, %v3791
  %v3808 = vpack.c.b16 %v3794, %v3793
  %v3809 = vpack.c.b16 %v3796, %v3795
  %v3810 = vpack.c.b16 %v3798, %v3797
  %v3811 = vpack.c.b16 %v3800, %v3799
  %v3812 = vpack.c.b16 %v3802, %v3801
  %v3813 = vpack.c.b16 %v3804, %v3803
  %v3814 = vpack.c.b16 %v3806, %v3805
  %3823 = vmatprep.subr.bf16.mxu0 0
  %3824 = vmatpush1.bf16.msra.mxu0 %v3814
  %3825 = vmatprep.subr.bf16.mxu0 0
  %3826 = vmatpush1.bf16.msra.mxu0 %v3813
  %3827 = vmatprep.subr.bf16.mxu0 0
  %3828 = vmatpush1.bf16.msra.mxu0 %v3812
  %3829 = vmatprep.subr.bf16.mxu0 0
  %3830 = vmatpush1.bf16.msra.mxu0 %v3811
  %3831 = vmatprep.subr.bf16.mxu0 0
  %3832 = vmatpush1.bf16.msra.mxu0 %v3810
  %3833 = vmatprep.subr.bf16.mxu0 0
  %3834 = vmatpush1.bf16.msra.mxu0 %v3809
  %3835 = vmatprep.subr.bf16.mxu0 0
  %3836 = vmatpush1.bf16.msra.mxu0 %v3808
  %3837 = vmatprep.subr.bf16.mxu0 0
  %3838 = vmatpush1.bf16.msra.mxu0 %v3807
  %3839 = vmatprep.subr.bf16.mxu0 0
  %3840 = vmatpush2.bf16.msra.mxu0 0
  %3841 = vmatprep.subr.bf16.mxu0 0
  %3842 = vmatpush2.bf16.msra.mxu0 0
  %3843 = vmatprep.subr.bf16.mxu0 0
  %3844 = vmatpush2.bf16.msra.mxu0 0
  %3845 = vmatprep.subr.bf16.mxu0 0
  %3846 = vmatpush2.bf16.msra.mxu0 0
  %3847 = vmatprep.subr.bf16.mxu0 0
  %3848 = vmatpush2.bf16.msra.mxu0 0
  %3849 = vmatprep.subr.bf16.mxu0 0
  %3850 = vmatpush2.bf16.msra.mxu0 0
  %3851 = vmatprep.subr.bf16.mxu0 0
  %3852 = vmatpush2.bf16.msra.mxu0 0
  %3853 = vmatprep.subr.bf16.mxu0 0
  %3854 = vmatpush2.bf16.msra.mxu0 0
  %3855 = vmatprep.mubr.bf16.mxu0 0
  %3856 = vmatmul.mubr.bf16.gmra.mxu0 %v3754
  %v3857 = vpop.f32.mrf.mxu0
  %v3858 = vadd.f32 %v3774, %v3857
  %v3859 = vpop.f32.mrf.mxu0
  %v3860 = vpop.f32.mrf.mxu0
  %v3861 = vpop.f32.mrf.mxu0
  %3862 = vdwg.mxu0
  %3863 = vst [vmem:[%s8] sm:$0xff] %v3858
  // Predicated region
  $region34: #{netws_forward.1} parent=0 // pred_check
    _
  $region35: #{netws_forward.1} parent=0 // pred_check_branch
    %3865 = sbr.rel (0) target = $region37
  $region36: #{netws_forward.1} parent=0 // pred_region
    _
  $region37: #{netws_forward.1} parent=0 // pred_fallthru
    _
  // Predicated region
  $region38: #{netws_forward.1} parent=0 // pred_check
    _
  $region39: #{netws_forward.1} parent=0 // pred_check_branch
    %3867 = sbr.rel (0) target = $region41
  $region40: #{netws_forward.1} parent=0 // pred_region
    _
  $region41: #{netws_forward.1} parent=0 // pred_fallthru
    _

</llo_original>
